<compile_context>
chip_gen: v7x
topology: tpu7x:2x2x1
jax: 0.10.0
libtpu: 0.0.40
codegen_flags: <defaults>
</compile_context>

<pallas_src>
import functools

import jax
import jax.numpy as jnp
from jax.experimental import pallas as pl
from jax.experimental.pallas import tpu as pltpu


def _lane_pad(n):
    return max(128, ((n + 127) // 128) * 128)


def _sublane_pad(n):
    return max(8, ((n + 7) // 8) * 8)


def _make_gru_kernel(num_layers, seq_len, batch_p, hidden_size, gate_pad):
    """Kernel signature:
       (x_flat, h0, [w_ih_T, w_hh_T, bias_i, b_hh_n] * L, fc_w_T, fc_b)
       -> (fc_out, final_hidden)   with VMEM scratch gi0 (T*Bp, 3G)."""
    H = hidden_size
    G = gate_pad
    Bp = batch_p
    T = seq_len
    L = num_layers

    def kernel(*refs):
        x_ref = refs[0]                      # (T*Bp, I)  time-major, batch-flat
        h0_ref = refs[1]                     # (L, Bp, H)
        idx = 2
        layer_refs = []
        for _ in range(L):
            layer_refs.append(tuple(refs[idx:idx + 4]))
            idx += 4
        fcw_ref = refs[idx]                  # (H, Op)
        fcb_ref = refs[idx + 1]              # (1, Op)
        out_ref = refs[idx + 2]              # (Bp, Op)
        hid_ref = refs[idx + 3]              # (L, Bp, H)
        gi0_ref = refs[idx + 4]              # VMEM (T*Bp, 3G) layer-0 in-gates

        # Layer-0 input-to-hidden gates for ALL timesteps in one MXU matmul
        # (r/z biases already folded with b_hh_r / b_hh_z in prepare_params).
        wih0, _, bi0, _ = layer_refs[0]
        gi0_ref[...] = (jnp.dot(x_ref[...], wih0[...],
                                preferred_element_type=jnp.float32) + bi0[...])

        # Hoist loop-invariant broadcasts out of the recurrence (JAX does not
        # CSE broadcast_in_dim; without this every unrolled step re-broadcasts).
        bhhn_b = [jnp.broadcast_to(layer_refs[l][3][...], (Bp, H))
                  for l in range(L)]
        bias_b = [None] + [jnp.broadcast_to(layer_refs[l][2][...], (Bp, 3 * G))
                           for l in range(1, L)]

        def gru_step(l, gi_t, h):
            # W_hh is read from VMEM inside the step — no explicit vreg hoist,
            # so register pressure stays low across the unrolled chain.
            # TODO(synk): hold W_hh in MXU staging registers via
            #   pltpu.matmul_push_rhs / matmul_acc_lhs / matmul_pop.
            gh = jnp.dot(h, layer_refs[l][1][...],
                         preferred_element_type=jnp.float32)        # (Bp, 3G)
            # Every gate starts on a 128-lane boundary, so each slice below is
            # at lane offset 0 of its vreg: zero cross-lane moves.
            r = jax.nn.sigmoid(gi_t[:, 0:H] + gh[:, 0:H])
            z = jax.nn.sigmoid(gi_t[:, G:G + H] + gh[:, G:G + H])
            n = jnp.tanh(gi_t[:, 2 * G:2 * G + H]
                         + r * (gh[:, 2 * G:2 * G + H] + bhhn_b[l]))
            return (1.0 - z) * n + z * h

        # Wavefront recurrence: at wavefront step s, layer l runs timestep
        # t = s - l.  Fully unrolled straight-line SSA (T, L static) so the
        # scheduler can interleave the independent per-layer chains.
        h_state = [h0_ref[l] for l in range(L)]
        below = [None] * L        # layer l-1's output feeding layer l next
        for s in range(T + L - 1):
            # Iterate layers high -> low so layer l consumes below[l] produced
            # at step s-1 before layer l-1 overwrites it this step.
            for l in range(min(L - 1, s), -1, -1):
                t = s - l
                if t < 0 or t >= T:
                    continue
                if l == 0:
                    gi_t = gi0_ref[pl.ds(t * Bp, Bp), :]
                else:
                    gi_t = (jnp.dot(below[l], layer_refs[l][0][...],
                                    preferred_element_type=jnp.float32)
                            + bias_b[l])
                h_new = gru_step(l, gi_t, h_state[l])
                h_state[l] = h_new
                if l + 1 < L:
                    below[l + 1] = h_new

        for l in range(L):
            hid_ref[l] = h_state[l]

        # fc on the last layer's final hidden state.  Op is lane-padded to a
        # full 128-lane tile so the output store is unmasked / lane-dense.
        out_ref[...] = (jnp.dot(h_state[L - 1], fcw_ref[...],
                                preferred_element_type=jnp.float32)
                        + fcb_ref[...])

    return kernel


def prepare_params(params, num_layers, hidden_size):
    """One-time weight prep: transposes, bias folding, per-gate 128-lane pad."""
    H = hidden_size
    G = _lane_pad(H)
    layers_flat = []
    for l in range(num_layers):
        wih = params[f"w_ih_{l}"]          # (3H, in_l)
        whh = params[f"w_hh_{l}"]          # (3H, H)
        bih = params[f"b_ih_{l}"]          # (3H,)
        bhh = params[f"b_hh_{l}"]          # (3H,)

        def pad_gates_T(w):
            # (3H, cols) -> (cols, 3G), each gate transposed into its own
            # 128-lane column block (zero-padded).
            cols = w.shape[1]
            out = jnp.zeros((cols, 3 * G), w.dtype)
            for g in range(3):
                out = out.at[:, g * G:g * G + H].set(
                    jnp.transpose(w[g * H:(g + 1) * H, :]))
            return out

        def pad_gate_bias(b):
            out = jnp.zeros((1, 3 * G), b.dtype)
            for g in range(3):
                out = out.at[0, g * G:g * G + H].set(b[g * H:(g + 1) * H])
            return out

        # r/z biases pre-summed (b_ih + b_hh); n gate keeps b_ih only and
        # b_hh_n stays inside the r * ( . ) term.
        bias_fold = jnp.concatenate([bih[:2 * H] + bhh[:2 * H], bih[2 * H:]])
        layers_flat += [pad_gates_T(wih),            # (in_l, 3G)
                        pad_gates_T(whh),            # (H, 3G)
                        pad_gate_bias(bias_fold),    # (1, 3G)
                        bhh[2 * H:].reshape(1, H)]   # (1, H)

    O = params["fc_w"].shape[0]
    Op = _lane_pad(O)
    fc_w_T = jnp.zeros((H, Op), jnp.float32).at[:, :O].set(
        jnp.transpose(params["fc_w"]))
    fc_b = jnp.zeros((1, Op), jnp.float32).at[0, :O].set(params["fc_b"])
    return {"layers_flat": tuple(layers_flat), "fc_w_T": fc_w_T, "fc_b": fc_b}


def rnn_forward(x, hidden, prepared, *, num_layers, hidden_size, output_size):
    """x: (B, T, I) f32 (batch_first); hidden: (L, B, H) f32.
    Returns (fc_out (B, O), final_hidden (L, B, H))."""
    B, T, I = x.shape
    L, _, H = hidden.shape
    assert L == num_layers and H == hidden_size
    G = _lane_pad(H)
    Op = _lane_pad(output_size)

    # Pad batch to a full f32 sublane tile so vregs / MXU rows are dense.
    Bp = _sublane_pad(B)
    x_p = jnp.pad(x, ((0, Bp - B), (0, 0), (0, 0)))
    h_p = jnp.pad(hidden, ((0, 0), (0, Bp - B), (0, 0)))
    # Time-major, batch-flattened: row t*Bp + b == (timestep t, batch b).
    x_flat = jnp.transpose(x_p, (1, 0, 2)).reshape(T * Bp, I)

    inputs = [x_flat, h_p]
    inputs.extend(prepared["layers_flat"])
    inputs.append(prepared["fc_w_T"])
    inputs.append(prepared["fc_b"])

    vmem = pl.BlockSpec(memory_space=pltpu.MemorySpace.VMEM)
    kernel = _make_gru_kernel(L, T, Bp, H, G)

    out_p, hid_p = pl.pallas_call(
        kernel,
        out_shape=(jax.ShapeDtypeStruct((Bp, Op), jnp.float32),
                   jax.ShapeDtypeStruct((L, Bp, H), jnp.float32)),
        in_specs=[vmem] * len(inputs),
        out_specs=(vmem, vmem),
        scratch_shapes=[pltpu.VMEM((T * Bp, 3 * G), jnp.float32)],
    )(*inputs)
    return out_p[:B, :output_size], hid_p[:, :B, :]


def init_params(key, input_size, hidden_size, output_size, num_layers):
    """Deterministic init mimicking PyTorch's U(-1/sqrt(H), 1/sqrt(H))."""
    params = {}
    k = 1.0 / jnp.sqrt(hidden_size)
    keys = jax.random.split(key, 4 * num_layers + 2)
    ki = 0
    for l in range(num_layers):
        in_l = input_size if l == 0 else hidden_size
        params[f"w_ih_{l}"] = jax.random.uniform(
            keys[ki], (3 * hidden_size, in_l), jnp.float32, -k, k); ki += 1
        params[f"w_hh_{l}"] = jax.random.uniform(
            keys[ki], (3 * hidden_size, hidden_size), jnp.float32, -k, k); ki += 1
        params[f"b_ih_{l}"] = jax.random.uniform(
            keys[ki], (3 * hidden_size,), jnp.float32, -k, k); ki += 1
        params[f"b_hh_{l}"] = jax.random.uniform(
            keys[ki], (3 * hidden_size,), jnp.float32, -k, k); ki += 1
    params["fc_w"] = jax.random.uniform(
        keys[ki], (output_size, hidden_size), jnp.float32, -k, k); ki += 1
    params["fc_b"] = jax.random.uniform(
        keys[ki], (output_size,), jnp.float32, -k, k); ki += 1
    return params


def rnn_reference(x, hidden, params, num_layers, hidden_size):
    """Pure-JAX reference of torch.nn.GRU(batch_first) + Linear on last step."""
    B, T, _ = x.shape
    h = [hidden[l] for l in range(num_layers)]
    seq = x
    for l in range(num_layers):
        wih, whh = params[f"w_ih_{l}"], params[f"w_hh_{l}"]
        bih, bhh = params[f"b_ih_{l}"], params[f"b_hh_{l}"]
        hl = h[l]
        outs = []
        for t in range(T):
            xt = seq[:, t, :]
            gi = xt @ wih.T + bih
            gh = hl @ whh.T + bhh
            ir, iz, inn = jnp.split(gi, 3, axis=1)
            hr, hz, hn = jnp.split(gh, 3, axis=1)
            r = jax.nn.sigmoid(ir + hr)
            z = jax.nn.sigmoid(iz + hz)
            n = jnp.tanh(inn + r * hn)
            hl = (1.0 - z) * n + z * hl
            outs.append(hl)
        seq = jnp.stack(outs, axis=1)
        h[l] = hl
    out = seq[:, -1, :] @ params["fc_w"].T + params["fc_b"]
    return out, jnp.stack(h, axis=0)


if __name__ == "__main__":
    B, T = 2, 8
    INPUT_SIZE, HIDDEN_SIZE, OUTPUT_SIZE, NUM_LAYERS = 16, 32, 8, 2

    key = jax.random.PRNGKey(0)
    k_params, k_x = jax.random.split(key)
    params = init_params(k_params, INPUT_SIZE, HIDDEN_SIZE, OUTPUT_SIZE,
                         NUM_LAYERS)
    prepared = prepare_params(params, NUM_LAYERS, HIDDEN_SIZE)

    x = jax.random.normal(k_x, (B, T, INPUT_SIZE), jnp.float32)
    hidden0 = jnp.zeros((NUM_LAYERS, B, HIDDEN_SIZE), jnp.float32)  # init_hidden

    fwd = jax.jit(functools.partial(rnn_forward, num_layers=NUM_LAYERS,
                                    hidden_size=HIDDEN_SIZE,
                                    output_size=OUTPUT_SIZE))
    out, hid = fwd(x, hidden0, prepared)
    out, hid = jax.block_until_ready((out, hid))

    ref_out, ref_hid = rnn_reference(x, hidden0, params, NUM_LAYERS,
                                     HIDDEN_SIZE)
    assert out.shape == (B, OUTPUT_SIZE)
    assert hid.shape == (NUM_LAYERS, B, HIDDEN_SIZE)
    assert jnp.allclose(out, ref_out, rtol=1e-3, atol=1e-3)
    assert jnp.allclose(hid, ref_hid, rtol=1e-3, atol=1e-3)

    print("KERNEL_OK")
</pallas_src>

<mosaic_0001>
module attributes {stable_mosaic.version = 11 : i64} {
  func.func @kernel(%arg0: memref<64x16xf32, #tpu.memory_space<vmem>>, %arg1: memref<2x8x32xf32, #tpu.memory_space<vmem>>, %arg2: memref<16x384xf32, #tpu.memory_space<vmem>>, %arg3: memref<32x384xf32, #tpu.memory_space<vmem>>, %arg4: memref<1x384xf32, #tpu.memory_space<vmem>>, %arg5: memref<1x32xf32, #tpu.memory_space<vmem>>, %arg6: memref<32x384xf32, #tpu.memory_space<vmem>>, %arg7: memref<32x384xf32, #tpu.memory_space<vmem>>, %arg8: memref<1x384xf32, #tpu.memory_space<vmem>>, %arg9: memref<1x32xf32, #tpu.memory_space<vmem>>, %arg10: memref<32x128xf32, #tpu.memory_space<vmem>>, %arg11: memref<1x128xf32, #tpu.memory_space<vmem>>, %arg12: memref<8x128xf32, #tpu.memory_space<vmem>>, %arg13: memref<2x8x32xf32, #tpu.memory_space<vmem>>, %arg14: memref<64x384xf32, #tpu.memory_space<vmem>>) attributes {dimension_semantics = [], scalar_prefetch = 0 : i64, scratch_operands = 1 : i64, tpu.core_type = #tpu.core_type<tc>} {
    %c0 = arith.constant 0 : index
    %c0_0 = arith.constant 0 : index
    %0 = vector.load %arg0[%c0, %c0_0] : memref<64x16xf32, #tpu.memory_space<vmem>>, vector<64x16xf32>
    %c0_1 = arith.constant 0 : index
    %c0_2 = arith.constant 0 : index
    %1 = vector.load %arg2[%c0_1, %c0_2] : memref<16x384xf32, #tpu.memory_space<vmem>>, vector<16x384xf32>
    %cst = arith.constant dense<0.000000e+00> : vector<64x384xf32>
    %2 = tpu.matmul %0, %1, %cst {dimension_numbers = #tpu.dot_dimension_numbers<[1], [0], [0], [1], [0, 0, 1, 1], [], []>} : vector<64x16xf32>, vector<16x384xf32>, vector<64x384xf32> -> vector<64x384xf32>
    %c0_3 = arith.constant 0 : index
    %c0_4 = arith.constant 0 : index
    %3 = vector.load %arg4[%c0_3, %c0_4] : memref<1x384xf32, #tpu.memory_space<vmem>>, vector<1x384xf32>
    %4 = vector.broadcast %3 : vector<1x384xf32> to vector<64x384xf32>
    %5 = arith.addf %2, %4 : vector<64x384xf32>
    %c0_5 = arith.constant 0 : index
    %c0_6 = arith.constant 0 : index
    %6 = vector.load %arg14[%c0_5, %c0_6] : memref<64x384xf32, #tpu.memory_space<vmem>>, vector<64x384xf32>
    tpu.vector_store %arg14[%c0_5, %c0_6], %5 {strides = array<i32>} : memref<64x384xf32, #tpu.memory_space<vmem>>, vector<64x384xf32>,
    %c0_7 = arith.constant 0 : index
    %c0_8 = arith.constant 0 : index
    %7 = vector.load %arg5[%c0_7, %c0_8] : memref<1x32xf32, #tpu.memory_space<vmem>>, vector<1x32xf32>
    %8 = vector.shape_cast %7 : vector<1x32xf32> to vector<1x32xf32>
    %9 = vector.broadcast %8 : vector<1x32xf32> to vector<8x32xf32>
    %c0_9 = arith.constant 0 : index
    %c0_10 = arith.constant 0 : index
    %10 = vector.load %arg9[%c0_9, %c0_10] : memref<1x32xf32, #tpu.memory_space<vmem>>, vector<1x32xf32>
    %11 = vector.shape_cast %10 : vector<1x32xf32> to vector<1x32xf32>
    %12 = vector.broadcast %11 : vector<1x32xf32> to vector<8x32xf32>
    %c0_11 = arith.constant 0 : index
    %c0_12 = arith.constant 0 : index
    %13 = vector.load %arg8[%c0_11, %c0_12] : memref<1x384xf32, #tpu.memory_space<vmem>>, vector<1x384xf32>
    %14 = vector.shape_cast %13 : vector<1x384xf32> to vector<1x384xf32>
    %15 = vector.broadcast %14 : vector<1x384xf32> to vector<8x384xf32>
    %c0_13 = arith.constant 0 : index
    %c0_14 = arith.constant 0 : index
    %c0_15 = arith.constant 0 : index
    %16 = vector.load %arg1[%c0_13, %c0_14, %c0_15] : memref<2x8x32xf32, #tpu.memory_space<vmem>>, vector<1x8x32xf32>
    %17 = vector.shape_cast %16 : vector<1x8x32xf32> to vector<8x32xf32>
    %c1 = arith.constant 1 : index
    %c0_16 = arith.constant 0 : index
    %c0_17 = arith.constant 0 : index
    %18 = vector.load %arg1[%c1, %c0_16, %c0_17] : memref<2x8x32xf32, #tpu.memory_space<vmem>>, vector<1x8x32xf32>
    %19 = vector.shape_cast %18 : vector<1x8x32xf32> to vector<8x32xf32>
    %c0_18 = arith.constant 0 : index
    %c0_19 = arith.constant 0 : index
    %20 = vector.load %arg14[%c0_18, %c0_19] : memref<64x384xf32, #tpu.memory_space<vmem>>, vector<8x384xf32>
    %c0_20 = arith.constant 0 : index
    %c0_21 = arith.constant 0 : index
    %21 = vector.load %arg3[%c0_20, %c0_21] : memref<32x384xf32, #tpu.memory_space<vmem>>, vector<32x384xf32>
    %cst_22 = arith.constant dense<0.000000e+00> : vector<8x384xf32>
    %22 = tpu.matmul %17, %21, %cst_22 {dimension_numbers = #tpu.dot_dimension_numbers<[1], [0], [0], [1], [0, 0, 1, 1], [], []>} : vector<8x32xf32>, vector<32x384xf32>, vector<8x384xf32> -> vector<8x384xf32>
    %23 = vector.extract_strided_slice %20 {offsets = [0, 0], sizes = [8, 32], strides = [1, 1]} : vector<8x384xf32> to vector<8x32xf32>
    %24 = vector.extract_strided_slice %22 {offsets = [0, 0], sizes = [8, 32], strides = [1, 1]} : vector<8x384xf32> to vector<8x32xf32>
    %25 = arith.addf %23, %24 : vector<8x32xf32>
    %26 = arith.negf %25 : vector<8x32xf32>
    %27 = math.exp %26 : vector<8x32xf32>
    %cst_23 = arith.constant 1.000000e+00 : f32
    %28 = vector.broadcast %cst_23 : f32 to vector<8x32xf32>
    %29 = arith.addf %28, %27 : vector<8x32xf32>
    %30 = arith.divf %28, %29 : vector<8x32xf32>
    %31 = vector.extract_strided_slice %20 {offsets = [0, 128], sizes = [8, 32], strides = [1, 1]} : vector<8x384xf32> to vector<8x32xf32>
    %32 = vector.extract_strided_slice %22 {offsets = [0, 128], sizes = [8, 32], strides = [1, 1]} : vector<8x384xf32> to vector<8x32xf32>
    %33 = arith.addf %31, %32 : vector<8x32xf32>
    %34 = arith.negf %33 : vector<8x32xf32>
    %35 = math.exp %34 : vector<8x32xf32>
    %cst_24 = arith.constant 1.000000e+00 : f32
    %36 = vector.broadcast %cst_24 : f32 to vector<8x32xf32>
    %37 = arith.addf %36, %35 : vector<8x32xf32>
    %38 = arith.divf %36, %37 : vector<8x32xf32>
    %39 = vector.extract_strided_slice %20 {offsets = [0, 256], sizes = [8, 32], strides = [1, 1]} : vector<8x384xf32> to vector<8x32xf32>
    %40 = vector.extract_strided_slice %22 {offsets = [0, 256], sizes = [8, 32], strides = [1, 1]} : vector<8x384xf32> to vector<8x32xf32>
    %41 = arith.addf %40, %9 : vector<8x32xf32>
    %42 = arith.mulf %30, %41 : vector<8x32xf32>
    %43 = arith.addf %39, %42 : vector<8x32xf32>
    %44 = math.tanh %43 : vector<8x32xf32>
    %cst_25 = arith.constant 1.000000e+00 : f32
    %45 = vector.broadcast %cst_25 : f32 to vector<8x32xf32>
    %46 = arith.subf %45, %38 : vector<8x32xf32>
    %47 = arith.mulf %46, %44 : vector<8x32xf32>
    %48 = arith.mulf %38, %17 : vector<8x32xf32>
    %49 = arith.addf %47, %48 : vector<8x32xf32>
    %c0_26 = arith.constant 0 : index
    %c0_27 = arith.constant 0 : index
    %50 = vector.load %arg6[%c0_26, %c0_27] : memref<32x384xf32, #tpu.memory_space<vmem>>, vector<32x384xf32>
    %cst_28 = arith.constant dense<0.000000e+00> : vector<8x384xf32>
    %51 = tpu.matmul %49, %50, %cst_28 {dimension_numbers = #tpu.dot_dimension_numbers<[1], [0], [0], [1], [0, 0, 1, 1], [], []>} : vector<8x32xf32>, vector<32x384xf32>, vector<8x384xf32> -> vector<8x384xf32>
    %52 = arith.addf %51, %15 : vector<8x384xf32>
    %c0_29 = arith.constant 0 : index
    %c0_30 = arith.constant 0 : index
    %53 = vector.load %arg7[%c0_29, %c0_30] : memref<32x384xf32, #tpu.memory_space<vmem>>, vector<32x384xf32>
    %cst_31 = arith.constant dense<0.000000e+00> : vector<8x384xf32>
    %54 = tpu.matmul %19, %53, %cst_31 {dimension_numbers = #tpu.dot_dimension_numbers<[1], [0], [0], [1], [0, 0, 1, 1], [], []>} : vector<8x32xf32>, vector<32x384xf32>, vector<8x384xf32> -> vector<8x384xf32>
    %55 = vector.extract_strided_slice %52 {offsets = [0, 0], sizes = [8, 32], strides = [1, 1]} : vector<8x384xf32> to vector<8x32xf32>
    %56 = vector.extract_strided_slice %54 {offsets = [0, 0], sizes = [8, 32], strides = [1, 1]} : vector<8x384xf32> to vector<8x32xf32>
    %57 = arith.addf %55, %56 : vector<8x32xf32>
    %58 = arith.negf %57 : vector<8x32xf32>
    %59 = math.exp %58 : vector<8x32xf32>
    %cst_32 = arith.constant 1.000000e+00 : f32
    %60 = vector.broadcast %cst_32 : f32 to vector<8x32xf32>
    %61 = arith.addf %60, %59 : vector<8x32xf32>
    %62 = arith.divf %60, %61 : vector<8x32xf32>
    %63 = vector.extract_strided_slice %52 {offsets = [0, 128], sizes = [8, 32], strides = [1, 1]} : vector<8x384xf32> to vector<8x32xf32>
    %64 = vector.extract_strided_slice %54 {offsets = [0, 128], sizes = [8, 32], strides = [1, 1]} : vector<8x384xf32> to vector<8x32xf32>
    %65 = arith.addf %63, %64 : vector<8x32xf32>
    %66 = arith.negf %65 : vector<8x32xf32>
    %67 = math.exp %66 : vector<8x32xf32>
    %cst_33 = arith.constant 1.000000e+00 : f32
    %68 = vector.broadcast %cst_33 : f32 to vector<8x32xf32>
    %69 = arith.addf %68, %67 : vector<8x32xf32>
    %70 = arith.divf %68, %69 : vector<8x32xf32>
    %71 = vector.extract_strided_slice %52 {offsets = [0, 256], sizes = [8, 32], strides = [1, 1]} : vector<8x384xf32> to vector<8x32xf32>
    %72 = vector.extract_strided_slice %54 {offsets = [0, 256], sizes = [8, 32], strides = [1, 1]} : vector<8x384xf32> to vector<8x32xf32>
    %73 = arith.addf %72, %12 : vector<8x32xf32>
    %74 = arith.mulf %62, %73 : vector<8x32xf32>
    %75 = arith.addf %71, %74 : vector<8x32xf32>
    %76 = math.tanh %75 : vector<8x32xf32>
    %cst_34 = arith.constant 1.000000e+00 : f32
    %77 = vector.broadcast %cst_34 : f32 to vector<8x32xf32>
    %78 = arith.subf %77, %70 : vector<8x32xf32>
    %79 = arith.mulf %78, %76 : vector<8x32xf32>
    %80 = arith.mulf %70, %19 : vector<8x32xf32>
    %81 = arith.addf %79, %80 : vector<8x32xf32>
    %c8 = arith.constant 8 : index
    %c0_35 = arith.constant 0 : index
    %82 = vector.load %arg14[%c8, %c0_35] : memref<64x384xf32, #tpu.memory_space<vmem>>, vector<8x384xf32>
    %c0_36 = arith.constant 0 : index
    %c0_37 = arith.constant 0 : index
    %83 = vector.load %arg3[%c0_36, %c0_37] : memref<32x384xf32, #tpu.memory_space<vmem>>, vector<32x384xf32>
    %cst_38 = arith.constant dense<0.000000e+00> : vector<8x384xf32>
    %84 = tpu.matmul %49, %83, %cst_38 {dimension_numbers = #tpu.dot_dimension_numbers<[1], [0], [0], [1], [0, 0, 1, 1], [], []>} : vector<8x32xf32>, vector<32x384xf32>, vector<8x384xf32> -> vector<8x384xf32>
    %85 = vector.extract_strided_slice %82 {offsets = [0, 0], sizes = [8, 32], strides = [1, 1]} : vector<8x384xf32> to vector<8x32xf32>
    %86 = vector.extract_strided_slice %84 {offsets = [0, 0], sizes = [8, 32], strides = [1, 1]} : vector<8x384xf32> to vector<8x32xf32>
    %87 = arith.addf %85, %86 : vector<8x32xf32>
    %88 = arith.negf %87 : vector<8x32xf32>
    %89 = math.exp %88 : vector<8x32xf32>
    %cst_39 = arith.constant 1.000000e+00 : f32
    %90 = vector.broadcast %cst_39 : f32 to vector<8x32xf32>
    %91 = arith.addf %90, %89 : vector<8x32xf32>
    %92 = arith.divf %90, %91 : vector<8x32xf32>
    %93 = vector.extract_strided_slice %82 {offsets = [0, 128], sizes = [8, 32], strides = [1, 1]} : vector<8x384xf32> to vector<8x32xf32>
    %94 = vector.extract_strided_slice %84 {offsets = [0, 128], sizes = [8, 32], strides = [1, 1]} : vector<8x384xf32> to vector<8x32xf32>
    %95 = arith.addf %93, %94 : vector<8x32xf32>
    %96 = arith.negf %95 : vector<8x32xf32>
    %97 = math.exp %96 : vector<8x32xf32>
    %cst_40 = arith.constant 1.000000e+00 : f32
    %98 = vector.broadcast %cst_40 : f32 to vector<8x32xf32>
    %99 = arith.addf %98, %97 : vector<8x32xf32>
    %100 = arith.divf %98, %99 : vector<8x32xf32>
    %101 = vector.extract_strided_slice %82 {offsets = [0, 256], sizes = [8, 32], strides = [1, 1]} : vector<8x384xf32> to vector<8x32xf32>
    %102 = vector.extract_strided_slice %84 {offsets = [0, 256], sizes = [8, 32], strides = [1, 1]} : vector<8x384xf32> to vector<8x32xf32>
    %103 = arith.addf %102, %9 : vector<8x32xf32>
    %104 = arith.mulf %92, %103 : vector<8x32xf32>
    %105 = arith.addf %101, %104 : vector<8x32xf32>
    %106 = math.tanh %105 : vector<8x32xf32>
    %cst_41 = arith.constant 1.000000e+00 : f32
    %107 = vector.broadcast %cst_41 : f32 to vector<8x32xf32>
    %108 = arith.subf %107, %100 : vector<8x32xf32>
    %109 = arith.mulf %108, %106 : vector<8x32xf32>
    %110 = arith.mulf %100, %49 : vector<8x32xf32>
    %111 = arith.addf %109, %110 : vector<8x32xf32>
    %c0_42 = arith.constant 0 : index
    %c0_43 = arith.constant 0 : index
    %112 = vector.load %arg6[%c0_42, %c0_43] : memref<32x384xf32, #tpu.memory_space<vmem>>, vector<32x384xf32>
    %cst_44 = arith.constant dense<0.000000e+00> : vector<8x384xf32>
    %113 = tpu.matmul %111, %112, %cst_44 {dimension_numbers = #tpu.dot_dimension_numbers<[1], [0], [0], [1], [0, 0, 1, 1], [], []>} : vector<8x32xf32>, vector<32x384xf32>, vector<8x384xf32> -> vector<8x384xf32>
    %114 = arith.addf %113, %15 : vector<8x384xf32>
    %c0_45 = arith.constant 0 : index
    %c0_46 = arith.constant 0 : index
    %115 = vector.load %arg7[%c0_45, %c0_46] : memref<32x384xf32, #tpu.memory_space<vmem>>, vector<32x384xf32>
    %cst_47 = arith.constant dense<0.000000e+00> : vector<8x384xf32>
    %116 = tpu.matmul %81, %115, %cst_47 {dimension_numbers = #tpu.dot_dimension_numbers<[1], [0], [0], [1], [0, 0, 1, 1], [], []>} : vector<8x32xf32>, vector<32x384xf32>, vector<8x384xf32> -> vector<8x384xf32>
    %117 = vector.extract_strided_slice %114 {offsets = [0, 0], sizes = [8, 32], strides = [1, 1]} : vector<8x384xf32> to vector<8x32xf32>
    %118 = vector.extract_strided_slice %116 {offsets = [0, 0], sizes = [8, 32], strides = [1, 1]} : vector<8x384xf32> to vector<8x32xf32>
    %119 = arith.addf %117, %118 : vector<8x32xf32>
    %120 = arith.negf %119 : vector<8x32xf32>
    %121 = math.exp %120 : vector<8x32xf32>
    %cst_48 = arith.constant 1.000000e+00 : f32
    %122 = vector.broadcast %cst_48 : f32 to vector<8x32xf32>
    %123 = arith.addf %122, %121 : vector<8x32xf32>
    %124 = arith.divf %122, %123 : vector<8x32xf32>
    %125 = vector.extract_strided_slice %114 {offsets = [0, 128], sizes = [8, 32], strides = [1, 1]} : vector<8x384xf32> to vector<8x32xf32>
    %126 = vector.extract_strided_slice %116 {offsets = [0, 128], sizes = [8, 32], strides = [1, 1]} : vector<8x384xf32> to vector<8x32xf32>
    %127 = arith.addf %125, %126 : vector<8x32xf32>
    %128 = arith.negf %127 : vector<8x32xf32>
    %129 = math.exp %128 : vector<8x32xf32>
    %cst_49 = arith.constant 1.000000e+00 : f32
    %130 = vector.broadcast %cst_49 : f32 to vector<8x32xf32>
    %131 = arith.addf %130, %129 : vector<8x32xf32>
    %132 = arith.divf %130, %131 : vector<8x32xf32>
    %133 = vector.extract_strided_slice %114 {offsets = [0, 256], sizes = [8, 32], strides = [1, 1]} : vector<8x384xf32> to vector<8x32xf32>
    %134 = vector.extract_strided_slice %116 {offsets = [0, 256], sizes = [8, 32], strides = [1, 1]} : vector<8x384xf32> to vector<8x32xf32>
    %135 = arith.addf %134, %12 : vector<8x32xf32>
    %136 = arith.mulf %124, %135 : vector<8x32xf32>
    %137 = arith.addf %133, %136 : vector<8x32xf32>
    %138 = math.tanh %137 : vector<8x32xf32>
    %cst_50 = arith.constant 1.000000e+00 : f32
    %139 = vector.broadcast %cst_50 : f32 to vector<8x32xf32>
    %140 = arith.subf %139, %132 : vector<8x32xf32>
    %141 = arith.mulf %140, %138 : vector<8x32xf32>
    %142 = arith.mulf %132, %81 : vector<8x32xf32>
    %143 = arith.addf %141, %142 : vector<8x32xf32>
    %c16 = arith.constant 16 : index
    %c0_51 = arith.constant 0 : index
    %144 = vector.load %arg14[%c16, %c0_51] : memref<64x384xf32, #tpu.memory_space<vmem>>, vector<8x384xf32>
    %c0_52 = arith.constant 0 : index
    %c0_53 = arith.constant 0 : index
    %145 = vector.load %arg3[%c0_52, %c0_53] : memref<32x384xf32, #tpu.memory_space<vmem>>, vector<32x384xf32>
    %cst_54 = arith.constant dense<0.000000e+00> : vector<8x384xf32>
    %146 = tpu.matmul %111, %145, %cst_54 {dimension_numbers = #tpu.dot_dimension_numbers<[1], [0], [0], [1], [0, 0, 1, 1], [], []>} : vector<8x32xf32>, vector<32x384xf32>, vector<8x384xf32> -> vector<8x384xf32>
    %147 = vector.extract_strided_slice %144 {offsets = [0, 0], sizes = [8, 32], strides = [1, 1]} : vector<8x384xf32> to vector<8x32xf32>
    %148 = vector.extract_strided_slice %146 {offsets = [0, 0], sizes = [8, 32], strides = [1, 1]} : vector<8x384xf32> to vector<8x32xf32>
    %149 = arith.addf %147, %148 : vector<8x32xf32>
    %150 = arith.negf %149 : vector<8x32xf32>
    %151 = math.exp %150 : vector<8x32xf32>
    %cst_55 = arith.constant 1.000000e+00 : f32
    %152 = vector.broadcast %cst_55 : f32 to vector<8x32xf32>
    %153 = arith.addf %152, %151 : vector<8x32xf32>
    %154 = arith.divf %152, %153 : vector<8x32xf32>
    %155 = vector.extract_strided_slice %144 {offsets = [0, 128], sizes = [8, 32], strides = [1, 1]} : vector<8x384xf32> to vector<8x32xf32>
    %156 = vector.extract_strided_slice %146 {offsets = [0, 128], sizes = [8, 32], strides = [1, 1]} : vector<8x384xf32> to vector<8x32xf32>
    %157 = arith.addf %155, %156 : vector<8x32xf32>
    %158 = arith.negf %157 : vector<8x32xf32>
    %159 = math.exp %158 : vector<8x32xf32>
    %cst_56 = arith.constant 1.000000e+00 : f32
    %160 = vector.broadcast %cst_56 : f32 to vector<8x32xf32>
    %161 = arith.addf %160, %159 : vector<8x32xf32>
    %162 = arith.divf %160, %161 : vector<8x32xf32>
    %163 = vector.extract_strided_slice %144 {offsets = [0, 256], sizes = [8, 32], strides = [1, 1]} : vector<8x384xf32> to vector<8x32xf32>
    %164 = vector.extract_strided_slice %146 {offsets = [0, 256], sizes = [8, 32], strides = [1, 1]} : vector<8x384xf32> to vector<8x32xf32>
    %165 = arith.addf %164, %9 : vector<8x32xf32>
    %166 = arith.mulf %154, %165 : vector<8x32xf32>
    %167 = arith.addf %163, %166 : vector<8x32xf32>
    %168 = math.tanh %167 : vector<8x32xf32>
    %cst_57 = arith.constant 1.000000e+00 : f32
    %169 = vector.broadcast %cst_57 : f32 to vector<8x32xf32>
    %170 = arith.subf %169, %162 : vector<8x32xf32>
    %171 = arith.mulf %170, %168 : vector<8x32xf32>
    %172 = arith.mulf %162, %111 : vector<8x32xf32>
    %173 = arith.addf %171, %172 : vector<8x32xf32>
    %c0_58 = arith.constant 0 : index
    %c0_59 = arith.constant 0 : index
    %174 = vector.load %arg6[%c0_58, %c0_59] : memref<32x384xf32, #tpu.memory_space<vmem>>, vector<32x384xf32>
    %cst_60 = arith.constant dense<0.000000e+00> : vector<8x384xf32>
    %175 = tpu.matmul %173, %174, %cst_60 {dimension_numbers = #tpu.dot_dimension_numbers<[1], [0], [0], [1], [0, 0, 1, 1], [], []>} : vector<8x32xf32>, vector<32x384xf32>, vector<8x384xf32> -> vector<8x384xf32>
    %176 = arith.addf %175, %15 : vector<8x384xf32>
    %c0_61 = arith.constant 0 : index
    %c0_62 = arith.constant 0 : index
    %177 = vector.load %arg7[%c0_61, %c0_62] : memref<32x384xf32, #tpu.memory_space<vmem>>, vector<32x384xf32>
    %cst_63 = arith.constant dense<0.000000e+00> : vector<8x384xf32>
    %178 = tpu.matmul %143, %177, %cst_63 {dimension_numbers = #tpu.dot_dimension_numbers<[1], [0], [0], [1], [0, 0, 1, 1], [], []>} : vector<8x32xf32>, vector<32x384xf32>, vector<8x384xf32> -> vector<8x384xf32>
    %179 = vector.extract_strided_slice %176 {offsets = [0, 0], sizes = [8, 32], strides = [1, 1]} : vector<8x384xf32> to vector<8x32xf32>
    %180 = vector.extract_strided_slice %178 {offsets = [0, 0], sizes = [8, 32], strides = [1, 1]} : vector<8x384xf32> to vector<8x32xf32>
    %181 = arith.addf %179, %180 : vector<8x32xf32>
    %182 = arith.negf %181 : vector<8x32xf32>
    %183 = math.exp %182 : vector<8x32xf32>
    %cst_64 = arith.constant 1.000000e+00 : f32
    %184 = vector.broadcast %cst_64 : f32 to vector<8x32xf32>
    %185 = arith.addf %184, %183 : vector<8x32xf32>
    %186 = arith.divf %184, %185 : vector<8x32xf32>
    %187 = vector.extract_strided_slice %176 {offsets = [0, 128], sizes = [8, 32], strides = [1, 1]} : vector<8x384xf32> to vector<8x32xf32>
    %188 = vector.extract_strided_slice %178 {offsets = [0, 128], sizes = [8, 32], strides = [1, 1]} : vector<8x384xf32> to vector<8x32xf32>
    %189 = arith.addf %187, %188 : vector<8x32xf32>
    %190 = arith.negf %189 : vector<8x32xf32>
    %191 = math.exp %190 : vector<8x32xf32>
    %cst_65 = arith.constant 1.000000e+00 : f32
    %192 = vector.broadcast %cst_65 : f32 to vector<8x32xf32>
    %193 = arith.addf %192, %191 : vector<8x32xf32>
    %194 = arith.divf %192, %193 : vector<8x32xf32>
    %195 = vector.extract_strided_slice %176 {offsets = [0, 256], sizes = [8, 32], strides = [1, 1]} : vector<8x384xf32> to vector<8x32xf32>
    %196 = vector.extract_strided_slice %178 {offsets = [0, 256], sizes = [8, 32], strides = [1, 1]} : vector<8x384xf32> to vector<8x32xf32>
    %197 = arith.addf %196, %12 : vector<8x32xf32>
    %198 = arith.mulf %186, %197 : vector<8x32xf32>
    %199 = arith.addf %195, %198 : vector<8x32xf32>
    %200 = math.tanh %199 : vector<8x32xf32>
    %cst_66 = arith.constant 1.000000e+00 : f32
    %201 = vector.broadcast %cst_66 : f32 to vector<8x32xf32>
    %202 = arith.subf %201, %194 : vector<8x32xf32>
    %203 = arith.mulf %202, %200 : vector<8x32xf32>
    %204 = arith.mulf %194, %143 : vector<8x32xf32>
    %205 = arith.addf %203, %204 : vector<8x32xf32>
    %c24 = arith.constant 24 : index
    %c0_67 = arith.constant 0 : index
    %206 = vector.load %arg14[%c24, %c0_67] : memref<64x384xf32, #tpu.memory_space<vmem>>, vector<8x384xf32>
    %c0_68 = arith.constant 0 : index
    %c0_69 = arith.constant 0 : index
    %207 = vector.load %arg3[%c0_68, %c0_69] : memref<32x384xf32, #tpu.memory_space<vmem>>, vector<32x384xf32>
    %cst_70 = arith.constant dense<0.000000e+00> : vector<8x384xf32>
    %208 = tpu.matmul %173, %207, %cst_70 {dimension_numbers = #tpu.dot_dimension_numbers<[1], [0], [0], [1], [0, 0, 1, 1], [], []>} : vector<8x32xf32>, vector<32x384xf32>, vector<8x384xf32> -> vector<8x384xf32>
    %209 = vector.extract_strided_slice %206 {offsets = [0, 0], sizes = [8, 32], strides = [1, 1]} : vector<8x384xf32> to vector<8x32xf32>
    %210 = vector.extract_strided_slice %208 {offsets = [0, 0], sizes = [8, 32], strides = [1, 1]} : vector<8x384xf32> to vector<8x32xf32>
    %211 = arith.addf %209, %210 : vector<8x32xf32>
    %212 = arith.negf %211 : vector<8x32xf32>
    %213 = math.exp %212 : vector<8x32xf32>
    %cst_71 = arith.constant 1.000000e+00 : f32
    %214 = vector.broadcast %cst_71 : f32 to vector<8x32xf32>
    %215 = arith.addf %214, %213 : vector<8x32xf32>
    %216 = arith.divf %214, %215 : vector<8x32xf32>
    %217 = vector.extract_strided_slice %206 {offsets = [0, 128], sizes = [8, 32], strides = [1, 1]} : vector<8x384xf32> to vector<8x32xf32>
    %218 = vector.extract_strided_slice %208 {offsets = [0, 128], sizes = [8, 32], strides = [1, 1]} : vector<8x384xf32> to vector<8x32xf32>
    %219 = arith.addf %217, %218 : vector<8x32xf32>
    %220 = arith.negf %219 : vector<8x32xf32>
    %221 = math.exp %220 : vector<8x32xf32>
    %cst_72 = arith.constant 1.000000e+00 : f32
    %222 = vector.broadcast %cst_72 : f32 to vector<8x32xf32>
    %223 = arith.addf %222, %221 : vector<8x32xf32>
    %224 = arith.divf %222, %223 : vector<8x32xf32>
    %225 = vector.extract_strided_slice %206 {offsets = [0, 256], sizes = [8, 32], strides = [1, 1]} : vector<8x384xf32> to vector<8x32xf32>
    %226 = vector.extract_strided_slice %208 {offsets = [0, 256], sizes = [8, 32], strides = [1, 1]} : vector<8x384xf32> to vector<8x32xf32>
    %227 = arith.addf %226, %9 : vector<8x32xf32>
    %228 = arith.mulf %216, %227 : vector<8x32xf32>
    %229 = arith.addf %225, %228 : vector<8x32xf32>
    %230 = math.tanh %229 : vector<8x32xf32>
    %cst_73 = arith.constant 1.000000e+00 : f32
    %231 = vector.broadcast %cst_73 : f32 to vector<8x32xf32>
    %232 = arith.subf %231, %224 : vector<8x32xf32>
    %233 = arith.mulf %232, %230 : vector<8x32xf32>
    %234 = arith.mulf %224, %173 : vector<8x32xf32>
    %235 = arith.addf %233, %234 : vector<8x32xf32>
    %c0_74 = arith.constant 0 : index
    %c0_75 = arith.constant 0 : index
    %236 = vector.load %arg6[%c0_74, %c0_75] : memref<32x384xf32, #tpu.memory_space<vmem>>, vector<32x384xf32>
    %cst_76 = arith.constant dense<0.000000e+00> : vector<8x384xf32>
    %237 = tpu.matmul %235, %236, %cst_76 {dimension_numbers = #tpu.dot_dimension_numbers<[1], [0], [0], [1], [0, 0, 1, 1], [], []>} : vector<8x32xf32>, vector<32x384xf32>, vector<8x384xf32> -> vector<8x384xf32>
    %238 = arith.addf %237, %15 : vector<8x384xf32>
    %c0_77 = arith.constant 0 : index
    %c0_78 = arith.constant 0 : index
    %239 = vector.load %arg7[%c0_77, %c0_78] : memref<32x384xf32, #tpu.memory_space<vmem>>, vector<32x384xf32>
    %cst_79 = arith.constant dense<0.000000e+00> : vector<8x384xf32>
    %240 = tpu.matmul %205, %239, %cst_79 {dimension_numbers = #tpu.dot_dimension_numbers<[1], [0], [0], [1], [0, 0, 1, 1], [], []>} : vector<8x32xf32>, vector<32x384xf32>, vector<8x384xf32> -> vector<8x384xf32>
    %241 = vector.extract_strided_slice %238 {offsets = [0, 0], sizes = [8, 32], strides = [1, 1]} : vector<8x384xf32> to vector<8x32xf32>
    %242 = vector.extract_strided_slice %240 {offsets = [0, 0], sizes = [8, 32], strides = [1, 1]} : vector<8x384xf32> to vector<8x32xf32>
    %243 = arith.addf %241, %242 : vector<8x32xf32>
    %244 = arith.negf %243 : vector<8x32xf32>
    %245 = math.exp %244 : vector<8x32xf32>
    %cst_80 = arith.constant 1.000000e+00 : f32
    %246 = vector.broadcast %cst_80 : f32 to vector<8x32xf32>
    %247 = arith.addf %246, %245 : vector<8x32xf32>
    %248 = arith.divf %246, %247 : vector<8x32xf32>
    %249 = vector.extract_strided_slice %238 {offsets = [0, 128], sizes = [8, 32], strides = [1, 1]} : vector<8x384xf32> to vector<8x32xf32>
    %250 = vector.extract_strided_slice %240 {offsets = [0, 128], sizes = [8, 32], strides = [1, 1]} : vector<8x384xf32> to vector<8x32xf32>
    %251 = arith.addf %249, %250 : vector<8x32xf32>
    %252 = arith.negf %251 : vector<8x32xf32>
    %253 = math.exp %252 : vector<8x32xf32>
    %cst_81 = arith.constant 1.000000e+00 : f32
    %254 = vector.broadcast %cst_81 : f32 to vector<8x32xf32>
    %255 = arith.addf %254, %253 : vector<8x32xf32>
    %256 = arith.divf %254, %255 : vector<8x32xf32>
    %257 = vector.extract_strided_slice %238 {offsets = [0, 256], sizes = [8, 32], strides = [1, 1]} : vector<8x384xf32> to vector<8x32xf32>
    %258 = vector.extract_strided_slice %240 {offsets = [0, 256], sizes = [8, 32], strides = [1, 1]} : vector<8x384xf32> to vector<8x32xf32>
    %259 = arith.addf %258, %12 : vector<8x32xf32>
    %260 = arith.mulf %248, %259 : vector<8x32xf32>
    %261 = arith.addf %257, %260 : vector<8x32xf32>
    %262 = math.tanh %261 : vector<8x32xf32>
    %cst_82 = arith.constant 1.000000e+00 : f32
    %263 = vector.broadcast %cst_82 : f32 to vector<8x32xf32>
    %264 = arith.subf %263, %256 : vector<8x32xf32>
    %265 = arith.mulf %264, %262 : vector<8x32xf32>
    %266 = arith.mulf %256, %205 : vector<8x32xf32>
    %267 = arith.addf %265, %266 : vector<8x32xf32>
    %c32 = arith.constant 32 : index
    %c0_83 = arith.constant 0 : index
    %268 = vector.load %arg14[%c32, %c0_83] : memref<64x384xf32, #tpu.memory_space<vmem>>, vector<8x384xf32>
    %c0_84 = arith.constant 0 : index
    %c0_85 = arith.constant 0 : index
    %269 = vector.load %arg3[%c0_84, %c0_85] : memref<32x384xf32, #tpu.memory_space<vmem>>, vector<32x384xf32>
    %cst_86 = arith.constant dense<0.000000e+00> : vector<8x384xf32>
    %270 = tpu.matmul %235, %269, %cst_86 {dimension_numbers = #tpu.dot_dimension_numbers<[1], [0], [0], [1], [0, 0, 1, 1], [], []>} : vector<8x32xf32>, vector<32x384xf32>, vector<8x384xf32> -> vector<8x384xf32>
    %271 = vector.extract_strided_slice %268 {offsets = [0, 0], sizes = [8, 32], strides = [1, 1]} : vector<8x384xf32> to vector<8x32xf32>
    %272 = vector.extract_strided_slice %270 {offsets = [0, 0], sizes = [8, 32], strides = [1, 1]} : vector<8x384xf32> to vector<8x32xf32>
    %273 = arith.addf %271, %272 : vector<8x32xf32>
    %274 = arith.negf %273 : vector<8x32xf32>
    %275 = math.exp %274 : vector<8x32xf32>
    %cst_87 = arith.constant 1.000000e+00 : f32
    %276 = vector.broadcast %cst_87 : f32 to vector<8x32xf32>
    %277 = arith.addf %276, %275 : vector<8x32xf32>
    %278 = arith.divf %276, %277 : vector<8x32xf32>
    %279 = vector.extract_strided_slice %268 {offsets = [0, 128], sizes = [8, 32], strides = [1, 1]} : vector<8x384xf32> to vector<8x32xf32>
    %280 = vector.extract_strided_slice %270 {offsets = [0, 128], sizes = [8, 32], strides = [1, 1]} : vector<8x384xf32> to vector<8x32xf32>
    %281 = arith.addf %279, %280 : vector<8x32xf32>
    %282 = arith.negf %281 : vector<8x32xf32>
    %283 = math.exp %282 : vector<8x32xf32>
    %cst_88 = arith.constant 1.000000e+00 : f32
    %284 = vector.broadcast %cst_88 : f32 to vector<8x32xf32>
    %285 = arith.addf %284, %283 : vector<8x32xf32>
    %286 = arith.divf %284, %285 : vector<8x32xf32>
    %287 = vector.extract_strided_slice %268 {offsets = [0, 256], sizes = [8, 32], strides = [1, 1]} : vector<8x384xf32> to vector<8x32xf32>
    %288 = vector.extract_strided_slice %270 {offsets = [0, 256], sizes = [8, 32], strides = [1, 1]} : vector<8x384xf32> to vector<8x32xf32>
    %289 = arith.addf %288, %9 : vector<8x32xf32>
    %290 = arith.mulf %278, %289 : vector<8x32xf32>
    %291 = arith.addf %287, %290 : vector<8x32xf32>
    %292 = math.tanh %291 : vector<8x32xf32>
    %cst_89 = arith.constant 1.000000e+00 : f32
    %293 = vector.broadcast %cst_89 : f32 to vector<8x32xf32>
    %294 = arith.subf %293, %286 : vector<8x32xf32>
    %295 = arith.mulf %294, %292 : vector<8x32xf32>
    %296 = arith.mulf %286, %235 : vector<8x32xf32>
    %297 = arith.addf %295, %296 : vector<8x32xf32>
    %c0_90 = arith.constant 0 : index
    %c0_91 = arith.constant 0 : index
    %298 = vector.load %arg6[%c0_90, %c0_91] : memref<32x384xf32, #tpu.memory_space<vmem>>, vector<32x384xf32>
    %cst_92 = arith.constant dense<0.000000e+00> : vector<8x384xf32>
    %299 = tpu.matmul %297, %298, %cst_92 {dimension_numbers = #tpu.dot_dimension_numbers<[1], [0], [0], [1], [0, 0, 1, 1], [], []>} : vector<8x32xf32>, vector<32x384xf32>, vector<8x384xf32> -> vector<8x384xf32>
    %300 = arith.addf %299, %15 : vector<8x384xf32>
    %c0_93 = arith.constant 0 : index
    %c0_94 = arith.constant 0 : index
    %301 = vector.load %arg7[%c0_93, %c0_94] : memref<32x384xf32, #tpu.memory_space<vmem>>, vector<32x384xf32>
    %cst_95 = arith.constant dense<0.000000e+00> : vector<8x384xf32>
    %302 = tpu.matmul %267, %301, %cst_95 {dimension_numbers = #tpu.dot_dimension_numbers<[1], [0], [0], [1], [0, 0, 1, 1], [], []>} : vector<8x32xf32>, vector<32x384xf32>, vector<8x384xf32> -> vector<8x384xf32>
    %303 = vector.extract_strided_slice %300 {offsets = [0, 0], sizes = [8, 32], strides = [1, 1]} : vector<8x384xf32> to vector<8x32xf32>
    %304 = vector.extract_strided_slice %302 {offsets = [0, 0], sizes = [8, 32], strides = [1, 1]} : vector<8x384xf32> to vector<8x32xf32>
    %305 = arith.addf %303, %304 : vector<8x32xf32>
    %306 = arith.negf %305 : vector<8x32xf32>
    %307 = math.exp %306 : vector<8x32xf32>
    %cst_96 = arith.constant 1.000000e+00 : f32
    %308 = vector.broadcast %cst_96 : f32 to vector<8x32xf32>
    %309 = arith.addf %308, %307 : vector<8x32xf32>
    %310 = arith.divf %308, %309 : vector<8x32xf32>
    %311 = vector.extract_strided_slice %300 {offsets = [0, 128], sizes = [8, 32], strides = [1, 1]} : vector<8x384xf32> to vector<8x32xf32>
    %312 = vector.extract_strided_slice %302 {offsets = [0, 128], sizes = [8, 32], strides = [1, 1]} : vector<8x384xf32> to vector<8x32xf32>
    %313 = arith.addf %311, %312 : vector<8x32xf32>
    %314 = arith.negf %313 : vector<8x32xf32>
    %315 = math.exp %314 : vector<8x32xf32>
    %cst_97 = arith.constant 1.000000e+00 : f32
    %316 = vector.broadcast %cst_97 : f32 to vector<8x32xf32>
    %317 = arith.addf %316, %315 : vector<8x32xf32>
    %318 = arith.divf %316, %317 : vector<8x32xf32>
    %319 = vector.extract_strided_slice %300 {offsets = [0, 256], sizes = [8, 32], strides = [1, 1]} : vector<8x384xf32> to vector<8x32xf32>
    %320 = vector.extract_strided_slice %302 {offsets = [0, 256], sizes = [8, 32], strides = [1, 1]} : vector<8x384xf32> to vector<8x32xf32>
    %321 = arith.addf %320, %12 : vector<8x32xf32>
    %322 = arith.mulf %310, %321 : vector<8x32xf32>
    %323 = arith.addf %319, %322 : vector<8x32xf32>
    %324 = math.tanh %323 : vector<8x32xf32>
    %cst_98 = arith.constant 1.000000e+00 : f32
    %325 = vector.broadcast %cst_98 : f32 to vector<8x32xf32>
    %326 = arith.subf %325, %318 : vector<8x32xf32>
    %327 = arith.mulf %326, %324 : vector<8x32xf32>
    %328 = arith.mulf %318, %267 : vector<8x32xf32>
    %329 = arith.addf %327, %328 : vector<8x32xf32>
    %c40 = arith.constant 40 : index
    %c0_99 = arith.constant 0 : index
    %330 = vector.load %arg14[%c40, %c0_99] : memref<64x384xf32, #tpu.memory_space<vmem>>, vector<8x384xf32>
    %c0_100 = arith.constant 0 : index
    %c0_101 = arith.constant 0 : index
    %331 = vector.load %arg3[%c0_100, %c0_101] : memref<32x384xf32, #tpu.memory_space<vmem>>, vector<32x384xf32>
    %cst_102 = arith.constant dense<0.000000e+00> : vector<8x384xf32>
    %332 = tpu.matmul %297, %331, %cst_102 {dimension_numbers = #tpu.dot_dimension_numbers<[1], [0], [0], [1], [0, 0, 1, 1], [], []>} : vector<8x32xf32>, vector<32x384xf32>, vector<8x384xf32> -> vector<8x384xf32>
    %333 = vector.extract_strided_slice %330 {offsets = [0, 0], sizes = [8, 32], strides = [1, 1]} : vector<8x384xf32> to vector<8x32xf32>
    %334 = vector.extract_strided_slice %332 {offsets = [0, 0], sizes = [8, 32], strides = [1, 1]} : vector<8x384xf32> to vector<8x32xf32>
    %335 = arith.addf %333, %334 : vector<8x32xf32>
    %336 = arith.negf %335 : vector<8x32xf32>
    %337 = math.exp %336 : vector<8x32xf32>
    %cst_103 = arith.constant 1.000000e+00 : f32
    %338 = vector.broadcast %cst_103 : f32 to vector<8x32xf32>
    %339 = arith.addf %338, %337 : vector<8x32xf32>
    %340 = arith.divf %338, %339 : vector<8x32xf32>
    %341 = vector.extract_strided_slice %330 {offsets = [0, 128], sizes = [8, 32], strides = [1, 1]} : vector<8x384xf32> to vector<8x32xf32>
    %342 = vector.extract_strided_slice %332 {offsets = [0, 128], sizes = [8, 32], strides = [1, 1]} : vector<8x384xf32> to vector<8x32xf32>
    %343 = arith.addf %341, %342 : vector<8x32xf32>
    %344 = arith.negf %343 : vector<8x32xf32>
    %345 = math.exp %344 : vector<8x32xf32>
    %cst_104 = arith.constant 1.000000e+00 : f32
    %346 = vector.broadcast %cst_104 : f32 to vector<8x32xf32>
    %347 = arith.addf %346, %345 : vector<8x32xf32>
    %348 = arith.divf %346, %347 : vector<8x32xf32>
    %349 = vector.extract_strided_slice %330 {offsets = [0, 256], sizes = [8, 32], strides = [1, 1]} : vector<8x384xf32> to vector<8x32xf32>
    %350 = vector.extract_strided_slice %332 {offsets = [0, 256], sizes = [8, 32], strides = [1, 1]} : vector<8x384xf32> to vector<8x32xf32>
    %351 = arith.addf %350, %9 : vector<8x32xf32>
    %352 = arith.mulf %340, %351 : vector<8x32xf32>
    %353 = arith.addf %349, %352 : vector<8x32xf32>
    %354 = math.tanh %353 : vector<8x32xf32>
    %cst_105 = arith.constant 1.000000e+00 : f32
    %355 = vector.broadcast %cst_105 : f32 to vector<8x32xf32>
    %356 = arith.subf %355, %348 : vector<8x32xf32>
    %357 = arith.mulf %356, %354 : vector<8x32xf32>
    %358 = arith.mulf %348, %297 : vector<8x32xf32>
    %359 = arith.addf %357, %358 : vector<8x32xf32>
    %c0_106 = arith.constant 0 : index
    %c0_107 = arith.constant 0 : index
    %360 = vector.load %arg6[%c0_106, %c0_107] : memref<32x384xf32, #tpu.memory_space<vmem>>, vector<32x384xf32>
    %cst_108 = arith.constant dense<0.000000e+00> : vector<8x384xf32>
    %361 = tpu.matmul %359, %360, %cst_108 {dimension_numbers = #tpu.dot_dimension_numbers<[1], [0], [0], [1], [0, 0, 1, 1], [], []>} : vector<8x32xf32>, vector<32x384xf32>, vector<8x384xf32> -> vector<8x384xf32>
    %362 = arith.addf %361, %15 : vector<8x384xf32>
    %c0_109 = arith.constant 0 : index
    %c0_110 = arith.constant 0 : index
    %363 = vector.load %arg7[%c0_109, %c0_110] : memref<32x384xf32, #tpu.memory_space<vmem>>, vector<32x384xf32>
    %cst_111 = arith.constant dense<0.000000e+00> : vector<8x384xf32>
    %364 = tpu.matmul %329, %363, %cst_111 {dimension_numbers = #tpu.dot_dimension_numbers<[1], [0], [0], [1], [0, 0, 1, 1], [], []>} : vector<8x32xf32>, vector<32x384xf32>, vector<8x384xf32> -> vector<8x384xf32>
    %365 = vector.extract_strided_slice %362 {offsets = [0, 0], sizes = [8, 32], strides = [1, 1]} : vector<8x384xf32> to vector<8x32xf32>
    %366 = vector.extract_strided_slice %364 {offsets = [0, 0], sizes = [8, 32], strides = [1, 1]} : vector<8x384xf32> to vector<8x32xf32>
    %367 = arith.addf %365, %366 : vector<8x32xf32>
    %368 = arith.negf %367 : vector<8x32xf32>
    %369 = math.exp %368 : vector<8x32xf32>
    %cst_112 = arith.constant 1.000000e+00 : f32
    %370 = vector.broadcast %cst_112 : f32 to vector<8x32xf32>
    %371 = arith.addf %370, %369 : vector<8x32xf32>
    %372 = arith.divf %370, %371 : vector<8x32xf32>
    %373 = vector.extract_strided_slice %362 {offsets = [0, 128], sizes = [8, 32], strides = [1, 1]} : vector<8x384xf32> to vector<8x32xf32>
    %374 = vector.extract_strided_slice %364 {offsets = [0, 128], sizes = [8, 32], strides = [1, 1]} : vector<8x384xf32> to vector<8x32xf32>
    %375 = arith.addf %373, %374 : vector<8x32xf32>
    %376 = arith.negf %375 : vector<8x32xf32>
    %377 = math.exp %376 : vector<8x32xf32>
    %cst_113 = arith.constant 1.000000e+00 : f32
    %378 = vector.broadcast %cst_113 : f32 to vector<8x32xf32>
    %379 = arith.addf %378, %377 : vector<8x32xf32>
    %380 = arith.divf %378, %379 : vector<8x32xf32>
    %381 = vector.extract_strided_slice %362 {offsets = [0, 256], sizes = [8, 32], strides = [1, 1]} : vector<8x384xf32> to vector<8x32xf32>
    %382 = vector.extract_strided_slice %364 {offsets = [0, 256], sizes = [8, 32], strides = [1, 1]} : vector<8x384xf32> to vector<8x32xf32>
    %383 = arith.addf %382, %12 : vector<8x32xf32>
    %384 = arith.mulf %372, %383 : vector<8x32xf32>
    %385 = arith.addf %381, %384 : vector<8x32xf32>
    %386 = math.tanh %385 : vector<8x32xf32>
    %cst_114 = arith.constant 1.000000e+00 : f32
    %387 = vector.broadcast %cst_114 : f32 to vector<8x32xf32>
    %388 = arith.subf %387, %380 : vector<8x32xf32>
    %389 = arith.mulf %388, %386 : vector<8x32xf32>
    %390 = arith.mulf %380, %329 : vector<8x32xf32>
    %391 = arith.addf %389, %390 : vector<8x32xf32>
    %c48 = arith.constant 48 : index
    %c0_115 = arith.constant 0 : index
    %392 = vector.load %arg14[%c48, %c0_115] : memref<64x384xf32, #tpu.memory_space<vmem>>, vector<8x384xf32>
    %c0_116 = arith.constant 0 : index
    %c0_117 = arith.constant 0 : index
    %393 = vector.load %arg3[%c0_116, %c0_117] : memref<32x384xf32, #tpu.memory_space<vmem>>, vector<32x384xf32>
    %cst_118 = arith.constant dense<0.000000e+00> : vector<8x384xf32>
    %394 = tpu.matmul %359, %393, %cst_118 {dimension_numbers = #tpu.dot_dimension_numbers<[1], [0], [0], [1], [0, 0, 1, 1], [], []>} : vector<8x32xf32>, vector<32x384xf32>, vector<8x384xf32> -> vector<8x384xf32>
    %395 = vector.extract_strided_slice %392 {offsets = [0, 0], sizes = [8, 32], strides = [1, 1]} : vector<8x384xf32> to vector<8x32xf32>
    %396 = vector.extract_strided_slice %394 {offsets = [0, 0], sizes = [8, 32], strides = [1, 1]} : vector<8x384xf32> to vector<8x32xf32>
    %397 = arith.addf %395, %396 : vector<8x32xf32>
    %398 = arith.negf %397 : vector<8x32xf32>
    %399 = math.exp %398 : vector<8x32xf32>
    %cst_119 = arith.constant 1.000000e+00 : f32
    %400 = vector.broadcast %cst_119 : f32 to vector<8x32xf32>
    %401 = arith.addf %400, %399 : vector<8x32xf32>
    %402 = arith.divf %400, %401 : vector<8x32xf32>
    %403 = vector.extract_strided_slice %392 {offsets = [0, 128], sizes = [8, 32], strides = [1, 1]} : vector<8x384xf32> to vector<8x32xf32>
    %404 = vector.extract_strided_slice %394 {offsets = [0, 128], sizes = [8, 32], strides = [1, 1]} : vector<8x384xf32> to vector<8x32xf32>
    %405 = arith.addf %403, %404 : vector<8x32xf32>
    %406 = arith.negf %405 : vector<8x32xf32>
    %407 = math.exp %406 : vector<8x32xf32>
    %cst_120 = arith.constant 1.000000e+00 : f32
    %408 = vector.broadcast %cst_120 : f32 to vector<8x32xf32>
    %409 = arith.addf %408, %407 : vector<8x32xf32>
    %410 = arith.divf %408, %409 : vector<8x32xf32>
    %411 = vector.extract_strided_slice %392 {offsets = [0, 256], sizes = [8, 32], strides = [1, 1]} : vector<8x384xf32> to vector<8x32xf32>
    %412 = vector.extract_strided_slice %394 {offsets = [0, 256], sizes = [8, 32], strides = [1, 1]} : vector<8x384xf32> to vector<8x32xf32>
    %413 = arith.addf %412, %9 : vector<8x32xf32>
    %414 = arith.mulf %402, %413 : vector<8x32xf32>
    %415 = arith.addf %411, %414 : vector<8x32xf32>
    %416 = math.tanh %415 : vector<8x32xf32>
    %cst_121 = arith.constant 1.000000e+00 : f32
    %417 = vector.broadcast %cst_121 : f32 to vector<8x32xf32>
    %418 = arith.subf %417, %410 : vector<8x32xf32>
    %419 = arith.mulf %418, %416 : vector<8x32xf32>
    %420 = arith.mulf %410, %359 : vector<8x32xf32>
    %421 = arith.addf %419, %420 : vector<8x32xf32>
    %c0_122 = arith.constant 0 : index
    %c0_123 = arith.constant 0 : index
    %422 = vector.load %arg6[%c0_122, %c0_123] : memref<32x384xf32, #tpu.memory_space<vmem>>, vector<32x384xf32>
    %cst_124 = arith.constant dense<0.000000e+00> : vector<8x384xf32>
    %423 = tpu.matmul %421, %422, %cst_124 {dimension_numbers = #tpu.dot_dimension_numbers<[1], [0], [0], [1], [0, 0, 1, 1], [], []>} : vector<8x32xf32>, vector<32x384xf32>, vector<8x384xf32> -> vector<8x384xf32>
    %424 = arith.addf %423, %15 : vector<8x384xf32>
    %c0_125 = arith.constant 0 : index
    %c0_126 = arith.constant 0 : index
    %425 = vector.load %arg7[%c0_125, %c0_126] : memref<32x384xf32, #tpu.memory_space<vmem>>, vector<32x384xf32>
    %cst_127 = arith.constant dense<0.000000e+00> : vector<8x384xf32>
    %426 = tpu.matmul %391, %425, %cst_127 {dimension_numbers = #tpu.dot_dimension_numbers<[1], [0], [0], [1], [0, 0, 1, 1], [], []>} : vector<8x32xf32>, vector<32x384xf32>, vector<8x384xf32> -> vector<8x384xf32>
    %427 = vector.extract_strided_slice %424 {offsets = [0, 0], sizes = [8, 32], strides = [1, 1]} : vector<8x384xf32> to vector<8x32xf32>
    %428 = vector.extract_strided_slice %426 {offsets = [0, 0], sizes = [8, 32], strides = [1, 1]} : vector<8x384xf32> to vector<8x32xf32>
    %429 = arith.addf %427, %428 : vector<8x32xf32>
    %430 = arith.negf %429 : vector<8x32xf32>
    %431 = math.exp %430 : vector<8x32xf32>
    %cst_128 = arith.constant 1.000000e+00 : f32
    %432 = vector.broadcast %cst_128 : f32 to vector<8x32xf32>
    %433 = arith.addf %432, %431 : vector<8x32xf32>
    %434 = arith.divf %432, %433 : vector<8x32xf32>
    %435 = vector.extract_strided_slice %424 {offsets = [0, 128], sizes = [8, 32], strides = [1, 1]} : vector<8x384xf32> to vector<8x32xf32>
    %436 = vector.extract_strided_slice %426 {offsets = [0, 128], sizes = [8, 32], strides = [1, 1]} : vector<8x384xf32> to vector<8x32xf32>
    %437 = arith.addf %435, %436 : vector<8x32xf32>
    %438 = arith.negf %437 : vector<8x32xf32>
    %439 = math.exp %438 : vector<8x32xf32>
    %cst_129 = arith.constant 1.000000e+00 : f32
    %440 = vector.broadcast %cst_129 : f32 to vector<8x32xf32>
    %441 = arith.addf %440, %439 : vector<8x32xf32>
    %442 = arith.divf %440, %441 : vector<8x32xf32>
    %443 = vector.extract_strided_slice %424 {offsets = [0, 256], sizes = [8, 32], strides = [1, 1]} : vector<8x384xf32> to vector<8x32xf32>
    %444 = vector.extract_strided_slice %426 {offsets = [0, 256], sizes = [8, 32], strides = [1, 1]} : vector<8x384xf32> to vector<8x32xf32>
    %445 = arith.addf %444, %12 : vector<8x32xf32>
    %446 = arith.mulf %434, %445 : vector<8x32xf32>
    %447 = arith.addf %443, %446 : vector<8x32xf32>
    %448 = math.tanh %447 : vector<8x32xf32>
    %cst_130 = arith.constant 1.000000e+00 : f32
    %449 = vector.broadcast %cst_130 : f32 to vector<8x32xf32>
    %450 = arith.subf %449, %442 : vector<8x32xf32>
    %451 = arith.mulf %450, %448 : vector<8x32xf32>
    %452 = arith.mulf %442, %391 : vector<8x32xf32>
    %453 = arith.addf %451, %452 : vector<8x32xf32>
    %c56 = arith.constant 56 : index
    %c0_131 = arith.constant 0 : index
    %454 = vector.load %arg14[%c56, %c0_131] : memref<64x384xf32, #tpu.memory_space<vmem>>, vector<8x384xf32>
    %c0_132 = arith.constant 0 : index
    %c0_133 = arith.constant 0 : index
    %455 = vector.load %arg3[%c0_132, %c0_133] : memref<32x384xf32, #tpu.memory_space<vmem>>, vector<32x384xf32>
    %cst_134 = arith.constant dense<0.000000e+00> : vector<8x384xf32>
    %456 = tpu.matmul %421, %455, %cst_134 {dimension_numbers = #tpu.dot_dimension_numbers<[1], [0], [0], [1], [0, 0, 1, 1], [], []>} : vector<8x32xf32>, vector<32x384xf32>, vector<8x384xf32> -> vector<8x384xf32>
    %457 = vector.extract_strided_slice %454 {offsets = [0, 0], sizes = [8, 32], strides = [1, 1]} : vector<8x384xf32> to vector<8x32xf32>
    %458 = vector.extract_strided_slice %456 {offsets = [0, 0], sizes = [8, 32], strides = [1, 1]} : vector<8x384xf32> to vector<8x32xf32>
    %459 = arith.addf %457, %458 : vector<8x32xf32>
    %460 = arith.negf %459 : vector<8x32xf32>
    %461 = math.exp %460 : vector<8x32xf32>
    %cst_135 = arith.constant 1.000000e+00 : f32
    %462 = vector.broadcast %cst_135 : f32 to vector<8x32xf32>
    %463 = arith.addf %462, %461 : vector<8x32xf32>
    %464 = arith.divf %462, %463 : vector<8x32xf32>
    %465 = vector.extract_strided_slice %454 {offsets = [0, 128], sizes = [8, 32], strides = [1, 1]} : vector<8x384xf32> to vector<8x32xf32>
    %466 = vector.extract_strided_slice %456 {offsets = [0, 128], sizes = [8, 32], strides = [1, 1]} : vector<8x384xf32> to vector<8x32xf32>
    %467 = arith.addf %465, %466 : vector<8x32xf32>
    %468 = arith.negf %467 : vector<8x32xf32>
    %469 = math.exp %468 : vector<8x32xf32>
    %cst_136 = arith.constant 1.000000e+00 : f32
    %470 = vector.broadcast %cst_136 : f32 to vector<8x32xf32>
    %471 = arith.addf %470, %469 : vector<8x32xf32>
    %472 = arith.divf %470, %471 : vector<8x32xf32>
    %473 = vector.extract_strided_slice %454 {offsets = [0, 256], sizes = [8, 32], strides = [1, 1]} : vector<8x384xf32> to vector<8x32xf32>
    %474 = vector.extract_strided_slice %456 {offsets = [0, 256], sizes = [8, 32], strides = [1, 1]} : vector<8x384xf32> to vector<8x32xf32>
    %475 = arith.addf %474, %9 : vector<8x32xf32>
    %476 = arith.mulf %464, %475 : vector<8x32xf32>
    %477 = arith.addf %473, %476 : vector<8x32xf32>
    %478 = math.tanh %477 : vector<8x32xf32>
    %cst_137 = arith.constant 1.000000e+00 : f32
    %479 = vector.broadcast %cst_137 : f32 to vector<8x32xf32>
    %480 = arith.subf %479, %472 : vector<8x32xf32>
    %481 = arith.mulf %480, %478 : vector<8x32xf32>
    %482 = arith.mulf %472, %421 : vector<8x32xf32>
    %483 = arith.addf %481, %482 : vector<8x32xf32>
    %c0_138 = arith.constant 0 : index
    %c0_139 = arith.constant 0 : index
    %484 = vector.load %arg6[%c0_138, %c0_139] : memref<32x384xf32, #tpu.memory_space<vmem>>, vector<32x384xf32>
    %cst_140 = arith.constant dense<0.000000e+00> : vector<8x384xf32>
    %485 = tpu.matmul %483, %484, %cst_140 {dimension_numbers = #tpu.dot_dimension_numbers<[1], [0], [0], [1], [0, 0, 1, 1], [], []>} : vector<8x32xf32>, vector<32x384xf32>, vector<8x384xf32> -> vector<8x384xf32>
    %486 = arith.addf %485, %15 : vector<8x384xf32>
    %c0_141 = arith.constant 0 : index
    %c0_142 = arith.constant 0 : index
    %487 = vector.load %arg7[%c0_141, %c0_142] : memref<32x384xf32, #tpu.memory_space<vmem>>, vector<32x384xf32>
    %cst_143 = arith.constant dense<0.000000e+00> : vector<8x384xf32>
    %488 = tpu.matmul %453, %487, %cst_143 {dimension_numbers = #tpu.dot_dimension_numbers<[1], [0], [0], [1], [0, 0, 1, 1], [], []>} : vector<8x32xf32>, vector<32x384xf32>, vector<8x384xf32> -> vector<8x384xf32>
    %489 = vector.extract_strided_slice %486 {offsets = [0, 0], sizes = [8, 32], strides = [1, 1]} : vector<8x384xf32> to vector<8x32xf32>
    %490 = vector.extract_strided_slice %488 {offsets = [0, 0], sizes = [8, 32], strides = [1, 1]} : vector<8x384xf32> to vector<8x32xf32>
    %491 = arith.addf %489, %490 : vector<8x32xf32>
    %492 = arith.negf %491 : vector<8x32xf32>
    %493 = math.exp %492 : vector<8x32xf32>
    %cst_144 = arith.constant 1.000000e+00 : f32
    %494 = vector.broadcast %cst_144 : f32 to vector<8x32xf32>
    %495 = arith.addf %494, %493 : vector<8x32xf32>
    %496 = arith.divf %494, %495 : vector<8x32xf32>
    %497 = vector.extract_strided_slice %486 {offsets = [0, 128], sizes = [8, 32], strides = [1, 1]} : vector<8x384xf32> to vector<8x32xf32>
    %498 = vector.extract_strided_slice %488 {offsets = [0, 128], sizes = [8, 32], strides = [1, 1]} : vector<8x384xf32> to vector<8x32xf32>
    %499 = arith.addf %497, %498 : vector<8x32xf32>
    %500 = arith.negf %499 : vector<8x32xf32>
    %501 = math.exp %500 : vector<8x32xf32>
    %cst_145 = arith.constant 1.000000e+00 : f32
    %502 = vector.broadcast %cst_145 : f32 to vector<8x32xf32>
    %503 = arith.addf %502, %501 : vector<8x32xf32>
    %504 = arith.divf %502, %503 : vector<8x32xf32>
    %505 = vector.extract_strided_slice %486 {offsets = [0, 256], sizes = [8, 32], strides = [1, 1]} : vector<8x384xf32> to vector<8x32xf32>
    %506 = vector.extract_strided_slice %488 {offsets = [0, 256], sizes = [8, 32], strides = [1, 1]} : vector<8x384xf32> to vector<8x32xf32>
    %507 = arith.addf %506, %12 : vector<8x32xf32>
    %508 = arith.mulf %496, %507 : vector<8x32xf32>
    %509 = arith.addf %505, %508 : vector<8x32xf32>
    %510 = math.tanh %509 : vector<8x32xf32>
    %cst_146 = arith.constant 1.000000e+00 : f32
    %511 = vector.broadcast %cst_146 : f32 to vector<8x32xf32>
    %512 = arith.subf %511, %504 : vector<8x32xf32>
    %513 = arith.mulf %512, %510 : vector<8x32xf32>
    %514 = arith.mulf %504, %453 : vector<8x32xf32>
    %515 = arith.addf %513, %514 : vector<8x32xf32>
    %c0_147 = arith.constant 0 : index
    %c0_148 = arith.constant 0 : index
    %c0_149 = arith.constant 0 : index
    %516 = vector.load %arg13[%c0_147, %c0_148, %c0_149] : memref<2x8x32xf32, #tpu.memory_space<vmem>>, vector<1x8x32xf32>
    %517 = vector.shape_cast %516 : vector<1x8x32xf32> to vector<8x32xf32>
    %518 = vector.shape_cast %483 : vector<8x32xf32> to vector<1x8x32xf32>
    tpu.vector_store %arg13[%c0_147, %c0_148, %c0_149], %518 {strides = array<i32>} : memref<2x8x32xf32, #tpu.memory_space<vmem>>, vector<1x8x32xf32>,
    %c1_150 = arith.constant 1 : index
    %c0_151 = arith.constant 0 : index
    %c0_152 = arith.constant 0 : index
    %519 = vector.load %arg13[%c1_150, %c0_151, %c0_152] : memref<2x8x32xf32, #tpu.memory_space<vmem>>, vector<1x8x32xf32>
    %520 = vector.shape_cast %519 : vector<1x8x32xf32> to vector<8x32xf32>
    %521 = vector.shape_cast %515 : vector<8x32xf32> to vector<1x8x32xf32>
    tpu.vector_store %arg13[%c1_150, %c0_151, %c0_152], %521 {strides = array<i32>} : memref<2x8x32xf32, #tpu.memory_space<vmem>>, vector<1x8x32xf32>,
    %c0_153 = arith.constant 0 : index
    %c0_154 = arith.constant 0 : index
    %522 = vector.load %arg10[%c0_153, %c0_154] : memref<32x128xf32, #tpu.memory_space<vmem>>, vector<32x128xf32>
    %cst_155 = arith.constant dense<0.000000e+00> : vector<8x128xf32>
    %523 = tpu.matmul %515, %522, %cst_155 {dimension_numbers = #tpu.dot_dimension_numbers<[1], [0], [0], [1], [0, 0, 1, 1], [], []>} : vector<8x32xf32>, vector<32x128xf32>, vector<8x128xf32> -> vector<8x128xf32>
    %c0_156 = arith.constant 0 : index
    %c0_157 = arith.constant 0 : index
    %524 = vector.load %arg11[%c0_156, %c0_157] : memref<1x128xf32, #tpu.memory_space<vmem>>, vector<1x128xf32>
    %525 = vector.broadcast %524 : vector<1x128xf32> to vector<8x128xf32>
    %526 = arith.addf %523, %525 : vector<8x128xf32>
    %c0_158 = arith.constant 0 : index
    %c0_159 = arith.constant 0 : index
    %527 = vector.load %arg12[%c0_158, %c0_159] : memref<8x128xf32, #tpu.memory_space<vmem>>, vector<8x128xf32>
    tpu.vector_store %arg12[%c0_158, %c0_159], %526 {strides = array<i32>} : memref<8x128xf32, #tpu.memory_space<vmem>>, vector<8x128xf32>,
    return
  }
}

</mosaic_0001>

<llo_original>
// kernel: rnn_forward.1
$region0: #{rnn_forward.1}
  #allocation0 [shape = 'u32[]', space=smem, size = 0x4, offset = 0x4, fixed_abs, tag = 'smem constant byte address 0x4 - core index']
  #allocation1 [shape = 'u32[144,128]{1,0:T(1,128)}', space=vmem, size = 0x12000, scoped, tag = 'internal scratch']
  #allocation2 [shape = 'f32[64,384]{1,0:T(8,128)}', space=vmem, size = 0x18000, scoped, tag = 'scratch operand']
  %s0 = inlined_call_operand.vmem [shape: f32[64,16], index: 0, kind: input, shape index: {}]
  %s1 = inlined_call_operand.vmem [shape: f32[2,8,32], index: 1, kind: input, shape index: {}]
  %s2 = inlined_call_operand.vmem [shape: f32[16,384], index: 2, kind: input, shape index: {}]
  %s3 = inlined_call_operand.vmem [shape: f32[32,384], index: 3, kind: input, shape index: {}]
  %s4 = inlined_call_operand.vmem [shape: f32[1,384], index: 4, kind: input, shape index: {}]
  %s5 = inlined_call_operand.hbm [shape: f32[1,32], index: 5, kind: input, shape index: {}]
  %s6 = inlined_call_operand.vmem [shape: f32[32,384], index: 6, kind: input, shape index: {}]
  %s7 = inlined_call_operand.hbm [shape: f32[32,384], index: 7, kind: input, shape index: {}]
  %s8 = inlined_call_operand.hbm [shape: f32[1,384], index: 8, kind: input, shape index: {}]
  %s9 = inlined_call_operand.hbm [shape: f32[1,32], index: 9, kind: input, shape index: {}]
  %s10 = inlined_call_operand.hbm [shape: f32[32,128], index: 10, kind: input, shape index: {}]
  %s11 = inlined_call_operand.hbm [shape: f32[1,128], index: 11, kind: input, shape index: {}]
  %s12 = inlined_call_operand.vmem [shape: f32[8,128], index: 12, kind: output, shape index: {0}]
  %s13 = inlined_call_operand.vmem [shape: f32[2,8,32], index: 13, kind: output, shape index: {1}]
  %14 = xla_tuple %s12, %s13
  %s15 = sld [smem:[#allocation0]]
  $region90: #{rnn_forward.1} parent=0
    _
  %s17 = ssub.s32 1, %s15
  %s18 = scalar_select 0, %s17, %s15
  $region1: #{rnn_forward.1} parent=0
    #allocation3 [shape = 'u8[512]{0}', space=vmem, size = 0x400, scoped, tag = 'input window, operand 5, single buffered']
    #allocation4 [shape = 's32[1]{0}', space=sflag, size = 0x4, scoped, tag = 'scoped memory for rnn_forward.1']
    #allocation5 [shape = 'u8[49152]{0}', space=vmem, size = 0xc000, scoped, tag = 'input window, operand 7, single buffered']
    #allocation6 [shape = 's32[1]{0}', space=sflag, size = 0x4, scoped, tag = 'scoped memory for rnn_forward.1']
    #allocation7 [shape = 'u8[1536]{0}', space=vmem, size = 0x800, scoped, tag = 'input window, operand 8, single buffered']
    #allocation8 [shape = 'u8[512]{0}', space=vmem, size = 0x400, scoped, tag = 'input window, operand 9, single buffered']
    #allocation9 [shape = 's32[1]{0}', space=sflag, size = 0x4, scoped, tag = 'scoped memory for rnn_forward.1']
    #allocation10 [shape = 'u8[16384]{0}', space=vmem, size = 0x4000, scoped, tag = 'input window, operand 10, single buffered']
    #allocation11 [shape = 'u8[512]{0}', space=vmem, size = 0x400, scoped, tag = 'input window, operand 11, single buffered']
    #allocation12 [shape = 's32[1]{0}', space=sflag, size = 0x4, scoped, tag = 'scoped memory for rnn_forward.1']
    %19 = vsyncpa [#allocation4], 0
    %20 = vsyncpa [#allocation6], 0
    %21 = vsyncpa [#allocation9], 0
    %22 = vsyncpa [#allocation12], 0
    // Predicated region
    $region2: #{rnn_forward.1} parent=1 // pred_check
      _
    $region3: #{rnn_forward.1} parent=1 // pred_check_branch
      %24 = sbr.rel (0) target = $region5
    $region4: #{rnn_forward.1} parent=1 // pred_region
      _
    $region5: #{rnn_forward.1} parent=1 // pred_fallthru
      _
    // Predicated region
    $region6: #{rnn_forward.1} parent=1 // pred_check
      _
    $region7: #{rnn_forward.1} parent=1 // pred_check_branch
      %26 = sbr.rel (0) target = $region9
    $region8: #{rnn_forward.1} parent=1 // pred_region
      _
    $region9: #{rnn_forward.1} parent=1 // pred_fallthru
      _
    // Predicated region
    $region10: #{rnn_forward.1} parent=1 // pred_check
      _
    $region11: #{rnn_forward.1} parent=1 // pred_check_branch
      %28 = sbr.rel (0) target = $region13
    $region12: #{rnn_forward.1} parent=1 // pred_region
      _
    $region13: #{rnn_forward.1} parent=1 // pred_fallthru
      _
    // Predicated region
    $region14: #{rnn_forward.1} parent=1 // pred_check
      _
    $region15: #{rnn_forward.1} parent=1 // pred_check_branch
      %30 = sbr.rel (0) target = $region17
    $region16: #{rnn_forward.1} parent=1 // pred_region
      _
    $region17: #{rnn_forward.1} parent=1 // pred_fallthru
      _
    // Predicated region
    $region18: #{rnn_forward.1} parent=1 // pred_check
      _
    $region19: #{rnn_forward.1} parent=1 // pred_check_branch
      %32 = sbr.rel (0) target = $region21
    $region20: #{rnn_forward.1} parent=1 // pred_region
      _
    $region21: #{rnn_forward.1} parent=1 // pred_fallthru
      _
    // Predicated region
    $region22: #{rnn_forward.1} parent=1 // pred_check
      _
    $region23: #{rnn_forward.1} parent=1 // pred_check_branch
      %34 = sbr.rel (0) target = $region25
    $region24: #{rnn_forward.1} parent=1 // pred_region
      %s36 = ssub.s32 16, 16
      %37 = vsyncadd [#allocation4], %s36
      %s39 = sshll.u32 [#allocation3], 4
      %s40 = int_to_ptr.vmem [resolvable:$true] %s39
      %42 = dma.hbm_to_vmem [thread:$0]  %s5, 16, %s40, [#allocation4]
    $region25: #{rnn_forward.1} parent=1 // pred_fallthru
      _
    // Predicated region
    $region26: #{rnn_forward.1} parent=1 // pred_check
      _
    $region27: #{rnn_forward.1} parent=1 // pred_check_branch
      %44 = sbr.rel (0) target = $region29
    $region28: #{rnn_forward.1} parent=1 // pred_region
      _
    $region29: #{rnn_forward.1} parent=1 // pred_fallthru
      _
    // Predicated region
    $region30: #{rnn_forward.1} parent=1 // pred_check
      _
    $region31: #{rnn_forward.1} parent=1 // pred_check_branch
      %46 = sbr.rel (0) target = $region33
    $region32: #{rnn_forward.1} parent=1 // pred_region
      %s48 = ssub.s32 1536, 1536
      %49 = vsyncadd [#allocation6], %s48
      %s50 = sshll.u32 [#allocation5], 4
      %s51 = int_to_ptr.vmem [resolvable:$true] %s50
      %56 = dma.hbm_to_vmem [thread:$0]  %s7, 1536, %s51, [#allocation6], 384, 384, 24
    $region33: #{rnn_forward.1} parent=1 // pred_fallthru
      _
    // Predicated region
    $region34: #{rnn_forward.1} parent=1 // pred_check
      _
    $region35: #{rnn_forward.1} parent=1 // pred_check_branch
      %58 = sbr.rel (0) target = $region37
    $region36: #{rnn_forward.1} parent=1 // pred_region
      %s60 = ssub.s32 48, 48
      %61 = vsyncadd [#allocation6], %s60
      %s63 = sshll.u32 [#allocation7], 4
      %s64 = int_to_ptr.vmem [resolvable:$true] %s63
      %66 = dma.hbm_to_vmem [thread:$0]  %s8, 48, %s64, [#allocation6]
    $region37: #{rnn_forward.1} parent=1 // pred_fallthru
      _
    // Predicated region
    $region38: #{rnn_forward.1} parent=1 // pred_check
      _
    $region39: #{rnn_forward.1} parent=1 // pred_check_branch
      %68 = sbr.rel (0) target = $region41
    $region40: #{rnn_forward.1} parent=1 // pred_region
      %s70 = ssub.s32 16, 16
      %71 = vsyncadd [#allocation9], %s70
      %s73 = sshll.u32 [#allocation8], 4
      %s74 = int_to_ptr.vmem [resolvable:$true] %s73
      %76 = dma.hbm_to_vmem [thread:$0]  %s9, 16, %s74, [#allocation9]
    $region41: #{rnn_forward.1} parent=1 // pred_fallthru
      _
    // Predicated region
    $region42: #{rnn_forward.1} parent=1 // pred_check
      _
    $region43: #{rnn_forward.1} parent=1 // pred_check_branch
      %78 = sbr.rel (0) target = $region45
    $region44: #{rnn_forward.1} parent=1 // pred_region
      %s80 = ssub.s32 512, 512
      %81 = vsyncadd [#allocation9], %s80
      %s82 = sshll.u32 [#allocation10], 4
      %s83 = int_to_ptr.vmem [resolvable:$true] %s82
      %88 = dma.hbm_to_vmem [thread:$0]  %s10, 512, %s83, [#allocation9], 128, 128, 8
    $region45: #{rnn_forward.1} parent=1 // pred_fallthru
      _
    // Predicated region
    $region46: #{rnn_forward.1} parent=1 // pred_check
      _
    $region47: #{rnn_forward.1} parent=1 // pred_check_branch
      %90 = sbr.rel (0) target = $region49
    $region48: #{rnn_forward.1} parent=1 // pred_region
      %s92 = ssub.s32 16, 16
      %93 = vsyncadd [#allocation12], %s92
      %s95 = sshll.u32 [#allocation11], 4
      %s96 = int_to_ptr.vmem [resolvable:$true] %s95
      %98 = dma.hbm_to_vmem [thread:$0]  %s11, 16, %s96, [#allocation12]
    $region49: #{rnn_forward.1} parent=1 // pred_fallthru
      _
    // Predicated region
    $region50: #{rnn_forward.1} parent=1 // pred_check
      _
    $region51: #{rnn_forward.1} parent=1 // pred_check_branch
      %100 = sbr.rel (0) target = $region53
    $region52: #{rnn_forward.1} parent=1 // pred_region
      %101 = dma.done [#allocation4], 16
    $region53: #{rnn_forward.1} parent=1 // pred_fallthru
      _
    // Predicated region
    $region54: #{rnn_forward.1} parent=1 // pred_check
      _
    $region55: #{rnn_forward.1} parent=1 // pred_check_branch
      %103 = sbr.rel (0) target = $region57
    $region56: #{rnn_forward.1} parent=1 // pred_region
      %104 = dma.done [#allocation6], 1536
    $region57: #{rnn_forward.1} parent=1 // pred_fallthru
      _
    // Predicated region
    $region58: #{rnn_forward.1} parent=1 // pred_check
      _
    $region59: #{rnn_forward.1} parent=1 // pred_check_branch
      %106 = sbr.rel (0) target = $region61
    $region60: #{rnn_forward.1} parent=1 // pred_region
      %107 = dma.done [#allocation6], 48
    $region61: #{rnn_forward.1} parent=1 // pred_fallthru
      _
    // Predicated region
    $region62: #{rnn_forward.1} parent=1 // pred_check
      _
    $region63: #{rnn_forward.1} parent=1 // pred_check_branch
      %109 = sbr.rel (0) target = $region65
    $region64: #{rnn_forward.1} parent=1 // pred_region
      %110 = dma.done [#allocation9], 16
    $region65: #{rnn_forward.1} parent=1 // pred_fallthru
      _
    // Predicated region
    $region66: #{rnn_forward.1} parent=1 // pred_check
      _
    $region67: #{rnn_forward.1} parent=1 // pred_check_branch
      %112 = sbr.rel (0) target = $region69
    $region68: #{rnn_forward.1} parent=1 // pred_region
      %113 = dma.done [#allocation9], 512
    $region69: #{rnn_forward.1} parent=1 // pred_fallthru
      _
    // Predicated region
    $region70: #{rnn_forward.1} parent=1 // pred_check
      _
    $region71: #{rnn_forward.1} parent=1 // pred_check_branch
      %115 = sbr.rel (0) target = $region73
    $region72: #{rnn_forward.1} parent=1 // pred_region
      %116 = dma.done [#allocation12], 16
    $region73: #{rnn_forward.1} parent=1 // pred_fallthru
      _
    %v117 = vld [vmem:[%s0] sm:$0xff]
    %v118 = vld [vmem:[%s0 + $0x8] sm:$0xff]
    %v119 = vld [vmem:[%s0 + $0x10] sm:$0xff]
    %v120 = vld [vmem:[%s0 + $0x18] sm:$0xff]
    %v121 = vld [vmem:[%s0 + $0x20] sm:$0xff]
    %v122 = vld [vmem:[%s0 + $0x28] sm:$0xff]
    %v123 = vld [vmem:[%s0 + $0x30] sm:$0xff]
    %v124 = vld [vmem:[%s0 + $0x38] sm:$0xff]
    %v125 = vld [vmem:[%s2] sm:$0xff]
    %v126 = vld [vmem:[%s2 + $0x8] sm:$0xff]
    %v127 = vld [vmem:[%s2 + $0x10] sm:$0xff]
    %v128 = vld [vmem:[%s2 + $0x18] sm:$0xff]
    %v129 = vld [vmem:[%s2 + $0x20] sm:$0xff]
    %v130 = vld [vmem:[%s2 + $0x28] sm:$0xff]
    %v131 = vld [vmem:[%s4] sm:$0x7]
    %v133 = vlaneseq
    %v134 = vshrl.u32 %v133, 7
    %v135 = vsub.s32 0, %v134
    %v136 = vrot.slane %v131, %v135
    %v137 = vlaneseq
    %v138 = vshrl.u32 %v137, 7
    %v139 = vsub.s32 1, %v138
    %v140 = vrot.slane %v131, %v139
    %v141 = vlaneseq
    %v142 = vshrl.u32 %v141, 7
    %v143 = vsub.s32 2, %v142
    %v144 = vrot.slane %v131, %v143
    %vm148 = vcmask 130048
    %v150 = vsel %vm148, %v117, 0
    %v153 = vsel %vm148, %v118, 0
    %v156 = vsel %vm148, %v119, 0
    %v159 = vsel %vm148, %v120, 0
    %v162 = vsel %vm148, %v121, 0
    %v165 = vsel %vm148, %v122, 0
    %v168 = vsel %vm148, %v123, 0
    %v171 = vsel %vm148, %v124, 0
    %173 = vmatprep.subr.mxu0 %v126
    %174 = vmatpush1.msra.mxu0 %v125
    %175 = vmatprep.subr.mxu0 %v129
    %176 = vmatpush1.msra.mxu0 %v128
    %177 = vmatprep.subr.mxu0 0.0
    %178 = vmatpush1.msra.mxu0 0.0
    %179 = vmatprep.subr.mxu0 0.0
    %180 = vmatpush1.msra.mxu0 0.0
    %181 = vmatprep.subr.mxu0 0.0
    %182 = vmatpush1.msra.mxu0 0.0
    %183 = vmatprep.subr.mxu0 0.0
    %184 = vmatpush1.msra.mxu0 0.0
    %185 = vmatprep.subr.mxu0 0.0
    %186 = vmatpush1.msra.mxu0 0.0
    %187 = vmatprep.subr.mxu0 0.0
    %188 = vmatpush1.msra.mxu0 0.0
    %189 = vmatprep.subr.mxu0 0.0
    %190 = vmatpush1.msra.mxu0 0.0
    %191 = vmatprep.subr.mxu0 0.0
    %192 = vmatpush1.msra.mxu0 0.0
    %193 = vmatprep.subr.mxu0 0.0
    %194 = vmatpush1.msra.mxu0 0.0
    %195 = vmatprep.subr.mxu0 0.0
    %196 = vmatpush1.msra.mxu0 0.0
    %197 = vmatprep.subr.mxu0 0.0
    %198 = vmatpush1.msra.mxu0 0.0
    %199 = vmatprep.subr.mxu0 0.0
    %200 = vmatpush1.msra.mxu0 0.0
    %201 = vmatprep.subr.mxu0 0.0
    %202 = vmatpush1.msra.mxu0 0.0
    %203 = vmatprep.subr.mxu0 0.0
    %204 = vmatpush1.msra.mxu0 0.0
    %205 = vmatprep.subr.mxu0 0.0
    %206 = vmatpush1.msra.mxu0 0.0
    %207 = vmatprep.subr.mxu0 0.0
    %208 = vmatpush1.msra.mxu0 0.0
    %209 = vmatprep.subr.mxu0 0.0
    %210 = vmatpush1.msra.mxu0 0.0
    %211 = vmatprep.subr.mxu0 0.0
    %212 = vmatpush1.msra.mxu0 0.0
    %213 = vmatprep.subr.mxu0 0.0
    %214 = vmatpush1.msra.mxu0 0.0
    %215 = vmatprep.subr.mxu0 0.0
    %216 = vmatpush1.msra.mxu0 0.0
    %217 = vmatprep.subr.mxu0 0.0
    %218 = vmatpush1.msra.mxu0 0.0
    %219 = vmatprep.subr.mxu0 0.0
    %220 = vmatpush1.msra.mxu0 0.0
    %221 = vmatprep.subr.mxu0 0.0
    %222 = vmatpush1.msra.mxu0 0.0
    %223 = vmatprep.subr.mxu0 0.0
    %224 = vmatpush1.msra.mxu0 0.0
    %225 = vmatprep.subr.mxu0 0.0
    %226 = vmatpush1.msra.mxu0 0.0
    %227 = vmatprep.subr.mxu0 0.0
    %228 = vmatpush1.msra.mxu0 0.0
    %229 = vmatprep.subr.mxu0 0.0
    %230 = vmatpush1.msra.mxu0 0.0
    %231 = vmatprep.subr.mxu0 0.0
    %232 = vmatpush1.msra.mxu0 0.0
    %233 = vmatprep.subr.mxu0 0.0
    %234 = vmatpush1.msra.mxu0 0.0
    %235 = vmatprep.subr.mxu0 0.0
    %236 = vmatpush1.msra.mxu0 0.0
    %237 = vmatprep.mubr.f32.mxu0 0.0
    %238 = vmatmul.mubr.f32.gmra.mrb[0].mxu0 %v150
    %v239 = vpop.f32.mrb[0].mxu0
    %v240 = vadd.f32 %v136, %v239
    %v241 = vpop.f32.mrb[0].mxu0
    %v242 = vadd.f32 %v140, %v241
    %243 = vmatprep.mubr.f32.mxu0 0.0
    %244 = vmatmul.mubr.f32.gmra.mrb[0].mxu0 %v153
    %v245 = vpop.f32.mrb[0].mxu0
    %v246 = vadd.f32 %v136, %v245
    %v247 = vpop.f32.mrb[0].mxu0
    %v248 = vadd.f32 %v140, %v247
    %249 = vmatprep.mubr.f32.mxu0 0.0
    %250 = vmatmul.mubr.f32.gmra.mrb[0].mxu0 %v156
    %v251 = vpop.f32.mrb[0].mxu0
    %v252 = vadd.f32 %v136, %v251
    %v253 = vpop.f32.mrb[0].mxu0
    %v254 = vadd.f32 %v140, %v253
    %255 = vmatprep.mubr.f32.mxu0 0.0
    %256 = vmatmul.mubr.f32.gmra.mrb[0].mxu0 %v159
    %v257 = vpop.f32.mrb[0].mxu0
    %v258 = vadd.f32 %v136, %v257
    %v259 = vpop.f32.mrb[0].mxu0
    %v260 = vadd.f32 %v140, %v259
    %261 = vmatprep.mubr.f32.mxu0 0.0
    %262 = vmatmul.mubr.f32.gmra.mrb[0].mxu0 %v162
    %v263 = vpop.f32.mrb[0].mxu0
    %v264 = vadd.f32 %v136, %v263
    %v265 = vpop.f32.mrb[0].mxu0
    %v266 = vadd.f32 %v140, %v265
    %267 = vmatprep.mubr.f32.mxu0 0.0
    %268 = vmatmul.mubr.f32.gmra.mrb[0].mxu0 %v165
    %v269 = vpop.f32.mrb[0].mxu0
    %v270 = vadd.f32 %v136, %v269
    %v271 = vpop.f32.mrb[0].mxu0
    %v272 = vadd.f32 %v140, %v271
    %273 = vmatprep.mubr.f32.mxu0 0.0
    %274 = vmatmul.mubr.f32.gmra.mrb[0].mxu0 %v168
    %v275 = vpop.f32.mrb[0].mxu0
    %v276 = vadd.f32 %v136, %v275
    %v277 = vpop.f32.mrb[0].mxu0
    %v278 = vadd.f32 %v140, %v277
    %279 = vmatprep.mubr.f32.mxu0 0.0
    %280 = vmatmul.mubr.f32.gmra.mrb[0].mxu0 %v171
    %v281 = vpop.f32.mrb[0].mxu0
    %v282 = vadd.f32 %v136, %v281
    %v283 = vpop.f32.mrb[0].mxu0
    %v284 = vadd.f32 %v140, %v283
    %285 = vdwg.mxu0
    %286 = vmatprep.subr.mxu0 0.0
    %287 = vmatpush1.msra.mxu0 %v127
    %288 = vmatprep.subr.mxu0 0.0
    %289 = vmatpush1.msra.mxu0 %v130
    %290 = vmatprep.subr.mxu0 0.0
    %291 = vmatpush1.msra.mxu0 0.0
    %292 = vmatprep.subr.mxu0 0.0
    %293 = vmatpush1.msra.mxu0 0.0
    %294 = vmatprep.subr.mxu0 0.0
    %295 = vmatpush1.msra.mxu0 0.0
    %296 = vmatprep.subr.mxu0 0.0
    %297 = vmatpush1.msra.mxu0 0.0
    %298 = vmatprep.subr.mxu0 0.0
    %299 = vmatpush1.msra.mxu0 0.0
    %300 = vmatprep.subr.mxu0 0.0
    %301 = vmatpush1.msra.mxu0 0.0
    %302 = vmatprep.subr.mxu0 0.0
    %303 = vmatpush1.msra.mxu0 0.0
    %304 = vmatprep.subr.mxu0 0.0
    %305 = vmatpush1.msra.mxu0 0.0
    %306 = vmatprep.subr.mxu0 0.0
    %307 = vmatpush1.msra.mxu0 0.0
    %308 = vmatprep.subr.mxu0 0.0
    %309 = vmatpush1.msra.mxu0 0.0
    %310 = vmatprep.subr.mxu0 0.0
    %311 = vmatpush1.msra.mxu0 0.0
    %312 = vmatprep.subr.mxu0 0.0
    %313 = vmatpush1.msra.mxu0 0.0
    %314 = vmatprep.subr.mxu0 0.0
    %315 = vmatpush1.msra.mxu0 0.0
    %316 = vmatprep.subr.mxu0 0.0
    %317 = vmatpush1.msra.mxu0 0.0
    %318 = vmatprep.subr.mxu0 0.0
    %319 = vmatpush1.msra.mxu0 0.0
    %320 = vmatprep.subr.mxu0 0.0
    %321 = vmatpush1.msra.mxu0 0.0
    %322 = vmatprep.subr.mxu0 0.0
    %323 = vmatpush1.msra.mxu0 0.0
    %324 = vmatprep.subr.mxu0 0.0
    %325 = vmatpush1.msra.mxu0 0.0
    %326 = vmatprep.subr.mxu0 0.0
    %327 = vmatpush1.msra.mxu0 0.0
    %328 = vmatprep.subr.mxu0 0.0
    %329 = vmatpush1.msra.mxu0 0.0
    %330 = vmatprep.subr.mxu0 0.0
    %331 = vmatpush1.msra.mxu0 0.0
    %332 = vmatprep.subr.mxu0 0.0
    %333 = vmatpush1.msra.mxu0 0.0
    %334 = vmatprep.subr.mxu0 0.0
    %335 = vmatpush1.msra.mxu0 0.0
    %336 = vmatprep.subr.mxu0 0.0
    %337 = vmatpush1.msra.mxu0 0.0
    %338 = vmatprep.subr.mxu0 0.0
    %339 = vmatpush1.msra.mxu0 0.0
    %340 = vmatprep.subr.mxu0 0.0
    %341 = vmatpush1.msra.mxu0 0.0
    %342 = vmatprep.subr.mxu0 0.0
    %343 = vmatpush1.msra.mxu0 0.0
    %344 = vmatprep.subr.mxu0 0.0
    %345 = vmatpush1.msra.mxu0 0.0
    %346 = vmatprep.subr.mxu0 0.0
    %347 = vmatpush1.msra.mxu0 0.0
    %348 = vmatprep.subr.mxu0 0.0
    %349 = vmatpush1.msra.mxu0 0.0
    %350 = vmatprep.mubr.f32.mxu0 0.0
    %351 = vmatmul.mubr.f32.gmra.mrb[0].mxu0 %v150
    %v352 = vpop.f32.mrb[0].mxu0
    %v353 = vadd.f32 %v144, %v352
    %v354 = vpop.f32.mrb[0].mxu0
    %355 = vmatprep.mubr.f32.mxu0 0.0
    %356 = vmatmul.mubr.f32.gmra.mrb[0].mxu0 %v153
    %v357 = vpop.f32.mrb[0].mxu0
    %v358 = vadd.f32 %v144, %v357
    %v359 = vpop.f32.mrb[0].mxu0
    %360 = vmatprep.mubr.f32.mxu0 0.0
    %361 = vmatmul.mubr.f32.gmra.mrb[0].mxu0 %v156
    %v362 = vpop.f32.mrb[0].mxu0
    %v363 = vadd.f32 %v144, %v362
    %v364 = vpop.f32.mrb[0].mxu0
    %365 = vmatprep.mubr.f32.mxu0 0.0
    %366 = vmatmul.mubr.f32.gmra.mrb[0].mxu0 %v159
    %v367 = vpop.f32.mrb[0].mxu0
    %v368 = vadd.f32 %v144, %v367
    %v369 = vpop.f32.mrb[0].mxu0
    %370 = vmatprep.mubr.f32.mxu0 0.0
    %371 = vmatmul.mubr.f32.gmra.mrb[0].mxu0 %v162
    %v372 = vpop.f32.mrb[0].mxu0
    %v373 = vadd.f32 %v144, %v372
    %v374 = vpop.f32.mrb[0].mxu0
    %375 = vmatprep.mubr.f32.mxu0 0.0
    %376 = vmatmul.mubr.f32.gmra.mrb[0].mxu0 %v165
    %v377 = vpop.f32.mrb[0].mxu0
    %v378 = vadd.f32 %v144, %v377
    %v379 = vpop.f32.mrb[0].mxu0
    %380 = vmatprep.mubr.f32.mxu0 0.0
    %381 = vmatmul.mubr.f32.gmra.mrb[0].mxu0 %v168
    %v382 = vpop.f32.mrb[0].mxu0
    %v383 = vadd.f32 %v144, %v382
    %v384 = vpop.f32.mrb[0].mxu0
    %385 = vmatprep.mubr.f32.mxu0 0.0
    %386 = vmatmul.mubr.f32.gmra.mrb[0].mxu0 %v171
    %v387 = vpop.f32.mrb[0].mxu0
    %v388 = vadd.f32 %v144, %v387
    %v389 = vpop.f32.mrb[0].mxu0
    %390 = vdwg.mxu0
    %391 = vst [vmem:[#allocation2] sm:$0xff] %v240
    %392 = vst [vmem:[#allocation2 + $0x8] sm:$0xff] %v242
    %393 = vst [vmem:[#allocation2 + $0x10] sm:$0xff] %v353
    %394 = vst [vmem:[#allocation2 + $0x18] sm:$0xff] %v246
    %395 = vst [vmem:[#allocation2 + $0x20] sm:$0xff] %v248
    %396 = vst [vmem:[#allocation2 + $0x28] sm:$0xff] %v358
    %397 = vst [vmem:[#allocation2 + $0x30] sm:$0xff] %v252
    %398 = vst [vmem:[#allocation2 + $0x38] sm:$0xff] %v254
    %399 = vst [vmem:[#allocation2 + $0x40] sm:$0xff] %v363
    %400 = vst [vmem:[#allocation2 + $0x48] sm:$0xff] %v258
    %401 = vst [vmem:[#allocation2 + $0x50] sm:$0xff] %v260
    %402 = vst [vmem:[#allocation2 + $0x58] sm:$0xff] %v368
    %403 = vst [vmem:[#allocation2 + $0x60] sm:$0xff] %v264
    %404 = vst [vmem:[#allocation2 + $0x68] sm:$0xff] %v266
    %405 = vst [vmem:[#allocation2 + $0x70] sm:$0xff] %v373
    %406 = vst [vmem:[#allocation2 + $0x78] sm:$0xff] %v270
    %407 = vst [vmem:[#allocation2 + $0x80] sm:$0xff] %v272
    %408 = vst [vmem:[#allocation2 + $0x88] sm:$0xff] %v378
    %409 = vst [vmem:[#allocation2 + $0x90] sm:$0xff] %v276
    %410 = vst [vmem:[#allocation2 + $0x98] sm:$0xff] %v278
    %411 = vst [vmem:[#allocation2 + $0xa0] sm:$0xff] %v383
    %412 = vst [vmem:[#allocation2 + $0xa8] sm:$0xff] %v282
    %413 = vst [vmem:[#allocation2 + $0xb0] sm:$0xff] %v284
    %414 = vst [vmem:[#allocation2 + $0xb8] sm:$0xff] %v388
    %v415 = vld [vmem:[#allocation3] sm:$0x1]
    %v417 = vlaneseq
    %v418 = vshrl.u32 %v417, 7
    %v419 = vsub.s32 0, %v418
    %v420 = vrot.slane %v415, %v419
    %v422 = vld [vmem:[#allocation8] sm:$0x1]
    %v424 = vlaneseq
    %v425 = vshrl.u32 %v424, 7
    %v426 = vsub.s32 0, %v425
    %v427 = vrot.slane %v422, %v426
    %v429 = vld [vmem:[#allocation7] sm:$0x7]
    %v431 = vlaneseq
    %v432 = vshrl.u32 %v431, 7
    %v433 = vsub.s32 0, %v432
    %v434 = vrot.slane %v429, %v433
    %v435 = vlaneseq
    %v436 = vshrl.u32 %v435, 7
    %v437 = vsub.s32 1, %v436
    %v438 = vrot.slane %v429, %v437
    %v439 = vlaneseq
    %v440 = vshrl.u32 %v439, 7
    %v441 = vsub.s32 2, %v440
    %v442 = vrot.slane %v429, %v441
    %v446 = vld [vmem:[%s1] sm:$0xff]
    %s447 = scalar_lea.vmem %s1, 8
    %v448 = vld [vmem:[%s447] sm:$0xff]
    %v449 = vld [vmem:[#allocation2] sm:$0xff]
    %v450 = vld [vmem:[#allocation2 + $0x8] sm:$0xff]
    %v451 = vld [vmem:[#allocation2 + $0x10] sm:$0xff]
    %v452 = vld [vmem:[%s3] sm:$0xff]
    %v453 = vld [vmem:[%s3 + $0x8] sm:$0xff]
    %v454 = vld [vmem:[%s3 + $0x10] sm:$0xff]
    %v455 = vld [vmem:[%s3 + $0x18] sm:$0xff]
    %v456 = vld [vmem:[%s3 + $0x20] sm:$0xff]
    %v457 = vld [vmem:[%s3 + $0x28] sm:$0xff]
    %v458 = vld [vmem:[%s3 + $0x30] sm:$0xff]
    %v459 = vld [vmem:[%s3 + $0x38] sm:$0xff]
    %v460 = vld [vmem:[%s3 + $0x40] sm:$0xff]
    %v461 = vld [vmem:[%s3 + $0x48] sm:$0xff]
    %v462 = vld [vmem:[%s3 + $0x50] sm:$0xff]
    %v463 = vld [vmem:[%s3 + $0x58] sm:$0xff]
    %vm464 = vcmask 261120
    %v466 = vsel %vm464, %v446, 0
    %468 = vmatprep.subr.mxu0 %v453
    %469 = vmatpush1.msra.mxu0 %v452
    %470 = vmatprep.subr.mxu0 %v456
    %471 = vmatpush1.msra.mxu0 %v455
    %472 = vmatprep.subr.mxu0 %v459
    %473 = vmatpush1.msra.mxu0 %v458
    %474 = vmatprep.subr.mxu0 %v462
    %475 = vmatpush1.msra.mxu0 %v461
    %476 = vmatprep.subr.mxu0 0.0
    %477 = vmatpush1.msra.mxu0 0.0
    %478 = vmatprep.subr.mxu0 0.0
    %479 = vmatpush1.msra.mxu0 0.0
    %480 = vmatprep.subr.mxu0 0.0
    %481 = vmatpush1.msra.mxu0 0.0
    %482 = vmatprep.subr.mxu0 0.0
    %483 = vmatpush1.msra.mxu0 0.0
    %484 = vmatprep.subr.mxu0 0.0
    %485 = vmatpush1.msra.mxu0 0.0
    %486 = vmatprep.subr.mxu0 0.0
    %487 = vmatpush1.msra.mxu0 0.0
    %488 = vmatprep.subr.mxu0 0.0
    %489 = vmatpush1.msra.mxu0 0.0
    %490 = vmatprep.subr.mxu0 0.0
    %491 = vmatpush1.msra.mxu0 0.0
    %492 = vmatprep.subr.mxu0 0.0
    %493 = vmatpush1.msra.mxu0 0.0
    %494 = vmatprep.subr.mxu0 0.0
    %495 = vmatpush1.msra.mxu0 0.0
    %496 = vmatprep.subr.mxu0 0.0
    %497 = vmatpush1.msra.mxu0 0.0
    %498 = vmatprep.subr.mxu0 0.0
    %499 = vmatpush1.msra.mxu0 0.0
    %500 = vmatprep.subr.mxu0 0.0
    %501 = vmatpush1.msra.mxu0 0.0
    %502 = vmatprep.subr.mxu0 0.0
    %503 = vmatpush1.msra.mxu0 0.0
    %504 = vmatprep.subr.mxu0 0.0
    %505 = vmatpush1.msra.mxu0 0.0
    %506 = vmatprep.subr.mxu0 0.0
    %507 = vmatpush1.msra.mxu0 0.0
    %508 = vmatprep.subr.mxu0 0.0
    %509 = vmatpush1.msra.mxu0 0.0
    %510 = vmatprep.subr.mxu0 0.0
    %511 = vmatpush1.msra.mxu0 0.0
    %512 = vmatprep.subr.mxu0 0.0
    %513 = vmatpush1.msra.mxu0 0.0
    %514 = vmatprep.subr.mxu0 0.0
    %515 = vmatpush1.msra.mxu0 0.0
    %516 = vmatprep.subr.mxu0 0.0
    %517 = vmatpush1.msra.mxu0 0.0
    %518 = vmatprep.subr.mxu0 0.0
    %519 = vmatpush1.msra.mxu0 0.0
    %520 = vmatprep.subr.mxu0 0.0
    %521 = vmatpush1.msra.mxu0 0.0
    %522 = vmatprep.subr.mxu0 0.0
    %523 = vmatpush1.msra.mxu0 0.0
    %524 = vmatprep.subr.mxu0 0.0
    %525 = vmatpush1.msra.mxu0 0.0
    %526 = vmatprep.subr.mxu0 0.0
    %527 = vmatpush1.msra.mxu0 0.0
    %528 = vmatprep.subr.mxu0 0.0
    %529 = vmatpush1.msra.mxu0 0.0
    %530 = vmatprep.subr.mxu0 0.0
    %531 = vmatpush1.msra.mxu0 0.0
    %532 = vmatprep.mubr.f32.mxu0 0.0
    %533 = vmatmul.mubr.f32.gmra.mrb[0].mxu0 %v466
    %v534 = vpop.f32.mrb[0].mxu0
    %v535 = vadd.f32 0.0, %v534
    %v536 = vpop.f32.mrb[0].mxu0
    %v537 = vadd.f32 0.0, %v536
    %538 = vdwg.mxu0
    %539 = vmatprep.subr.mxu0 0.0
    %540 = vmatpush1.msra.mxu0 %v454
    %541 = vmatprep.subr.mxu0 0.0
    %542 = vmatpush1.msra.mxu0 %v457
    %543 = vmatprep.subr.mxu0 0.0
    %544 = vmatpush1.msra.mxu0 %v460
    %545 = vmatprep.subr.mxu0 0.0
    %546 = vmatpush1.msra.mxu0 %v463
    %547 = vmatprep.subr.mxu0 0.0
    %548 = vmatpush1.msra.mxu0 0.0
    %549 = vmatprep.subr.mxu0 0.0
    %550 = vmatpush1.msra.mxu0 0.0
    %551 = vmatprep.subr.mxu0 0.0
    %552 = vmatpush1.msra.mxu0 0.0
    %553 = vmatprep.subr.mxu0 0.0
    %554 = vmatpush1.msra.mxu0 0.0
    %555 = vmatprep.subr.mxu0 0.0
    %556 = vmatpush1.msra.mxu0 0.0
    %557 = vmatprep.subr.mxu0 0.0
    %558 = vmatpush1.msra.mxu0 0.0
    %559 = vmatprep.subr.mxu0 0.0
    %560 = vmatpush1.msra.mxu0 0.0
    %561 = vmatprep.subr.mxu0 0.0
    %562 = vmatpush1.msra.mxu0 0.0
    %563 = vmatprep.subr.mxu0 0.0
    %564 = vmatpush1.msra.mxu0 0.0
    %565 = vmatprep.subr.mxu0 0.0
    %566 = vmatpush1.msra.mxu0 0.0
    %567 = vmatprep.subr.mxu0 0.0
    %568 = vmatpush1.msra.mxu0 0.0
    %569 = vmatprep.subr.mxu0 0.0
    %570 = vmatpush1.msra.mxu0 0.0
    %571 = vmatprep.subr.mxu0 0.0
    %572 = vmatpush1.msra.mxu0 0.0
    %573 = vmatprep.subr.mxu0 0.0
    %574 = vmatpush1.msra.mxu0 0.0
    %575 = vmatprep.subr.mxu0 0.0
    %576 = vmatpush1.msra.mxu0 0.0
    %577 = vmatprep.subr.mxu0 0.0
    %578 = vmatpush1.msra.mxu0 0.0
    %579 = vmatprep.subr.mxu0 0.0
    %580 = vmatpush1.msra.mxu0 0.0
    %581 = vmatprep.subr.mxu0 0.0
    %582 = vmatpush1.msra.mxu0 0.0
    %583 = vmatprep.subr.mxu0 0.0
    %584 = vmatpush1.msra.mxu0 0.0
    %585 = vmatprep.subr.mxu0 0.0
    %586 = vmatpush1.msra.mxu0 0.0
    %587 = vmatprep.subr.mxu0 0.0
    %588 = vmatpush1.msra.mxu0 0.0
    %589 = vmatprep.subr.mxu0 0.0
    %590 = vmatpush1.msra.mxu0 0.0
    %591 = vmatprep.subr.mxu0 0.0
    %592 = vmatpush1.msra.mxu0 0.0
    %593 = vmatprep.subr.mxu0 0.0
    %594 = vmatpush1.msra.mxu0 0.0
    %595 = vmatprep.subr.mxu0 0.0
    %596 = vmatpush1.msra.mxu0 0.0
    %597 = vmatprep.subr.mxu0 0.0
    %598 = vmatpush1.msra.mxu0 0.0
    %599 = vmatprep.subr.mxu0 0.0
    %600 = vmatpush1.msra.mxu0 0.0
    %601 = vmatprep.subr.mxu0 0.0
    %602 = vmatpush1.msra.mxu0 0.0
    %603 = vmatprep.mubr.f32.mxu0 0.0
    %604 = vmatmul.mubr.f32.gmra.mrb[0].mxu0 %v466
    %v605 = vpop.f32.mrb[0].mxu0
    %v606 = vadd.f32 0.0, %v605
    %v607 = vpop.f32.mrb[0].mxu0
    %608 = vdwg.mxu0
    %v609 = vadd.f32 %v449, %v535
    %v610 = vxor.u32 %v609, 2147483648
    %v611 = vmul.f32 %v610, 1.442695
    %v612 = vpow.pop %v611
    %v613 = vadd.f32 %v612, 1.0
    %v614 = vrcp.pop %v613
    %v615 = vmul.f32 1.0, %v614
    %v616 = vadd.f32 %v450, %v537
    %v617 = vxor.u32 %v616, 2147483648
    %v618 = vmul.f32 %v617, 1.442695
    %v619 = vpow.pop %v618
    %v620 = vadd.f32 %v619, 1.0
    %v621 = vrcp.pop %v620
    %v622 = vmul.f32 1.0, %v621
    %v623 = vadd.f32 %v606, %v420
    %v624 = vmul.f32 %v615, %v623
    %v625 = vadd.f32 %v451, %v624
    %v626 = vtanh.pop %v625
    %v627 = vsub.f32 1.0, %v622
    %v628 = vmul.f32 %v627, %v626
    %v629 = vmul.f32 %v622, %v446
    %v630 = vadd.f32 %v628, %v629
    %v631 = vld [vmem:[%s6] sm:$0xff]
    %v632 = vld [vmem:[%s6 + $0x8] sm:$0xff]
    %v633 = vld [vmem:[%s6 + $0x10] sm:$0xff]
    %v634 = vld [vmem:[%s6 + $0x18] sm:$0xff]
    %v635 = vld [vmem:[%s6 + $0x20] sm:$0xff]
    %v636 = vld [vmem:[%s6 + $0x28] sm:$0xff]
    %v637 = vld [vmem:[%s6 + $0x30] sm:$0xff]
    %v638 = vld [vmem:[%s6 + $0x38] sm:$0xff]
    %v639 = vld [vmem:[%s6 + $0x40] sm:$0xff]
    %v640 = vld [vmem:[%s6 + $0x48] sm:$0xff]
    %v641 = vld [vmem:[%s6 + $0x50] sm:$0xff]
    %v642 = vld [vmem:[%s6 + $0x58] sm:$0xff]
    %v644 = vsel %vm464, %v630, 0
    %646 = vmatprep.subr.mxu0 %v632
    %647 = vmatpush1.msra.mxu0 %v631
    %648 = vmatprep.subr.mxu0 %v635
    %649 = vmatpush1.msra.mxu0 %v634
    %650 = vmatprep.subr.mxu0 %v638
    %651 = vmatpush1.msra.mxu0 %v637
    %652 = vmatprep.subr.mxu0 %v641
    %653 = vmatpush1.msra.mxu0 %v640
    %654 = vmatprep.subr.mxu0 0.0
    %655 = vmatpush1.msra.mxu0 0.0
    %656 = vmatprep.subr.mxu0 0.0
    %657 = vmatpush1.msra.mxu0 0.0
    %658 = vmatprep.subr.mxu0 0.0
    %659 = vmatpush1.msra.mxu0 0.0
    %660 = vmatprep.subr.mxu0 0.0
    %661 = vmatpush1.msra.mxu0 0.0
    %662 = vmatprep.subr.mxu0 0.0
    %663 = vmatpush1.msra.mxu0 0.0
    %664 = vmatprep.subr.mxu0 0.0
    %665 = vmatpush1.msra.mxu0 0.0
    %666 = vmatprep.subr.mxu0 0.0
    %667 = vmatpush1.msra.mxu0 0.0
    %668 = vmatprep.subr.mxu0 0.0
    %669 = vmatpush1.msra.mxu0 0.0
    %670 = vmatprep.subr.mxu0 0.0
    %671 = vmatpush1.msra.mxu0 0.0
    %672 = vmatprep.subr.mxu0 0.0
    %673 = vmatpush1.msra.mxu0 0.0
    %674 = vmatprep.subr.mxu0 0.0
    %675 = vmatpush1.msra.mxu0 0.0
    %676 = vmatprep.subr.mxu0 0.0
    %677 = vmatpush1.msra.mxu0 0.0
    %678 = vmatprep.subr.mxu0 0.0
    %679 = vmatpush1.msra.mxu0 0.0
    %680 = vmatprep.subr.mxu0 0.0
    %681 = vmatpush1.msra.mxu0 0.0
    %682 = vmatprep.subr.mxu0 0.0
    %683 = vmatpush1.msra.mxu0 0.0
    %684 = vmatprep.subr.mxu0 0.0
    %685 = vmatpush1.msra.mxu0 0.0
    %686 = vmatprep.subr.mxu0 0.0
    %687 = vmatpush1.msra.mxu0 0.0
    %688 = vmatprep.subr.mxu0 0.0
    %689 = vmatpush1.msra.mxu0 0.0
    %690 = vmatprep.subr.mxu0 0.0
    %691 = vmatpush1.msra.mxu0 0.0
    %692 = vmatprep.subr.mxu0 0.0
    %693 = vmatpush1.msra.mxu0 0.0
    %694 = vmatprep.subr.mxu0 0.0
    %695 = vmatpush1.msra.mxu0 0.0
    %696 = vmatprep.subr.mxu0 0.0
    %697 = vmatpush1.msra.mxu0 0.0
    %698 = vmatprep.subr.mxu0 0.0
    %699 = vmatpush1.msra.mxu0 0.0
    %700 = vmatprep.subr.mxu0 0.0
    %701 = vmatpush1.msra.mxu0 0.0
    %702 = vmatprep.subr.mxu0 0.0
    %703 = vmatpush1.msra.mxu0 0.0
    %704 = vmatprep.subr.mxu0 0.0
    %705 = vmatpush1.msra.mxu0 0.0
    %706 = vmatprep.subr.mxu0 0.0
    %707 = vmatpush1.msra.mxu0 0.0
    %708 = vmatprep.subr.mxu0 0.0
    %709 = vmatpush1.msra.mxu0 0.0
    %710 = vmatprep.mubr.f32.mxu0 0.0
    %711 = vmatmul.mubr.f32.gmra.mrb[0].mxu0 %v644
    %v712 = vpop.f32.mrb[0].mxu0
    %v713 = vadd.f32 %v434, %v712
    %v714 = vpop.f32.mrb[0].mxu0
    %v715 = vadd.f32 %v438, %v714
    %716 = vdwg.mxu0
    %717 = vmatprep.subr.mxu0 0.0
    %718 = vmatpush1.msra.mxu0 %v633
    %719 = vmatprep.subr.mxu0 0.0
    %720 = vmatpush1.msra.mxu0 %v636
    %721 = vmatprep.subr.mxu0 0.0
    %722 = vmatpush1.msra.mxu0 %v639
    %723 = vmatprep.subr.mxu0 0.0
    %724 = vmatpush1.msra.mxu0 %v642
    %725 = vmatprep.subr.mxu0 0.0
    %726 = vmatpush1.msra.mxu0 0.0
    %727 = vmatprep.subr.mxu0 0.0
    %728 = vmatpush1.msra.mxu0 0.0
    %729 = vmatprep.subr.mxu0 0.0
    %730 = vmatpush1.msra.mxu0 0.0
    %731 = vmatprep.subr.mxu0 0.0
    %732 = vmatpush1.msra.mxu0 0.0
    %733 = vmatprep.subr.mxu0 0.0
    %734 = vmatpush1.msra.mxu0 0.0
    %735 = vmatprep.subr.mxu0 0.0
    %736 = vmatpush1.msra.mxu0 0.0
    %737 = vmatprep.subr.mxu0 0.0
    %738 = vmatpush1.msra.mxu0 0.0
    %739 = vmatprep.subr.mxu0 0.0
    %740 = vmatpush1.msra.mxu0 0.0
    %741 = vmatprep.subr.mxu0 0.0
    %742 = vmatpush1.msra.mxu0 0.0
    %743 = vmatprep.subr.mxu0 0.0
    %744 = vmatpush1.msra.mxu0 0.0
    %745 = vmatprep.subr.mxu0 0.0
    %746 = vmatpush1.msra.mxu0 0.0
    %747 = vmatprep.subr.mxu0 0.0
    %748 = vmatpush1.msra.mxu0 0.0
    %749 = vmatprep.subr.mxu0 0.0
    %750 = vmatpush1.msra.mxu0 0.0
    %751 = vmatprep.subr.mxu0 0.0
    %752 = vmatpush1.msra.mxu0 0.0
    %753 = vmatprep.subr.mxu0 0.0
    %754 = vmatpush1.msra.mxu0 0.0
    %755 = vmatprep.subr.mxu0 0.0
    %756 = vmatpush1.msra.mxu0 0.0
    %757 = vmatprep.subr.mxu0 0.0
    %758 = vmatpush1.msra.mxu0 0.0
    %759 = vmatprep.subr.mxu0 0.0
    %760 = vmatpush1.msra.mxu0 0.0
    %761 = vmatprep.subr.mxu0 0.0
    %762 = vmatpush1.msra.mxu0 0.0
    %763 = vmatprep.subr.mxu0 0.0
    %764 = vmatpush1.msra.mxu0 0.0
    %765 = vmatprep.subr.mxu0 0.0
    %766 = vmatpush1.msra.mxu0 0.0
    %767 = vmatprep.subr.mxu0 0.0
    %768 = vmatpush1.msra.mxu0 0.0
    %769 = vmatprep.subr.mxu0 0.0
    %770 = vmatpush1.msra.mxu0 0.0
    %771 = vmatprep.subr.mxu0 0.0
    %772 = vmatpush1.msra.mxu0 0.0
    %773 = vmatprep.subr.mxu0 0.0
    %774 = vmatpush1.msra.mxu0 0.0
    %775 = vmatprep.subr.mxu0 0.0
    %776 = vmatpush1.msra.mxu0 0.0
    %777 = vmatprep.subr.mxu0 0.0
    %778 = vmatpush1.msra.mxu0 0.0
    %779 = vmatprep.subr.mxu0 0.0
    %780 = vmatpush1.msra.mxu0 0.0
    %781 = vmatprep.mubr.f32.mxu0 0.0
    %782 = vmatmul.mubr.f32.gmra.mrb[0].mxu0 %v644
    %v783 = vpop.f32.mrb[0].mxu0
    %v784 = vadd.f32 %v442, %v783
    %v785 = vpop.f32.mrb[0].mxu0
    %786 = vdwg.mxu0
    %v787 = vld [vmem:[#allocation5] sm:$0xff]
    %v788 = vld [vmem:[#allocation5 + $0x8] sm:$0xff]
    %v789 = vld [vmem:[#allocation5 + $0x10] sm:$0xff]
    %v790 = vld [vmem:[#allocation5 + $0x18] sm:$0xff]
    %v791 = vld [vmem:[#allocation5 + $0x20] sm:$0xff]
    %v792 = vld [vmem:[#allocation5 + $0x28] sm:$0xff]
    %v793 = vld [vmem:[#allocation5 + $0x30] sm:$0xff]
    %v794 = vld [vmem:[#allocation5 + $0x38] sm:$0xff]
    %v795 = vld [vmem:[#allocation5 + $0x40] sm:$0xff]
    %v796 = vld [vmem:[#allocation5 + $0x48] sm:$0xff]
    %v797 = vld [vmem:[#allocation5 + $0x50] sm:$0xff]
    %v798 = vld [vmem:[#allocation5 + $0x58] sm:$0xff]
    %v800 = vsel %vm464, %v448, 0
    %802 = vmatprep.subr.mxu0 %v788
    %803 = vmatpush1.msra.mxu0 %v787
    %804 = vmatprep.subr.mxu0 %v791
    %805 = vmatpush1.msra.mxu0 %v790
    %806 = vmatprep.subr.mxu0 %v794
    %807 = vmatpush1.msra.mxu0 %v793
    %808 = vmatprep.subr.mxu0 %v797
    %809 = vmatpush1.msra.mxu0 %v796
    %810 = vmatprep.subr.mxu0 0.0
    %811 = vmatpush1.msra.mxu0 0.0
    %812 = vmatprep.subr.mxu0 0.0
    %813 = vmatpush1.msra.mxu0 0.0
    %814 = vmatprep.subr.mxu0 0.0
    %815 = vmatpush1.msra.mxu0 0.0
    %816 = vmatprep.subr.mxu0 0.0
    %817 = vmatpush1.msra.mxu0 0.0
    %818 = vmatprep.subr.mxu0 0.0
    %819 = vmatpush1.msra.mxu0 0.0
    %820 = vmatprep.subr.mxu0 0.0
    %821 = vmatpush1.msra.mxu0 0.0
    %822 = vmatprep.subr.mxu0 0.0
    %823 = vmatpush1.msra.mxu0 0.0
    %824 = vmatprep.subr.mxu0 0.0
    %825 = vmatpush1.msra.mxu0 0.0
    %826 = vmatprep.subr.mxu0 0.0
    %827 = vmatpush1.msra.mxu0 0.0
    %828 = vmatprep.subr.mxu0 0.0
    %829 = vmatpush1.msra.mxu0 0.0
    %830 = vmatprep.subr.mxu0 0.0
    %831 = vmatpush1.msra.mxu0 0.0
    %832 = vmatprep.subr.mxu0 0.0
    %833 = vmatpush1.msra.mxu0 0.0
    %834 = vmatprep.subr.mxu0 0.0
    %835 = vmatpush1.msra.mxu0 0.0
    %836 = vmatprep.subr.mxu0 0.0
    %837 = vmatpush1.msra.mxu0 0.0
    %838 = vmatprep.subr.mxu0 0.0
    %839 = vmatpush1.msra.mxu0 0.0
    %840 = vmatprep.subr.mxu0 0.0
    %841 = vmatpush1.msra.mxu0 0.0
    %842 = vmatprep.subr.mxu0 0.0
    %843 = vmatpush1.msra.mxu0 0.0
    %844 = vmatprep.subr.mxu0 0.0
    %845 = vmatpush1.msra.mxu0 0.0
    %846 = vmatprep.subr.mxu0 0.0
    %847 = vmatpush1.msra.mxu0 0.0
    %848 = vmatprep.subr.mxu0 0.0
    %849 = vmatpush1.msra.mxu0 0.0
    %850 = vmatprep.subr.mxu0 0.0
    %851 = vmatpush1.msra.mxu0 0.0
    %852 = vmatprep.subr.mxu0 0.0
    %853 = vmatpush1.msra.mxu0 0.0
    %854 = vmatprep.subr.mxu0 0.0
    %855 = vmatpush1.msra.mxu0 0.0
    %856 = vmatprep.subr.mxu0 0.0
    %857 = vmatpush1.msra.mxu0 0.0
    %858 = vmatprep.subr.mxu0 0.0
    %859 = vmatpush1.msra.mxu0 0.0
    %860 = vmatprep.subr.mxu0 0.0
    %861 = vmatpush1.msra.mxu0 0.0
    %862 = vmatprep.subr.mxu0 0.0
    %863 = vmatpush1.msra.mxu0 0.0
    %864 = vmatprep.subr.mxu0 0.0
    %865 = vmatpush1.msra.mxu0 0.0
    %866 = vmatprep.mubr.f32.mxu0 0.0
    %867 = vmatmul.mubr.f32.gmra.mrb[0].mxu0 %v800
    %v868 = vpop.f32.mrb[0].mxu0
    %v869 = vadd.f32 0.0, %v868
    %v870 = vpop.f32.mrb[0].mxu0
    %v871 = vadd.f32 0.0, %v870
    %872 = vdwg.mxu0
    %873 = vmatprep.subr.mxu0 0.0
    %874 = vmatpush1.msra.mxu0 %v789
    %875 = vmatprep.subr.mxu0 0.0
    %876 = vmatpush1.msra.mxu0 %v792
    %877 = vmatprep.subr.mxu0 0.0
    %878 = vmatpush1.msra.mxu0 %v795
    %879 = vmatprep.subr.mxu0 0.0
    %880 = vmatpush1.msra.mxu0 %v798
    %881 = vmatprep.subr.mxu0 0.0
    %882 = vmatpush1.msra.mxu0 0.0
    %883 = vmatprep.subr.mxu0 0.0
    %884 = vmatpush1.msra.mxu0 0.0
    %885 = vmatprep.subr.mxu0 0.0
    %886 = vmatpush1.msra.mxu0 0.0
    %887 = vmatprep.subr.mxu0 0.0
    %888 = vmatpush1.msra.mxu0 0.0
    %889 = vmatprep.subr.mxu0 0.0
    %890 = vmatpush1.msra.mxu0 0.0
    %891 = vmatprep.subr.mxu0 0.0
    %892 = vmatpush1.msra.mxu0 0.0
    %893 = vmatprep.subr.mxu0 0.0
    %894 = vmatpush1.msra.mxu0 0.0
    %895 = vmatprep.subr.mxu0 0.0
    %896 = vmatpush1.msra.mxu0 0.0
    %897 = vmatprep.subr.mxu0 0.0
    %898 = vmatpush1.msra.mxu0 0.0
    %899 = vmatprep.subr.mxu0 0.0
    %900 = vmatpush1.msra.mxu0 0.0
    %901 = vmatprep.subr.mxu0 0.0
    %902 = vmatpush1.msra.mxu0 0.0
    %903 = vmatprep.subr.mxu0 0.0
    %904 = vmatpush1.msra.mxu0 0.0
    %905 = vmatprep.subr.mxu0 0.0
    %906 = vmatpush1.msra.mxu0 0.0
    %907 = vmatprep.subr.mxu0 0.0
    %908 = vmatpush1.msra.mxu0 0.0
    %909 = vmatprep.subr.mxu0 0.0
    %910 = vmatpush1.msra.mxu0 0.0
    %911 = vmatprep.subr.mxu0 0.0
    %912 = vmatpush1.msra.mxu0 0.0
    %913 = vmatprep.subr.mxu0 0.0
    %914 = vmatpush1.msra.mxu0 0.0
    %915 = vmatprep.subr.mxu0 0.0
    %916 = vmatpush1.msra.mxu0 0.0
    %917 = vmatprep.subr.mxu0 0.0
    %918 = vmatpush1.msra.mxu0 0.0
    %919 = vmatprep.subr.mxu0 0.0
    %920 = vmatpush1.msra.mxu0 0.0
    %921 = vmatprep.subr.mxu0 0.0
    %922 = vmatpush1.msra.mxu0 0.0
    %923 = vmatprep.subr.mxu0 0.0
    %924 = vmatpush1.msra.mxu0 0.0
    %925 = vmatprep.subr.mxu0 0.0
    %926 = vmatpush1.msra.mxu0 0.0
    %927 = vmatprep.subr.mxu0 0.0
    %928 = vmatpush1.msra.mxu0 0.0
    %929 = vmatprep.subr.mxu0 0.0
    %930 = vmatpush1.msra.mxu0 0.0
    %931 = vmatprep.subr.mxu0 0.0
    %932 = vmatpush1.msra.mxu0 0.0
    %933 = vmatprep.subr.mxu0 0.0
    %934 = vmatpush1.msra.mxu0 0.0
    %935 = vmatprep.subr.mxu0 0.0
    %936 = vmatpush1.msra.mxu0 0.0
    %937 = vmatprep.mubr.f32.mxu0 0.0
    %938 = vmatmul.mubr.f32.gmra.mrb[0].mxu0 %v800
    %v939 = vpop.f32.mrb[0].mxu0
    %v940 = vadd.f32 0.0, %v939
    %v941 = vpop.f32.mrb[0].mxu0
    %942 = vdwg.mxu0
    %v943 = vadd.f32 %v713, %v869
    %v944 = vxor.u32 %v943, 2147483648
    %v945 = vmul.f32 %v944, 1.442695
    %v946 = vpow.pop %v945
    %v947 = vadd.f32 %v946, 1.0
    %v948 = vrcp.pop %v947
    %v949 = vmul.f32 1.0, %v948
    %v950 = vadd.f32 %v715, %v871
    %v951 = vxor.u32 %v950, 2147483648
    %v952 = vmul.f32 %v951, 1.442695
    %v953 = vpow.pop %v952
    %v954 = vadd.f32 %v953, 1.0
    %v955 = vrcp.pop %v954
    %v956 = vmul.f32 1.0, %v955
    %v957 = vadd.f32 %v940, %v427
    %v958 = vmul.f32 %v949, %v957
    %v959 = vadd.f32 %v784, %v958
    %v960 = vtanh.pop %v959
    %v961 = vsub.f32 1.0, %v956
    %v962 = vmul.f32 %v961, %v960
    %v963 = vmul.f32 %v956, %v448
    %v964 = vadd.f32 %v962, %v963
    %v965 = vld [vmem:[#allocation2 + $0x18] sm:$0xff]
    %v966 = vld [vmem:[#allocation2 + $0x20] sm:$0xff]
    %v967 = vld [vmem:[#allocation2 + $0x28] sm:$0xff]
    %968 = vmatprep.subr.mxu0 %v453
    %969 = vmatpush1.msra.mxu0 %v452
    %970 = vmatprep.subr.mxu0 %v456
    %971 = vmatpush1.msra.mxu0 %v455
    %972 = vmatprep.subr.mxu0 %v459
    %973 = vmatpush1.msra.mxu0 %v458
    %974 = vmatprep.subr.mxu0 %v462
    %975 = vmatpush1.msra.mxu0 %v461
    %976 = vmatprep.subr.mxu0 0.0
    %977 = vmatpush1.msra.mxu0 0.0
    %978 = vmatprep.subr.mxu0 0.0
    %979 = vmatpush1.msra.mxu0 0.0
    %980 = vmatprep.subr.mxu0 0.0
    %981 = vmatpush1.msra.mxu0 0.0
    %982 = vmatprep.subr.mxu0 0.0
    %983 = vmatpush1.msra.mxu0 0.0
    %984 = vmatprep.subr.mxu0 0.0
    %985 = vmatpush1.msra.mxu0 0.0
    %986 = vmatprep.subr.mxu0 0.0
    %987 = vmatpush1.msra.mxu0 0.0
    %988 = vmatprep.subr.mxu0 0.0
    %989 = vmatpush1.msra.mxu0 0.0
    %990 = vmatprep.subr.mxu0 0.0
    %991 = vmatpush1.msra.mxu0 0.0
    %992 = vmatprep.subr.mxu0 0.0
    %993 = vmatpush1.msra.mxu0 0.0
    %994 = vmatprep.subr.mxu0 0.0
    %995 = vmatpush1.msra.mxu0 0.0
    %996 = vmatprep.subr.mxu0 0.0
    %997 = vmatpush1.msra.mxu0 0.0
    %998 = vmatprep.subr.mxu0 0.0
    %999 = vmatpush1.msra.mxu0 0.0
    %1000 = vmatprep.subr.mxu0 0.0
    %1001 = vmatpush1.msra.mxu0 0.0
    %1002 = vmatprep.subr.mxu0 0.0
    %1003 = vmatpush1.msra.mxu0 0.0
    %1004 = vmatprep.subr.mxu0 0.0
    %1005 = vmatpush1.msra.mxu0 0.0
    %1006 = vmatprep.subr.mxu0 0.0
    %1007 = vmatpush1.msra.mxu0 0.0
    %1008 = vmatprep.subr.mxu0 0.0
    %1009 = vmatpush1.msra.mxu0 0.0
    %1010 = vmatprep.subr.mxu0 0.0
    %1011 = vmatpush1.msra.mxu0 0.0
    %1012 = vmatprep.subr.mxu0 0.0
    %1013 = vmatpush1.msra.mxu0 0.0
    %1014 = vmatprep.subr.mxu0 0.0
    %1015 = vmatpush1.msra.mxu0 0.0
    %1016 = vmatprep.subr.mxu0 0.0
    %1017 = vmatpush1.msra.mxu0 0.0
    %1018 = vmatprep.subr.mxu0 0.0
    %1019 = vmatpush1.msra.mxu0 0.0
    %1020 = vmatprep.subr.mxu0 0.0
    %1021 = vmatpush1.msra.mxu0 0.0
    %1022 = vmatprep.subr.mxu0 0.0
    %1023 = vmatpush1.msra.mxu0 0.0
    %1024 = vmatprep.subr.mxu0 0.0
    %1025 = vmatpush1.msra.mxu0 0.0
    %1026 = vmatprep.subr.mxu0 0.0
    %1027 = vmatpush1.msra.mxu0 0.0
    %1028 = vmatprep.subr.mxu0 0.0
    %1029 = vmatpush1.msra.mxu0 0.0
    %1030 = vmatprep.subr.mxu0 0.0
    %1031 = vmatpush1.msra.mxu0 0.0
    %1032 = vmatprep.mubr.f32.mxu0 0.0
    %1033 = vmatmul.mubr.f32.gmra.mrb[0].mxu0 %v644
    %v1034 = vpop.f32.mrb[0].mxu0
    %v1035 = vadd.f32 0.0, %v1034
    %v1036 = vpop.f32.mrb[0].mxu0
    %v1037 = vadd.f32 0.0, %v1036
    %1038 = vdwg.mxu0
    %1039 = vmatprep.subr.mxu0 0.0
    %1040 = vmatpush1.msra.mxu0 %v454
    %1041 = vmatprep.subr.mxu0 0.0
    %1042 = vmatpush1.msra.mxu0 %v457
    %1043 = vmatprep.subr.mxu0 0.0
    %1044 = vmatpush1.msra.mxu0 %v460
    %1045 = vmatprep.subr.mxu0 0.0
    %1046 = vmatpush1.msra.mxu0 %v463
    %1047 = vmatprep.subr.mxu0 0.0
    %1048 = vmatpush1.msra.mxu0 0.0
    %1049 = vmatprep.subr.mxu0 0.0
    %1050 = vmatpush1.msra.mxu0 0.0
    %1051 = vmatprep.subr.mxu0 0.0
    %1052 = vmatpush1.msra.mxu0 0.0
    %1053 = vmatprep.subr.mxu0 0.0
    %1054 = vmatpush1.msra.mxu0 0.0
    %1055 = vmatprep.subr.mxu0 0.0
    %1056 = vmatpush1.msra.mxu0 0.0
    %1057 = vmatprep.subr.mxu0 0.0
    %1058 = vmatpush1.msra.mxu0 0.0
    %1059 = vmatprep.subr.mxu0 0.0
    %1060 = vmatpush1.msra.mxu0 0.0
    %1061 = vmatprep.subr.mxu0 0.0
    %1062 = vmatpush1.msra.mxu0 0.0
    %1063 = vmatprep.subr.mxu0 0.0
    %1064 = vmatpush1.msra.mxu0 0.0
    %1065 = vmatprep.subr.mxu0 0.0
    %1066 = vmatpush1.msra.mxu0 0.0
    %1067 = vmatprep.subr.mxu0 0.0
    %1068 = vmatpush1.msra.mxu0 0.0
    %1069 = vmatprep.subr.mxu0 0.0
    %1070 = vmatpush1.msra.mxu0 0.0
    %1071 = vmatprep.subr.mxu0 0.0
    %1072 = vmatpush1.msra.mxu0 0.0
    %1073 = vmatprep.subr.mxu0 0.0
    %1074 = vmatpush1.msra.mxu0 0.0
    %1075 = vmatprep.subr.mxu0 0.0
    %1076 = vmatpush1.msra.mxu0 0.0
    %1077 = vmatprep.subr.mxu0 0.0
    %1078 = vmatpush1.msra.mxu0 0.0
    %1079 = vmatprep.subr.mxu0 0.0
    %1080 = vmatpush1.msra.mxu0 0.0
    %1081 = vmatprep.subr.mxu0 0.0
    %1082 = vmatpush1.msra.mxu0 0.0
    %1083 = vmatprep.subr.mxu0 0.0
    %1084 = vmatpush1.msra.mxu0 0.0
    %1085 = vmatprep.subr.mxu0 0.0
    %1086 = vmatpush1.msra.mxu0 0.0
    %1087 = vmatprep.subr.mxu0 0.0
    %1088 = vmatpush1.msra.mxu0 0.0
    %1089 = vmatprep.subr.mxu0 0.0
    %1090 = vmatpush1.msra.mxu0 0.0
    %1091 = vmatprep.subr.mxu0 0.0
    %1092 = vmatpush1.msra.mxu0 0.0
    %1093 = vmatprep.subr.mxu0 0.0
    %1094 = vmatpush1.msra.mxu0 0.0
    %1095 = vmatprep.subr.mxu0 0.0
    %1096 = vmatpush1.msra.mxu0 0.0
    %1097 = vmatprep.subr.mxu0 0.0
    %1098 = vmatpush1.msra.mxu0 0.0
    %1099 = vmatprep.subr.mxu0 0.0
    %1100 = vmatpush1.msra.mxu0 0.0
    %1101 = vmatprep.subr.mxu0 0.0
    %1102 = vmatpush1.msra.mxu0 0.0
    %1103 = vmatprep.mubr.f32.mxu0 0.0
    %1104 = vmatmul.mubr.f32.gmra.mrb[0].mxu0 %v644
    %v1105 = vpop.f32.mrb[0].mxu0
    %v1106 = vadd.f32 0.0, %v1105
    %v1107 = vpop.f32.mrb[0].mxu0
    %1108 = vdwg.mxu0
    %v1109 = vadd.f32 %v965, %v1035
    %v1110 = vxor.u32 %v1109, 2147483648
    %v1111 = vmul.f32 %v1110, 1.442695
    %v1112 = vpow.pop %v1111
    %v1113 = vadd.f32 %v1112, 1.0
    %v1114 = vrcp.pop %v1113
    %v1115 = vmul.f32 1.0, %v1114
    %v1116 = vadd.f32 %v966, %v1037
    %v1117 = vxor.u32 %v1116, 2147483648
    %v1118 = vmul.f32 %v1117, 1.442695
    %v1119 = vpow.pop %v1118
    %v1120 = vadd.f32 %v1119, 1.0
    %v1121 = vrcp.pop %v1120
    %v1122 = vmul.f32 1.0, %v1121
    %v1123 = vadd.f32 %v1106, %v420
    %v1124 = vmul.f32 %v1115, %v1123
    %v1125 = vadd.f32 %v967, %v1124
    %v1126 = vtanh.pop %v1125
    %v1127 = vsub.f32 1.0, %v1122
    %v1128 = vmul.f32 %v1127, %v1126
    %v1129 = vmul.f32 %v1122, %v630
    %v1130 = vadd.f32 %v1128, %v1129
    %v1132 = vsel %vm464, %v1130, 0
    %1134 = vmatprep.subr.mxu0 %v632
    %1135 = vmatpush1.msra.mxu0 %v631
    %1136 = vmatprep.subr.mxu0 %v635
    %1137 = vmatpush1.msra.mxu0 %v634
    %1138 = vmatprep.subr.mxu0 %v638
    %1139 = vmatpush1.msra.mxu0 %v637
    %1140 = vmatprep.subr.mxu0 %v641
    %1141 = vmatpush1.msra.mxu0 %v640
    %1142 = vmatprep.subr.mxu0 0.0
    %1143 = vmatpush1.msra.mxu0 0.0
    %1144 = vmatprep.subr.mxu0 0.0
    %1145 = vmatpush1.msra.mxu0 0.0
    %1146 = vmatprep.subr.mxu0 0.0
    %1147 = vmatpush1.msra.mxu0 0.0
    %1148 = vmatprep.subr.mxu0 0.0
    %1149 = vmatpush1.msra.mxu0 0.0
    %1150 = vmatprep.subr.mxu0 0.0
    %1151 = vmatpush1.msra.mxu0 0.0
    %1152 = vmatprep.subr.mxu0 0.0
    %1153 = vmatpush1.msra.mxu0 0.0
    %1154 = vmatprep.subr.mxu0 0.0
    %1155 = vmatpush1.msra.mxu0 0.0
    %1156 = vmatprep.subr.mxu0 0.0
    %1157 = vmatpush1.msra.mxu0 0.0
    %1158 = vmatprep.subr.mxu0 0.0
    %1159 = vmatpush1.msra.mxu0 0.0
    %1160 = vmatprep.subr.mxu0 0.0
    %1161 = vmatpush1.msra.mxu0 0.0
    %1162 = vmatprep.subr.mxu0 0.0
    %1163 = vmatpush1.msra.mxu0 0.0
    %1164 = vmatprep.subr.mxu0 0.0
    %1165 = vmatpush1.msra.mxu0 0.0
    %1166 = vmatprep.subr.mxu0 0.0
    %1167 = vmatpush1.msra.mxu0 0.0
    %1168 = vmatprep.subr.mxu0 0.0
    %1169 = vmatpush1.msra.mxu0 0.0
    %1170 = vmatprep.subr.mxu0 0.0
    %1171 = vmatpush1.msra.mxu0 0.0
    %1172 = vmatprep.subr.mxu0 0.0
    %1173 = vmatpush1.msra.mxu0 0.0
    %1174 = vmatprep.subr.mxu0 0.0
    %1175 = vmatpush1.msra.mxu0 0.0
    %1176 = vmatprep.subr.mxu0 0.0
    %1177 = vmatpush1.msra.mxu0 0.0
    %1178 = vmatprep.subr.mxu0 0.0
    %1179 = vmatpush1.msra.mxu0 0.0
    %1180 = vmatprep.subr.mxu0 0.0
    %1181 = vmatpush1.msra.mxu0 0.0
    %1182 = vmatprep.subr.mxu0 0.0
    %1183 = vmatpush1.msra.mxu0 0.0
    %1184 = vmatprep.subr.mxu0 0.0
    %1185 = vmatpush1.msra.mxu0 0.0
    %1186 = vmatprep.subr.mxu0 0.0
    %1187 = vmatpush1.msra.mxu0 0.0
    %1188 = vmatprep.subr.mxu0 0.0
    %1189 = vmatpush1.msra.mxu0 0.0
    %1190 = vmatprep.subr.mxu0 0.0
    %1191 = vmatpush1.msra.mxu0 0.0
    %1192 = vmatprep.subr.mxu0 0.0
    %1193 = vmatpush1.msra.mxu0 0.0
    %1194 = vmatprep.subr.mxu0 0.0
    %1195 = vmatpush1.msra.mxu0 0.0
    %1196 = vmatprep.subr.mxu0 0.0
    %1197 = vmatpush1.msra.mxu0 0.0
    %1198 = vmatprep.mubr.f32.mxu0 0.0
    %1199 = vmatmul.mubr.f32.gmra.mrb[0].mxu0 %v1132
    %v1200 = vpop.f32.mrb[0].mxu0
    %v1201 = vadd.f32 %v434, %v1200
    %v1202 = vpop.f32.mrb[0].mxu0
    %v1203 = vadd.f32 %v438, %v1202
    %1204 = vdwg.mxu0
    %1205 = vmatprep.subr.mxu0 0.0
    %1206 = vmatpush1.msra.mxu0 %v633
    %1207 = vmatprep.subr.mxu0 0.0
    %1208 = vmatpush1.msra.mxu0 %v636
    %1209 = vmatprep.subr.mxu0 0.0
    %1210 = vmatpush1.msra.mxu0 %v639
    %1211 = vmatprep.subr.mxu0 0.0
    %1212 = vmatpush1.msra.mxu0 %v642
    %1213 = vmatprep.subr.mxu0 0.0
    %1214 = vmatpush1.msra.mxu0 0.0
    %1215 = vmatprep.subr.mxu0 0.0
    %1216 = vmatpush1.msra.mxu0 0.0
    %1217 = vmatprep.subr.mxu0 0.0
    %1218 = vmatpush1.msra.mxu0 0.0
    %1219 = vmatprep.subr.mxu0 0.0
    %1220 = vmatpush1.msra.mxu0 0.0
    %1221 = vmatprep.subr.mxu0 0.0
    %1222 = vmatpush1.msra.mxu0 0.0
    %1223 = vmatprep.subr.mxu0 0.0
    %1224 = vmatpush1.msra.mxu0 0.0
    %1225 = vmatprep.subr.mxu0 0.0
    %1226 = vmatpush1.msra.mxu0 0.0
    %1227 = vmatprep.subr.mxu0 0.0
    %1228 = vmatpush1.msra.mxu0 0.0
    %1229 = vmatprep.subr.mxu0 0.0
    %1230 = vmatpush1.msra.mxu0 0.0
    %1231 = vmatprep.subr.mxu0 0.0
    %1232 = vmatpush1.msra.mxu0 0.0
    %1233 = vmatprep.subr.mxu0 0.0
    %1234 = vmatpush1.msra.mxu0 0.0
    %1235 = vmatprep.subr.mxu0 0.0
    %1236 = vmatpush1.msra.mxu0 0.0
    %1237 = vmatprep.subr.mxu0 0.0
    %1238 = vmatpush1.msra.mxu0 0.0
    %1239 = vmatprep.subr.mxu0 0.0
    %1240 = vmatpush1.msra.mxu0 0.0
    %1241 = vmatprep.subr.mxu0 0.0
    %1242 = vmatpush1.msra.mxu0 0.0
    %1243 = vmatprep.subr.mxu0 0.0
    %1244 = vmatpush1.msra.mxu0 0.0
    %1245 = vmatprep.subr.mxu0 0.0
    %1246 = vmatpush1.msra.mxu0 0.0
    %1247 = vmatprep.subr.mxu0 0.0
    %1248 = vmatpush1.msra.mxu0 0.0
    %1249 = vmatprep.subr.mxu0 0.0
    %1250 = vmatpush1.msra.mxu0 0.0
    %1251 = vmatprep.subr.mxu0 0.0
    %1252 = vmatpush1.msra.mxu0 0.0
    %1253 = vmatprep.subr.mxu0 0.0
    %1254 = vmatpush1.msra.mxu0 0.0
    %1255 = vmatprep.subr.mxu0 0.0
    %1256 = vmatpush1.msra.mxu0 0.0
    %1257 = vmatprep.subr.mxu0 0.0
    %1258 = vmatpush1.msra.mxu0 0.0
    %1259 = vmatprep.subr.mxu0 0.0
    %1260 = vmatpush1.msra.mxu0 0.0
    %1261 = vmatprep.subr.mxu0 0.0
    %1262 = vmatpush1.msra.mxu0 0.0
    %1263 = vmatprep.subr.mxu0 0.0
    %1264 = vmatpush1.msra.mxu0 0.0
    %1265 = vmatprep.subr.mxu0 0.0
    %1266 = vmatpush1.msra.mxu0 0.0
    %1267 = vmatprep.subr.mxu0 0.0
    %1268 = vmatpush1.msra.mxu0 0.0
    %1269 = vmatprep.mubr.f32.mxu0 0.0
    %1270 = vmatmul.mubr.f32.gmra.mrb[0].mxu0 %v1132
    %v1271 = vpop.f32.mrb[0].mxu0
    %v1272 = vadd.f32 %v442, %v1271
    %v1273 = vpop.f32.mrb[0].mxu0
    %1274 = vdwg.mxu0
    %v1276 = vsel %vm464, %v964, 0
    %1278 = vmatprep.subr.mxu0 %v788
    %1279 = vmatpush1.msra.mxu0 %v787
    %1280 = vmatprep.subr.mxu0 %v791
    %1281 = vmatpush1.msra.mxu0 %v790
    %1282 = vmatprep.subr.mxu0 %v794
    %1283 = vmatpush1.msra.mxu0 %v793
    %1284 = vmatprep.subr.mxu0 %v797
    %1285 = vmatpush1.msra.mxu0 %v796
    %1286 = vmatprep.subr.mxu0 0.0
    %1287 = vmatpush1.msra.mxu0 0.0
    %1288 = vmatprep.subr.mxu0 0.0
    %1289 = vmatpush1.msra.mxu0 0.0
    %1290 = vmatprep.subr.mxu0 0.0
    %1291 = vmatpush1.msra.mxu0 0.0
    %1292 = vmatprep.subr.mxu0 0.0
    %1293 = vmatpush1.msra.mxu0 0.0
    %1294 = vmatprep.subr.mxu0 0.0
    %1295 = vmatpush1.msra.mxu0 0.0
    %1296 = vmatprep.subr.mxu0 0.0
    %1297 = vmatpush1.msra.mxu0 0.0
    %1298 = vmatprep.subr.mxu0 0.0
    %1299 = vmatpush1.msra.mxu0 0.0
    %1300 = vmatprep.subr.mxu0 0.0
    %1301 = vmatpush1.msra.mxu0 0.0
    %1302 = vmatprep.subr.mxu0 0.0
    %1303 = vmatpush1.msra.mxu0 0.0
    %1304 = vmatprep.subr.mxu0 0.0
    %1305 = vmatpush1.msra.mxu0 0.0
    %1306 = vmatprep.subr.mxu0 0.0
    %1307 = vmatpush1.msra.mxu0 0.0
    %1308 = vmatprep.subr.mxu0 0.0
    %1309 = vmatpush1.msra.mxu0 0.0
    %1310 = vmatprep.subr.mxu0 0.0
    %1311 = vmatpush1.msra.mxu0 0.0
    %1312 = vmatprep.subr.mxu0 0.0
    %1313 = vmatpush1.msra.mxu0 0.0
    %1314 = vmatprep.subr.mxu0 0.0
    %1315 = vmatpush1.msra.mxu0 0.0
    %1316 = vmatprep.subr.mxu0 0.0
    %1317 = vmatpush1.msra.mxu0 0.0
    %1318 = vmatprep.subr.mxu0 0.0
    %1319 = vmatpush1.msra.mxu0 0.0
    %1320 = vmatprep.subr.mxu0 0.0
    %1321 = vmatpush1.msra.mxu0 0.0
    %1322 = vmatprep.subr.mxu0 0.0
    %1323 = vmatpush1.msra.mxu0 0.0
    %1324 = vmatprep.subr.mxu0 0.0
    %1325 = vmatpush1.msra.mxu0 0.0
    %1326 = vmatprep.subr.mxu0 0.0
    %1327 = vmatpush1.msra.mxu0 0.0
    %1328 = vmatprep.subr.mxu0 0.0
    %1329 = vmatpush1.msra.mxu0 0.0
    %1330 = vmatprep.subr.mxu0 0.0
    %1331 = vmatpush1.msra.mxu0 0.0
    %1332 = vmatprep.subr.mxu0 0.0
    %1333 = vmatpush1.msra.mxu0 0.0
    %1334 = vmatprep.subr.mxu0 0.0
    %1335 = vmatpush1.msra.mxu0 0.0
    %1336 = vmatprep.subr.mxu0 0.0
    %1337 = vmatpush1.msra.mxu0 0.0
    %1338 = vmatprep.subr.mxu0 0.0
    %1339 = vmatpush1.msra.mxu0 0.0
    %1340 = vmatprep.subr.mxu0 0.0
    %1341 = vmatpush1.msra.mxu0 0.0
    %1342 = vmatprep.mubr.f32.mxu0 0.0
    %1343 = vmatmul.mubr.f32.gmra.mrb[0].mxu0 %v1276
    %v1344 = vpop.f32.mrb[0].mxu0
    %v1345 = vadd.f32 0.0, %v1344
    %v1346 = vpop.f32.mrb[0].mxu0
    %v1347 = vadd.f32 0.0, %v1346
    %1348 = vdwg.mxu0
    %1349 = vmatprep.subr.mxu0 0.0
    %1350 = vmatpush1.msra.mxu0 %v789
    %1351 = vmatprep.subr.mxu0 0.0
    %1352 = vmatpush1.msra.mxu0 %v792
    %1353 = vmatprep.subr.mxu0 0.0
    %1354 = vmatpush1.msra.mxu0 %v795
    %1355 = vmatprep.subr.mxu0 0.0
    %1356 = vmatpush1.msra.mxu0 %v798
    %1357 = vmatprep.subr.mxu0 0.0
    %1358 = vmatpush1.msra.mxu0 0.0
    %1359 = vmatprep.subr.mxu0 0.0
    %1360 = vmatpush1.msra.mxu0 0.0
    %1361 = vmatprep.subr.mxu0 0.0
    %1362 = vmatpush1.msra.mxu0 0.0
    %1363 = vmatprep.subr.mxu0 0.0
    %1364 = vmatpush1.msra.mxu0 0.0
    %1365 = vmatprep.subr.mxu0 0.0
    %1366 = vmatpush1.msra.mxu0 0.0
    %1367 = vmatprep.subr.mxu0 0.0
    %1368 = vmatpush1.msra.mxu0 0.0
    %1369 = vmatprep.subr.mxu0 0.0
    %1370 = vmatpush1.msra.mxu0 0.0
    %1371 = vmatprep.subr.mxu0 0.0
    %1372 = vmatpush1.msra.mxu0 0.0
    %1373 = vmatprep.subr.mxu0 0.0
    %1374 = vmatpush1.msra.mxu0 0.0
    %1375 = vmatprep.subr.mxu0 0.0
    %1376 = vmatpush1.msra.mxu0 0.0
    %1377 = vmatprep.subr.mxu0 0.0
    %1378 = vmatpush1.msra.mxu0 0.0
    %1379 = vmatprep.subr.mxu0 0.0
    %1380 = vmatpush1.msra.mxu0 0.0
    %1381 = vmatprep.subr.mxu0 0.0
    %1382 = vmatpush1.msra.mxu0 0.0
    %1383 = vmatprep.subr.mxu0 0.0
    %1384 = vmatpush1.msra.mxu0 0.0
    %1385 = vmatprep.subr.mxu0 0.0
    %1386 = vmatpush1.msra.mxu0 0.0
    %1387 = vmatprep.subr.mxu0 0.0
    %1388 = vmatpush1.msra.mxu0 0.0
    %1389 = vmatprep.subr.mxu0 0.0
    %1390 = vmatpush1.msra.mxu0 0.0
    %1391 = vmatprep.subr.mxu0 0.0
    %1392 = vmatpush1.msra.mxu0 0.0
    %1393 = vmatprep.subr.mxu0 0.0
    %1394 = vmatpush1.msra.mxu0 0.0
    %1395 = vmatprep.subr.mxu0 0.0
    %1396 = vmatpush1.msra.mxu0 0.0
    %1397 = vmatprep.subr.mxu0 0.0
    %1398 = vmatpush1.msra.mxu0 0.0
    %1399 = vmatprep.subr.mxu0 0.0
    %1400 = vmatpush1.msra.mxu0 0.0
    %1401 = vmatprep.subr.mxu0 0.0
    %1402 = vmatpush1.msra.mxu0 0.0
    %1403 = vmatprep.subr.mxu0 0.0
    %1404 = vmatpush1.msra.mxu0 0.0
    %1405 = vmatprep.subr.mxu0 0.0
    %1406 = vmatpush1.msra.mxu0 0.0
    %1407 = vmatprep.subr.mxu0 0.0
    %1408 = vmatpush1.msra.mxu0 0.0
    %1409 = vmatprep.subr.mxu0 0.0
    %1410 = vmatpush1.msra.mxu0 0.0
    %1411 = vmatprep.subr.mxu0 0.0
    %1412 = vmatpush1.msra.mxu0 0.0
    %1413 = vmatprep.mubr.f32.mxu0 0.0
    %1414 = vmatmul.mubr.f32.gmra.mrb[0].mxu0 %v1276
    %v1415 = vpop.f32.mrb[0].mxu0
    %v1416 = vadd.f32 0.0, %v1415
    %v1417 = vpop.f32.mrb[0].mxu0
    %1418 = vdwg.mxu0
    %v1419 = vadd.f32 %v1201, %v1345
    %v1420 = vxor.u32 %v1419, 2147483648
    %v1421 = vmul.f32 %v1420, 1.442695
    %v1422 = vpow.pop %v1421
    %v1423 = vadd.f32 %v1422, 1.0
    %v1424 = vrcp.pop %v1423
    %v1425 = vmul.f32 1.0, %v1424
    %v1426 = vadd.f32 %v1203, %v1347
    %v1427 = vxor.u32 %v1426, 2147483648
    %v1428 = vmul.f32 %v1427, 1.442695
    %v1429 = vpow.pop %v1428
    %v1430 = vadd.f32 %v1429, 1.0
    %v1431 = vrcp.pop %v1430
    %v1432 = vmul.f32 1.0, %v1431
    %v1433 = vadd.f32 %v1416, %v427
    %v1434 = vmul.f32 %v1425, %v1433
    %v1435 = vadd.f32 %v1272, %v1434
    %v1436 = vtanh.pop %v1435
    %v1437 = vsub.f32 1.0, %v1432
    %v1438 = vmul.f32 %v1437, %v1436
    %v1439 = vmul.f32 %v1432, %v964
    %v1440 = vadd.f32 %v1438, %v1439
    %v1441 = vld [vmem:[#allocation2 + $0x30] sm:$0xff]
    %v1442 = vld [vmem:[#allocation2 + $0x38] sm:$0xff]
    %v1443 = vld [vmem:[#allocation2 + $0x40] sm:$0xff]
    %1444 = vmatprep.subr.mxu0 %v453
    %1445 = vmatpush1.msra.mxu0 %v452
    %1446 = vmatprep.subr.mxu0 %v456
    %1447 = vmatpush1.msra.mxu0 %v455
    %1448 = vmatprep.subr.mxu0 %v459
    %1449 = vmatpush1.msra.mxu0 %v458
    %1450 = vmatprep.subr.mxu0 %v462
    %1451 = vmatpush1.msra.mxu0 %v461
    %1452 = vmatprep.subr.mxu0 0.0
    %1453 = vmatpush1.msra.mxu0 0.0
    %1454 = vmatprep.subr.mxu0 0.0
    %1455 = vmatpush1.msra.mxu0 0.0
    %1456 = vmatprep.subr.mxu0 0.0
    %1457 = vmatpush1.msra.mxu0 0.0
    %1458 = vmatprep.subr.mxu0 0.0
    %1459 = vmatpush1.msra.mxu0 0.0
    %1460 = vmatprep.subr.mxu0 0.0
    %1461 = vmatpush1.msra.mxu0 0.0
    %1462 = vmatprep.subr.mxu0 0.0
    %1463 = vmatpush1.msra.mxu0 0.0
    %1464 = vmatprep.subr.mxu0 0.0
    %1465 = vmatpush1.msra.mxu0 0.0
    %1466 = vmatprep.subr.mxu0 0.0
    %1467 = vmatpush1.msra.mxu0 0.0
    %1468 = vmatprep.subr.mxu0 0.0
    %1469 = vmatpush1.msra.mxu0 0.0
    %1470 = vmatprep.subr.mxu0 0.0
    %1471 = vmatpush1.msra.mxu0 0.0
    %1472 = vmatprep.subr.mxu0 0.0
    %1473 = vmatpush1.msra.mxu0 0.0
    %1474 = vmatprep.subr.mxu0 0.0
    %1475 = vmatpush1.msra.mxu0 0.0
    %1476 = vmatprep.subr.mxu0 0.0
    %1477 = vmatpush1.msra.mxu0 0.0
    %1478 = vmatprep.subr.mxu0 0.0
    %1479 = vmatpush1.msra.mxu0 0.0
    %1480 = vmatprep.subr.mxu0 0.0
    %1481 = vmatpush1.msra.mxu0 0.0
    %1482 = vmatprep.subr.mxu0 0.0
    %1483 = vmatpush1.msra.mxu0 0.0
    %1484 = vmatprep.subr.mxu0 0.0
    %1485 = vmatpush1.msra.mxu0 0.0
    %1486 = vmatprep.subr.mxu0 0.0
    %1487 = vmatpush1.msra.mxu0 0.0
    %1488 = vmatprep.subr.mxu0 0.0
    %1489 = vmatpush1.msra.mxu0 0.0
    %1490 = vmatprep.subr.mxu0 0.0
    %1491 = vmatpush1.msra.mxu0 0.0
    %1492 = vmatprep.subr.mxu0 0.0
    %1493 = vmatpush1.msra.mxu0 0.0
    %1494 = vmatprep.subr.mxu0 0.0
    %1495 = vmatpush1.msra.mxu0 0.0
    %1496 = vmatprep.subr.mxu0 0.0
    %1497 = vmatpush1.msra.mxu0 0.0
    %1498 = vmatprep.subr.mxu0 0.0
    %1499 = vmatpush1.msra.mxu0 0.0
    %1500 = vmatprep.subr.mxu0 0.0
    %1501 = vmatpush1.msra.mxu0 0.0
    %1502 = vmatprep.subr.mxu0 0.0
    %1503 = vmatpush1.msra.mxu0 0.0
    %1504 = vmatprep.subr.mxu0 0.0
    %1505 = vmatpush1.msra.mxu0 0.0
    %1506 = vmatprep.subr.mxu0 0.0
    %1507 = vmatpush1.msra.mxu0 0.0
    %1508 = vmatprep.mubr.f32.mxu0 0.0
    %1509 = vmatmul.mubr.f32.gmra.mrb[0].mxu0 %v1132
    %v1510 = vpop.f32.mrb[0].mxu0
    %v1511 = vadd.f32 0.0, %v1510
    %v1512 = vpop.f32.mrb[0].mxu0
    %v1513 = vadd.f32 0.0, %v1512
    %1514 = vdwg.mxu0
    %1515 = vmatprep.subr.mxu0 0.0
    %1516 = vmatpush1.msra.mxu0 %v454
    %1517 = vmatprep.subr.mxu0 0.0
    %1518 = vmatpush1.msra.mxu0 %v457
    %1519 = vmatprep.subr.mxu0 0.0
    %1520 = vmatpush1.msra.mxu0 %v460
    %1521 = vmatprep.subr.mxu0 0.0
    %1522 = vmatpush1.msra.mxu0 %v463
    %1523 = vmatprep.subr.mxu0 0.0
    %1524 = vmatpush1.msra.mxu0 0.0
    %1525 = vmatprep.subr.mxu0 0.0
    %1526 = vmatpush1.msra.mxu0 0.0
    %1527 = vmatprep.subr.mxu0 0.0
    %1528 = vmatpush1.msra.mxu0 0.0
    %1529 = vmatprep.subr.mxu0 0.0
    %1530 = vmatpush1.msra.mxu0 0.0
    %1531 = vmatprep.subr.mxu0 0.0
    %1532 = vmatpush1.msra.mxu0 0.0
    %1533 = vmatprep.subr.mxu0 0.0
    %1534 = vmatpush1.msra.mxu0 0.0
    %1535 = vmatprep.subr.mxu0 0.0
    %1536 = vmatpush1.msra.mxu0 0.0
    %1537 = vmatprep.subr.mxu0 0.0
    %1538 = vmatpush1.msra.mxu0 0.0
    %1539 = vmatprep.subr.mxu0 0.0
    %1540 = vmatpush1.msra.mxu0 0.0
    %1541 = vmatprep.subr.mxu0 0.0
    %1542 = vmatpush1.msra.mxu0 0.0
    %1543 = vmatprep.subr.mxu0 0.0
    %1544 = vmatpush1.msra.mxu0 0.0
    %1545 = vmatprep.subr.mxu0 0.0
    %1546 = vmatpush1.msra.mxu0 0.0
    %1547 = vmatprep.subr.mxu0 0.0
    %1548 = vmatpush1.msra.mxu0 0.0
    %1549 = vmatprep.subr.mxu0 0.0
    %1550 = vmatpush1.msra.mxu0 0.0
    %1551 = vmatprep.subr.mxu0 0.0
    %1552 = vmatpush1.msra.mxu0 0.0
    %1553 = vmatprep.subr.mxu0 0.0
    %1554 = vmatpush1.msra.mxu0 0.0
    %1555 = vmatprep.subr.mxu0 0.0
    %1556 = vmatpush1.msra.mxu0 0.0
    %1557 = vmatprep.subr.mxu0 0.0
    %1558 = vmatpush1.msra.mxu0 0.0
    %1559 = vmatprep.subr.mxu0 0.0
    %1560 = vmatpush1.msra.mxu0 0.0
    %1561 = vmatprep.subr.mxu0 0.0
    %1562 = vmatpush1.msra.mxu0 0.0
    %1563 = vmatprep.subr.mxu0 0.0
    %1564 = vmatpush1.msra.mxu0 0.0
    %1565 = vmatprep.subr.mxu0 0.0
    %1566 = vmatpush1.msra.mxu0 0.0
    %1567 = vmatprep.subr.mxu0 0.0
    %1568 = vmatpush1.msra.mxu0 0.0
    %1569 = vmatprep.subr.mxu0 0.0
    %1570 = vmatpush1.msra.mxu0 0.0
    %1571 = vmatprep.subr.mxu0 0.0
    %1572 = vmatpush1.msra.mxu0 0.0
    %1573 = vmatprep.subr.mxu0 0.0
    %1574 = vmatpush1.msra.mxu0 0.0
    %1575 = vmatprep.subr.mxu0 0.0
    %1576 = vmatpush1.msra.mxu0 0.0
    %1577 = vmatprep.subr.mxu0 0.0
    %1578 = vmatpush1.msra.mxu0 0.0
    %1579 = vmatprep.mubr.f32.mxu0 0.0
    %1580 = vmatmul.mubr.f32.gmra.mrb[0].mxu0 %v1132
    %v1581 = vpop.f32.mrb[0].mxu0
    %v1582 = vadd.f32 0.0, %v1581
    %v1583 = vpop.f32.mrb[0].mxu0
    %1584 = vdwg.mxu0
    %v1585 = vadd.f32 %v1441, %v1511
    %v1586 = vxor.u32 %v1585, 2147483648
    %v1587 = vmul.f32 %v1586, 1.442695
    %v1588 = vpow.pop %v1587
    %v1589 = vadd.f32 %v1588, 1.0
    %v1590 = vrcp.pop %v1589
    %v1591 = vmul.f32 1.0, %v1590
    %v1592 = vadd.f32 %v1442, %v1513
    %v1593 = vxor.u32 %v1592, 2147483648
    %v1594 = vmul.f32 %v1593, 1.442695
    %v1595 = vpow.pop %v1594
    %v1596 = vadd.f32 %v1595, 1.0
    %v1597 = vrcp.pop %v1596
    %v1598 = vmul.f32 1.0, %v1597
    %v1599 = vadd.f32 %v1582, %v420
    %v1600 = vmul.f32 %v1591, %v1599
    %v1601 = vadd.f32 %v1443, %v1600
    %v1602 = vtanh.pop %v1601
    %v1603 = vsub.f32 1.0, %v1598
    %v1604 = vmul.f32 %v1603, %v1602
    %v1605 = vmul.f32 %v1598, %v1130
    %v1606 = vadd.f32 %v1604, %v1605
    %v1608 = vsel %vm464, %v1606, 0
    %1610 = vmatprep.subr.mxu0 %v632
    %1611 = vmatpush1.msra.mxu0 %v631
    %1612 = vmatprep.subr.mxu0 %v635
    %1613 = vmatpush1.msra.mxu0 %v634
    %1614 = vmatprep.subr.mxu0 %v638
    %1615 = vmatpush1.msra.mxu0 %v637
    %1616 = vmatprep.subr.mxu0 %v641
    %1617 = vmatpush1.msra.mxu0 %v640
    %1618 = vmatprep.subr.mxu0 0.0
    %1619 = vmatpush1.msra.mxu0 0.0
    %1620 = vmatprep.subr.mxu0 0.0
    %1621 = vmatpush1.msra.mxu0 0.0
    %1622 = vmatprep.subr.mxu0 0.0
    %1623 = vmatpush1.msra.mxu0 0.0
    %1624 = vmatprep.subr.mxu0 0.0
    %1625 = vmatpush1.msra.mxu0 0.0
    %1626 = vmatprep.subr.mxu0 0.0
    %1627 = vmatpush1.msra.mxu0 0.0
    %1628 = vmatprep.subr.mxu0 0.0
    %1629 = vmatpush1.msra.mxu0 0.0
    %1630 = vmatprep.subr.mxu0 0.0
    %1631 = vmatpush1.msra.mxu0 0.0
    %1632 = vmatprep.subr.mxu0 0.0
    %1633 = vmatpush1.msra.mxu0 0.0
    %1634 = vmatprep.subr.mxu0 0.0
    %1635 = vmatpush1.msra.mxu0 0.0
    %1636 = vmatprep.subr.mxu0 0.0
    %1637 = vmatpush1.msra.mxu0 0.0
    %1638 = vmatprep.subr.mxu0 0.0
    %1639 = vmatpush1.msra.mxu0 0.0
    %1640 = vmatprep.subr.mxu0 0.0
    %1641 = vmatpush1.msra.mxu0 0.0
    %1642 = vmatprep.subr.mxu0 0.0
    %1643 = vmatpush1.msra.mxu0 0.0
    %1644 = vmatprep.subr.mxu0 0.0
    %1645 = vmatpush1.msra.mxu0 0.0
    %1646 = vmatprep.subr.mxu0 0.0
    %1647 = vmatpush1.msra.mxu0 0.0
    %1648 = vmatprep.subr.mxu0 0.0
    %1649 = vmatpush1.msra.mxu0 0.0
    %1650 = vmatprep.subr.mxu0 0.0
    %1651 = vmatpush1.msra.mxu0 0.0
    %1652 = vmatprep.subr.mxu0 0.0
    %1653 = vmatpush1.msra.mxu0 0.0
    %1654 = vmatprep.subr.mxu0 0.0
    %1655 = vmatpush1.msra.mxu0 0.0
    %1656 = vmatprep.subr.mxu0 0.0
    %1657 = vmatpush1.msra.mxu0 0.0
    %1658 = vmatprep.subr.mxu0 0.0
    %1659 = vmatpush1.msra.mxu0 0.0
    %1660 = vmatprep.subr.mxu0 0.0
    %1661 = vmatpush1.msra.mxu0 0.0
    %1662 = vmatprep.subr.mxu0 0.0
    %1663 = vmatpush1.msra.mxu0 0.0
    %1664 = vmatprep.subr.mxu0 0.0
    %1665 = vmatpush1.msra.mxu0 0.0
    %1666 = vmatprep.subr.mxu0 0.0
    %1667 = vmatpush1.msra.mxu0 0.0
    %1668 = vmatprep.subr.mxu0 0.0
    %1669 = vmatpush1.msra.mxu0 0.0
    %1670 = vmatprep.subr.mxu0 0.0
    %1671 = vmatpush1.msra.mxu0 0.0
    %1672 = vmatprep.subr.mxu0 0.0
    %1673 = vmatpush1.msra.mxu0 0.0
    %1674 = vmatprep.mubr.f32.mxu0 0.0
    %1675 = vmatmul.mubr.f32.gmra.mrb[0].mxu0 %v1608
    %v1676 = vpop.f32.mrb[0].mxu0
    %v1677 = vadd.f32 %v434, %v1676
    %v1678 = vpop.f32.mrb[0].mxu0
    %v1679 = vadd.f32 %v438, %v1678
    %1680 = vdwg.mxu0
    %1681 = vmatprep.subr.mxu0 0.0
    %1682 = vmatpush1.msra.mxu0 %v633
    %1683 = vmatprep.subr.mxu0 0.0
    %1684 = vmatpush1.msra.mxu0 %v636
    %1685 = vmatprep.subr.mxu0 0.0
    %1686 = vmatpush1.msra.mxu0 %v639
    %1687 = vmatprep.subr.mxu0 0.0
    %1688 = vmatpush1.msra.mxu0 %v642
    %1689 = vmatprep.subr.mxu0 0.0
    %1690 = vmatpush1.msra.mxu0 0.0
    %1691 = vmatprep.subr.mxu0 0.0
    %1692 = vmatpush1.msra.mxu0 0.0
    %1693 = vmatprep.subr.mxu0 0.0
    %1694 = vmatpush1.msra.mxu0 0.0
    %1695 = vmatprep.subr.mxu0 0.0
    %1696 = vmatpush1.msra.mxu0 0.0
    %1697 = vmatprep.subr.mxu0 0.0
    %1698 = vmatpush1.msra.mxu0 0.0
    %1699 = vmatprep.subr.mxu0 0.0
    %1700 = vmatpush1.msra.mxu0 0.0
    %1701 = vmatprep.subr.mxu0 0.0
    %1702 = vmatpush1.msra.mxu0 0.0
    %1703 = vmatprep.subr.mxu0 0.0
    %1704 = vmatpush1.msra.mxu0 0.0
    %1705 = vmatprep.subr.mxu0 0.0
    %1706 = vmatpush1.msra.mxu0 0.0
    %1707 = vmatprep.subr.mxu0 0.0
    %1708 = vmatpush1.msra.mxu0 0.0
    %1709 = vmatprep.subr.mxu0 0.0
    %1710 = vmatpush1.msra.mxu0 0.0
    %1711 = vmatprep.subr.mxu0 0.0
    %1712 = vmatpush1.msra.mxu0 0.0
    %1713 = vmatprep.subr.mxu0 0.0
    %1714 = vmatpush1.msra.mxu0 0.0
    %1715 = vmatprep.subr.mxu0 0.0
    %1716 = vmatpush1.msra.mxu0 0.0
    %1717 = vmatprep.subr.mxu0 0.0
    %1718 = vmatpush1.msra.mxu0 0.0
    %1719 = vmatprep.subr.mxu0 0.0
    %1720 = vmatpush1.msra.mxu0 0.0
    %1721 = vmatprep.subr.mxu0 0.0
    %1722 = vmatpush1.msra.mxu0 0.0
    %1723 = vmatprep.subr.mxu0 0.0
    %1724 = vmatpush1.msra.mxu0 0.0
    %1725 = vmatprep.subr.mxu0 0.0
    %1726 = vmatpush1.msra.mxu0 0.0
    %1727 = vmatprep.subr.mxu0 0.0
    %1728 = vmatpush1.msra.mxu0 0.0
    %1729 = vmatprep.subr.mxu0 0.0
    %1730 = vmatpush1.msra.mxu0 0.0
    %1731 = vmatprep.subr.mxu0 0.0
    %1732 = vmatpush1.msra.mxu0 0.0
    %1733 = vmatprep.subr.mxu0 0.0
    %1734 = vmatpush1.msra.mxu0 0.0
    %1735 = vmatprep.subr.mxu0 0.0
    %1736 = vmatpush1.msra.mxu0 0.0
    %1737 = vmatprep.subr.mxu0 0.0
    %1738 = vmatpush1.msra.mxu0 0.0
    %1739 = vmatprep.subr.mxu0 0.0
    %1740 = vmatpush1.msra.mxu0 0.0
    %1741 = vmatprep.subr.mxu0 0.0
    %1742 = vmatpush1.msra.mxu0 0.0
    %1743 = vmatprep.subr.mxu0 0.0
    %1744 = vmatpush1.msra.mxu0 0.0
    %1745 = vmatprep.mubr.f32.mxu0 0.0
    %1746 = vmatmul.mubr.f32.gmra.mrb[0].mxu0 %v1608
    %v1747 = vpop.f32.mrb[0].mxu0
    %v1748 = vadd.f32 %v442, %v1747
    %v1749 = vpop.f32.mrb[0].mxu0
    %1750 = vdwg.mxu0
    %v1752 = vsel %vm464, %v1440, 0
    %1754 = vmatprep.subr.mxu0 %v788
    %1755 = vmatpush1.msra.mxu0 %v787
    %1756 = vmatprep.subr.mxu0 %v791
    %1757 = vmatpush1.msra.mxu0 %v790
    %1758 = vmatprep.subr.mxu0 %v794
    %1759 = vmatpush1.msra.mxu0 %v793
    %1760 = vmatprep.subr.mxu0 %v797
    %1761 = vmatpush1.msra.mxu0 %v796
    %1762 = vmatprep.subr.mxu0 0.0
    %1763 = vmatpush1.msra.mxu0 0.0
    %1764 = vmatprep.subr.mxu0 0.0
    %1765 = vmatpush1.msra.mxu0 0.0
    %1766 = vmatprep.subr.mxu0 0.0
    %1767 = vmatpush1.msra.mxu0 0.0
    %1768 = vmatprep.subr.mxu0 0.0
    %1769 = vmatpush1.msra.mxu0 0.0
    %1770 = vmatprep.subr.mxu0 0.0
    %1771 = vmatpush1.msra.mxu0 0.0
    %1772 = vmatprep.subr.mxu0 0.0
    %1773 = vmatpush1.msra.mxu0 0.0
    %1774 = vmatprep.subr.mxu0 0.0
    %1775 = vmatpush1.msra.mxu0 0.0
    %1776 = vmatprep.subr.mxu0 0.0
    %1777 = vmatpush1.msra.mxu0 0.0
    %1778 = vmatprep.subr.mxu0 0.0
    %1779 = vmatpush1.msra.mxu0 0.0
    %1780 = vmatprep.subr.mxu0 0.0
    %1781 = vmatpush1.msra.mxu0 0.0
    %1782 = vmatprep.subr.mxu0 0.0
    %1783 = vmatpush1.msra.mxu0 0.0
    %1784 = vmatprep.subr.mxu0 0.0
    %1785 = vmatpush1.msra.mxu0 0.0
    %1786 = vmatprep.subr.mxu0 0.0
    %1787 = vmatpush1.msra.mxu0 0.0
    %1788 = vmatprep.subr.mxu0 0.0
    %1789 = vmatpush1.msra.mxu0 0.0
    %1790 = vmatprep.subr.mxu0 0.0
    %1791 = vmatpush1.msra.mxu0 0.0
    %1792 = vmatprep.subr.mxu0 0.0
    %1793 = vmatpush1.msra.mxu0 0.0
    %1794 = vmatprep.subr.mxu0 0.0
    %1795 = vmatpush1.msra.mxu0 0.0
    %1796 = vmatprep.subr.mxu0 0.0
    %1797 = vmatpush1.msra.mxu0 0.0
    %1798 = vmatprep.subr.mxu0 0.0
    %1799 = vmatpush1.msra.mxu0 0.0
    %1800 = vmatprep.subr.mxu0 0.0
    %1801 = vmatpush1.msra.mxu0 0.0
    %1802 = vmatprep.subr.mxu0 0.0
    %1803 = vmatpush1.msra.mxu0 0.0
    %1804 = vmatprep.subr.mxu0 0.0
    %1805 = vmatpush1.msra.mxu0 0.0
    %1806 = vmatprep.subr.mxu0 0.0
    %1807 = vmatpush1.msra.mxu0 0.0
    %1808 = vmatprep.subr.mxu0 0.0
    %1809 = vmatpush1.msra.mxu0 0.0
    %1810 = vmatprep.subr.mxu0 0.0
    %1811 = vmatpush1.msra.mxu0 0.0
    %1812 = vmatprep.subr.mxu0 0.0
    %1813 = vmatpush1.msra.mxu0 0.0
    %1814 = vmatprep.subr.mxu0 0.0
    %1815 = vmatpush1.msra.mxu0 0.0
    %1816 = vmatprep.subr.mxu0 0.0
    %1817 = vmatpush1.msra.mxu0 0.0
    %1818 = vmatprep.mubr.f32.mxu0 0.0
    %1819 = vmatmul.mubr.f32.gmra.mrb[0].mxu0 %v1752
    %v1820 = vpop.f32.mrb[0].mxu0
    %v1821 = vadd.f32 0.0, %v1820
    %v1822 = vpop.f32.mrb[0].mxu0
    %v1823 = vadd.f32 0.0, %v1822
    %1824 = vdwg.mxu0
    %1825 = vmatprep.subr.mxu0 0.0
    %1826 = vmatpush1.msra.mxu0 %v789
    %1827 = vmatprep.subr.mxu0 0.0
    %1828 = vmatpush1.msra.mxu0 %v792
    %1829 = vmatprep.subr.mxu0 0.0
    %1830 = vmatpush1.msra.mxu0 %v795
    %1831 = vmatprep.subr.mxu0 0.0
    %1832 = vmatpush1.msra.mxu0 %v798
    %1833 = vmatprep.subr.mxu0 0.0
    %1834 = vmatpush1.msra.mxu0 0.0
    %1835 = vmatprep.subr.mxu0 0.0
    %1836 = vmatpush1.msra.mxu0 0.0
    %1837 = vmatprep.subr.mxu0 0.0
    %1838 = vmatpush1.msra.mxu0 0.0
    %1839 = vmatprep.subr.mxu0 0.0
    %1840 = vmatpush1.msra.mxu0 0.0
    %1841 = vmatprep.subr.mxu0 0.0
    %1842 = vmatpush1.msra.mxu0 0.0
    %1843 = vmatprep.subr.mxu0 0.0
    %1844 = vmatpush1.msra.mxu0 0.0
    %1845 = vmatprep.subr.mxu0 0.0
    %1846 = vmatpush1.msra.mxu0 0.0
    %1847 = vmatprep.subr.mxu0 0.0
    %1848 = vmatpush1.msra.mxu0 0.0
    %1849 = vmatprep.subr.mxu0 0.0
    %1850 = vmatpush1.msra.mxu0 0.0
    %1851 = vmatprep.subr.mxu0 0.0
    %1852 = vmatpush1.msra.mxu0 0.0
    %1853 = vmatprep.subr.mxu0 0.0
    %1854 = vmatpush1.msra.mxu0 0.0
    %1855 = vmatprep.subr.mxu0 0.0
    %1856 = vmatpush1.msra.mxu0 0.0
    %1857 = vmatprep.subr.mxu0 0.0
    %1858 = vmatpush1.msra.mxu0 0.0
    %1859 = vmatprep.subr.mxu0 0.0
    %1860 = vmatpush1.msra.mxu0 0.0
    %1861 = vmatprep.subr.mxu0 0.0
    %1862 = vmatpush1.msra.mxu0 0.0
    %1863 = vmatprep.subr.mxu0 0.0
    %1864 = vmatpush1.msra.mxu0 0.0
    %1865 = vmatprep.subr.mxu0 0.0
    %1866 = vmatpush1.msra.mxu0 0.0
    %1867 = vmatprep.subr.mxu0 0.0
    %1868 = vmatpush1.msra.mxu0 0.0
    %1869 = vmatprep.subr.mxu0 0.0
    %1870 = vmatpush1.msra.mxu0 0.0
    %1871 = vmatprep.subr.mxu0 0.0
    %1872 = vmatpush1.msra.mxu0 0.0
    %1873 = vmatprep.subr.mxu0 0.0
    %1874 = vmatpush1.msra.mxu0 0.0
    %1875 = vmatprep.subr.mxu0 0.0
    %1876 = vmatpush1.msra.mxu0 0.0
    %1877 = vmatprep.subr.mxu0 0.0
    %1878 = vmatpush1.msra.mxu0 0.0
    %1879 = vmatprep.subr.mxu0 0.0
    %1880 = vmatpush1.msra.mxu0 0.0
    %1881 = vmatprep.subr.mxu0 0.0
    %1882 = vmatpush1.msra.mxu0 0.0
    %1883 = vmatprep.subr.mxu0 0.0
    %1884 = vmatpush1.msra.mxu0 0.0
    %1885 = vmatprep.subr.mxu0 0.0
    %1886 = vmatpush1.msra.mxu0 0.0
    %1887 = vmatprep.subr.mxu0 0.0
    %1888 = vmatpush1.msra.mxu0 0.0
    %1889 = vmatprep.mubr.f32.mxu0 0.0
    %1890 = vmatmul.mubr.f32.gmra.mrb[0].mxu0 %v1752
    %v1891 = vpop.f32.mrb[0].mxu0
    %v1892 = vadd.f32 0.0, %v1891
    %v1893 = vpop.f32.mrb[0].mxu0
    %1894 = vdwg.mxu0
    %v1895 = vadd.f32 %v1677, %v1821
    %v1896 = vxor.u32 %v1895, 2147483648
    %v1897 = vmul.f32 %v1896, 1.442695
    %v1898 = vpow.pop %v1897
    %v1899 = vadd.f32 %v1898, 1.0
    %v1900 = vrcp.pop %v1899
    %v1901 = vmul.f32 1.0, %v1900
    %v1902 = vadd.f32 %v1679, %v1823
    %v1903 = vxor.u32 %v1902, 2147483648
    %v1904 = vmul.f32 %v1903, 1.442695
    %v1905 = vpow.pop %v1904
    %v1906 = vadd.f32 %v1905, 1.0
    %v1907 = vrcp.pop %v1906
    %v1908 = vmul.f32 1.0, %v1907
    %v1909 = vadd.f32 %v1892, %v427
    %v1910 = vmul.f32 %v1901, %v1909
    %v1911 = vadd.f32 %v1748, %v1910
    %v1912 = vtanh.pop %v1911
    %v1913 = vsub.f32 1.0, %v1908
    %v1914 = vmul.f32 %v1913, %v1912
    %v1915 = vmul.f32 %v1908, %v1440
    %v1916 = vadd.f32 %v1914, %v1915
    %v1917 = vld [vmem:[#allocation2 + $0x48] sm:$0xff]
    %v1918 = vld [vmem:[#allocation2 + $0x50] sm:$0xff]
    %v1919 = vld [vmem:[#allocation2 + $0x58] sm:$0xff]
    %1920 = vmatprep.subr.mxu0 %v453
    %1921 = vmatpush1.msra.mxu0 %v452
    %1922 = vmatprep.subr.mxu0 %v456
    %1923 = vmatpush1.msra.mxu0 %v455
    %1924 = vmatprep.subr.mxu0 %v459
    %1925 = vmatpush1.msra.mxu0 %v458
    %1926 = vmatprep.subr.mxu0 %v462
    %1927 = vmatpush1.msra.mxu0 %v461
    %1928 = vmatprep.subr.mxu0 0.0
    %1929 = vmatpush1.msra.mxu0 0.0
    %1930 = vmatprep.subr.mxu0 0.0
    %1931 = vmatpush1.msra.mxu0 0.0
    %1932 = vmatprep.subr.mxu0 0.0
    %1933 = vmatpush1.msra.mxu0 0.0
    %1934 = vmatprep.subr.mxu0 0.0
    %1935 = vmatpush1.msra.mxu0 0.0
    %1936 = vmatprep.subr.mxu0 0.0
    %1937 = vmatpush1.msra.mxu0 0.0
    %1938 = vmatprep.subr.mxu0 0.0
    %1939 = vmatpush1.msra.mxu0 0.0
    %1940 = vmatprep.subr.mxu0 0.0
    %1941 = vmatpush1.msra.mxu0 0.0
    %1942 = vmatprep.subr.mxu0 0.0
    %1943 = vmatpush1.msra.mxu0 0.0
    %1944 = vmatprep.subr.mxu0 0.0
    %1945 = vmatpush1.msra.mxu0 0.0
    %1946 = vmatprep.subr.mxu0 0.0
    %1947 = vmatpush1.msra.mxu0 0.0
    %1948 = vmatprep.subr.mxu0 0.0
    %1949 = vmatpush1.msra.mxu0 0.0
    %1950 = vmatprep.subr.mxu0 0.0
    %1951 = vmatpush1.msra.mxu0 0.0
    %1952 = vmatprep.subr.mxu0 0.0
    %1953 = vmatpush1.msra.mxu0 0.0
    %1954 = vmatprep.subr.mxu0 0.0
    %1955 = vmatpush1.msra.mxu0 0.0
    %1956 = vmatprep.subr.mxu0 0.0
    %1957 = vmatpush1.msra.mxu0 0.0
    %1958 = vmatprep.subr.mxu0 0.0
    %1959 = vmatpush1.msra.mxu0 0.0
    %1960 = vmatprep.subr.mxu0 0.0
    %1961 = vmatpush1.msra.mxu0 0.0
    %1962 = vmatprep.subr.mxu0 0.0
    %1963 = vmatpush1.msra.mxu0 0.0
    %1964 = vmatprep.subr.mxu0 0.0
    %1965 = vmatpush1.msra.mxu0 0.0
    %1966 = vmatprep.subr.mxu0 0.0
    %1967 = vmatpush1.msra.mxu0 0.0
    %1968 = vmatprep.subr.mxu0 0.0
    %1969 = vmatpush1.msra.mxu0 0.0
    %1970 = vmatprep.subr.mxu0 0.0
    %1971 = vmatpush1.msra.mxu0 0.0
    %1972 = vmatprep.subr.mxu0 0.0
    %1973 = vmatpush1.msra.mxu0 0.0
    %1974 = vmatprep.subr.mxu0 0.0
    %1975 = vmatpush1.msra.mxu0 0.0
    %1976 = vmatprep.subr.mxu0 0.0
    %1977 = vmatpush1.msra.mxu0 0.0
    %1978 = vmatprep.subr.mxu0 0.0
    %1979 = vmatpush1.msra.mxu0 0.0
    %1980 = vmatprep.subr.mxu0 0.0
    %1981 = vmatpush1.msra.mxu0 0.0
    %1982 = vmatprep.subr.mxu0 0.0
    %1983 = vmatpush1.msra.mxu0 0.0
    %1984 = vmatprep.mubr.f32.mxu0 0.0
    %1985 = vmatmul.mubr.f32.gmra.mrb[0].mxu0 %v1608
    %v1986 = vpop.f32.mrb[0].mxu0
    %v1987 = vadd.f32 0.0, %v1986
    %v1988 = vpop.f32.mrb[0].mxu0
    %v1989 = vadd.f32 0.0, %v1988
    %1990 = vdwg.mxu0
    %1991 = vmatprep.subr.mxu0 0.0
    %1992 = vmatpush1.msra.mxu0 %v454
    %1993 = vmatprep.subr.mxu0 0.0
    %1994 = vmatpush1.msra.mxu0 %v457
    %1995 = vmatprep.subr.mxu0 0.0
    %1996 = vmatpush1.msra.mxu0 %v460
    %1997 = vmatprep.subr.mxu0 0.0
    %1998 = vmatpush1.msra.mxu0 %v463
    %1999 = vmatprep.subr.mxu0 0.0
    %2000 = vmatpush1.msra.mxu0 0.0
    %2001 = vmatprep.subr.mxu0 0.0
    %2002 = vmatpush1.msra.mxu0 0.0
    %2003 = vmatprep.subr.mxu0 0.0
    %2004 = vmatpush1.msra.mxu0 0.0
    %2005 = vmatprep.subr.mxu0 0.0
    %2006 = vmatpush1.msra.mxu0 0.0
    %2007 = vmatprep.subr.mxu0 0.0
    %2008 = vmatpush1.msra.mxu0 0.0
    %2009 = vmatprep.subr.mxu0 0.0
    %2010 = vmatpush1.msra.mxu0 0.0
    %2011 = vmatprep.subr.mxu0 0.0
    %2012 = vmatpush1.msra.mxu0 0.0
    %2013 = vmatprep.subr.mxu0 0.0
    %2014 = vmatpush1.msra.mxu0 0.0
    %2015 = vmatprep.subr.mxu0 0.0
    %2016 = vmatpush1.msra.mxu0 0.0
    %2017 = vmatprep.subr.mxu0 0.0
    %2018 = vmatpush1.msra.mxu0 0.0
    %2019 = vmatprep.subr.mxu0 0.0
    %2020 = vmatpush1.msra.mxu0 0.0
    %2021 = vmatprep.subr.mxu0 0.0
    %2022 = vmatpush1.msra.mxu0 0.0
    %2023 = vmatprep.subr.mxu0 0.0
    %2024 = vmatpush1.msra.mxu0 0.0
    %2025 = vmatprep.subr.mxu0 0.0
    %2026 = vmatpush1.msra.mxu0 0.0
    %2027 = vmatprep.subr.mxu0 0.0
    %2028 = vmatpush1.msra.mxu0 0.0
    %2029 = vmatprep.subr.mxu0 0.0
    %2030 = vmatpush1.msra.mxu0 0.0
    %2031 = vmatprep.subr.mxu0 0.0
    %2032 = vmatpush1.msra.mxu0 0.0
    %2033 = vmatprep.subr.mxu0 0.0
    %2034 = vmatpush1.msra.mxu0 0.0
    %2035 = vmatprep.subr.mxu0 0.0
    %2036 = vmatpush1.msra.mxu0 0.0
    %2037 = vmatprep.subr.mxu0 0.0
    %2038 = vmatpush1.msra.mxu0 0.0
    %2039 = vmatprep.subr.mxu0 0.0
    %2040 = vmatpush1.msra.mxu0 0.0
    %2041 = vmatprep.subr.mxu0 0.0
    %2042 = vmatpush1.msra.mxu0 0.0
    %2043 = vmatprep.subr.mxu0 0.0
    %2044 = vmatpush1.msra.mxu0 0.0
    %2045 = vmatprep.subr.mxu0 0.0
    %2046 = vmatpush1.msra.mxu0 0.0
    %2047 = vmatprep.subr.mxu0 0.0
    %2048 = vmatpush1.msra.mxu0 0.0
    %2049 = vmatprep.subr.mxu0 0.0
    %2050 = vmatpush1.msra.mxu0 0.0
    %2051 = vmatprep.subr.mxu0 0.0
    %2052 = vmatpush1.msra.mxu0 0.0
    %2053 = vmatprep.subr.mxu0 0.0
    %2054 = vmatpush1.msra.mxu0 0.0
    %2055 = vmatprep.mubr.f32.mxu0 0.0
    %2056 = vmatmul.mubr.f32.gmra.mrb[0].mxu0 %v1608
    %v2057 = vpop.f32.mrb[0].mxu0
    %v2058 = vadd.f32 0.0, %v2057
    %v2059 = vpop.f32.mrb[0].mxu0
    %2060 = vdwg.mxu0
    %v2061 = vadd.f32 %v1917, %v1987
    %v2062 = vxor.u32 %v2061, 2147483648
    %v2063 = vmul.f32 %v2062, 1.442695
    %v2064 = vpow.pop %v2063
    %v2065 = vadd.f32 %v2064, 1.0
    %v2066 = vrcp.pop %v2065
    %v2067 = vmul.f32 1.0, %v2066
    %v2068 = vadd.f32 %v1918, %v1989
    %v2069 = vxor.u32 %v2068, 2147483648
    %v2070 = vmul.f32 %v2069, 1.442695
    %v2071 = vpow.pop %v2070
    %v2072 = vadd.f32 %v2071, 1.0
    %v2073 = vrcp.pop %v2072
    %v2074 = vmul.f32 1.0, %v2073
    %v2075 = vadd.f32 %v2058, %v420
    %v2076 = vmul.f32 %v2067, %v2075
    %v2077 = vadd.f32 %v1919, %v2076
    %v2078 = vtanh.pop %v2077
    %v2079 = vsub.f32 1.0, %v2074
    %v2080 = vmul.f32 %v2079, %v2078
    %v2081 = vmul.f32 %v2074, %v1606
    %v2082 = vadd.f32 %v2080, %v2081
    %v2084 = vsel %vm464, %v2082, 0
    %2086 = vmatprep.subr.mxu0 %v632
    %2087 = vmatpush1.msra.mxu0 %v631
    %2088 = vmatprep.subr.mxu0 %v635
    %2089 = vmatpush1.msra.mxu0 %v634
    %2090 = vmatprep.subr.mxu0 %v638
    %2091 = vmatpush1.msra.mxu0 %v637
    %2092 = vmatprep.subr.mxu0 %v641
    %2093 = vmatpush1.msra.mxu0 %v640
    %2094 = vmatprep.subr.mxu0 0.0
    %2095 = vmatpush1.msra.mxu0 0.0
    %2096 = vmatprep.subr.mxu0 0.0
    %2097 = vmatpush1.msra.mxu0 0.0
    %2098 = vmatprep.subr.mxu0 0.0
    %2099 = vmatpush1.msra.mxu0 0.0
    %2100 = vmatprep.subr.mxu0 0.0
    %2101 = vmatpush1.msra.mxu0 0.0
    %2102 = vmatprep.subr.mxu0 0.0
    %2103 = vmatpush1.msra.mxu0 0.0
    %2104 = vmatprep.subr.mxu0 0.0
    %2105 = vmatpush1.msra.mxu0 0.0
    %2106 = vmatprep.subr.mxu0 0.0
    %2107 = vmatpush1.msra.mxu0 0.0
    %2108 = vmatprep.subr.mxu0 0.0
    %2109 = vmatpush1.msra.mxu0 0.0
    %2110 = vmatprep.subr.mxu0 0.0
    %2111 = vmatpush1.msra.mxu0 0.0
    %2112 = vmatprep.subr.mxu0 0.0
    %2113 = vmatpush1.msra.mxu0 0.0
    %2114 = vmatprep.subr.mxu0 0.0
    %2115 = vmatpush1.msra.mxu0 0.0
    %2116 = vmatprep.subr.mxu0 0.0
    %2117 = vmatpush1.msra.mxu0 0.0
    %2118 = vmatprep.subr.mxu0 0.0
    %2119 = vmatpush1.msra.mxu0 0.0
    %2120 = vmatprep.subr.mxu0 0.0
    %2121 = vmatpush1.msra.mxu0 0.0
    %2122 = vmatprep.subr.mxu0 0.0
    %2123 = vmatpush1.msra.mxu0 0.0
    %2124 = vmatprep.subr.mxu0 0.0
    %2125 = vmatpush1.msra.mxu0 0.0
    %2126 = vmatprep.subr.mxu0 0.0
    %2127 = vmatpush1.msra.mxu0 0.0
    %2128 = vmatprep.subr.mxu0 0.0
    %2129 = vmatpush1.msra.mxu0 0.0
    %2130 = vmatprep.subr.mxu0 0.0
    %2131 = vmatpush1.msra.mxu0 0.0
    %2132 = vmatprep.subr.mxu0 0.0
    %2133 = vmatpush1.msra.mxu0 0.0
    %2134 = vmatprep.subr.mxu0 0.0
    %2135 = vmatpush1.msra.mxu0 0.0
    %2136 = vmatprep.subr.mxu0 0.0
    %2137 = vmatpush1.msra.mxu0 0.0
    %2138 = vmatprep.subr.mxu0 0.0
    %2139 = vmatpush1.msra.mxu0 0.0
    %2140 = vmatprep.subr.mxu0 0.0
    %2141 = vmatpush1.msra.mxu0 0.0
    %2142 = vmatprep.subr.mxu0 0.0
    %2143 = vmatpush1.msra.mxu0 0.0
    %2144 = vmatprep.subr.mxu0 0.0
    %2145 = vmatpush1.msra.mxu0 0.0
    %2146 = vmatprep.subr.mxu0 0.0
    %2147 = vmatpush1.msra.mxu0 0.0
    %2148 = vmatprep.subr.mxu0 0.0
    %2149 = vmatpush1.msra.mxu0 0.0
    %2150 = vmatprep.mubr.f32.mxu0 0.0
    %2151 = vmatmul.mubr.f32.gmra.mrb[0].mxu0 %v2084
    %v2152 = vpop.f32.mrb[0].mxu0
    %v2153 = vadd.f32 %v434, %v2152
    %v2154 = vpop.f32.mrb[0].mxu0
    %v2155 = vadd.f32 %v438, %v2154
    %2156 = vdwg.mxu0
    %2157 = vmatprep.subr.mxu0 0.0
    %2158 = vmatpush1.msra.mxu0 %v633
    %2159 = vmatprep.subr.mxu0 0.0
    %2160 = vmatpush1.msra.mxu0 %v636
    %2161 = vmatprep.subr.mxu0 0.0
    %2162 = vmatpush1.msra.mxu0 %v639
    %2163 = vmatprep.subr.mxu0 0.0
    %2164 = vmatpush1.msra.mxu0 %v642
    %2165 = vmatprep.subr.mxu0 0.0
    %2166 = vmatpush1.msra.mxu0 0.0
    %2167 = vmatprep.subr.mxu0 0.0
    %2168 = vmatpush1.msra.mxu0 0.0
    %2169 = vmatprep.subr.mxu0 0.0
    %2170 = vmatpush1.msra.mxu0 0.0
    %2171 = vmatprep.subr.mxu0 0.0
    %2172 = vmatpush1.msra.mxu0 0.0
    %2173 = vmatprep.subr.mxu0 0.0
    %2174 = vmatpush1.msra.mxu0 0.0
    %2175 = vmatprep.subr.mxu0 0.0
    %2176 = vmatpush1.msra.mxu0 0.0
    %2177 = vmatprep.subr.mxu0 0.0
    %2178 = vmatpush1.msra.mxu0 0.0
    %2179 = vmatprep.subr.mxu0 0.0
    %2180 = vmatpush1.msra.mxu0 0.0
    %2181 = vmatprep.subr.mxu0 0.0
    %2182 = vmatpush1.msra.mxu0 0.0
    %2183 = vmatprep.subr.mxu0 0.0
    %2184 = vmatpush1.msra.mxu0 0.0
    %2185 = vmatprep.subr.mxu0 0.0
    %2186 = vmatpush1.msra.mxu0 0.0
    %2187 = vmatprep.subr.mxu0 0.0
    %2188 = vmatpush1.msra.mxu0 0.0
    %2189 = vmatprep.subr.mxu0 0.0
    %2190 = vmatpush1.msra.mxu0 0.0
    %2191 = vmatprep.subr.mxu0 0.0
    %2192 = vmatpush1.msra.mxu0 0.0
    %2193 = vmatprep.subr.mxu0 0.0
    %2194 = vmatpush1.msra.mxu0 0.0
    %2195 = vmatprep.subr.mxu0 0.0
    %2196 = vmatpush1.msra.mxu0 0.0
    %2197 = vmatprep.subr.mxu0 0.0
    %2198 = vmatpush1.msra.mxu0 0.0
    %2199 = vmatprep.subr.mxu0 0.0
    %2200 = vmatpush1.msra.mxu0 0.0
    %2201 = vmatprep.subr.mxu0 0.0
    %2202 = vmatpush1.msra.mxu0 0.0
    %2203 = vmatprep.subr.mxu0 0.0
    %2204 = vmatpush1.msra.mxu0 0.0
    %2205 = vmatprep.subr.mxu0 0.0
    %2206 = vmatpush1.msra.mxu0 0.0
    %2207 = vmatprep.subr.mxu0 0.0
    %2208 = vmatpush1.msra.mxu0 0.0
    %2209 = vmatprep.subr.mxu0 0.0
    %2210 = vmatpush1.msra.mxu0 0.0
    %2211 = vmatprep.subr.mxu0 0.0
    %2212 = vmatpush1.msra.mxu0 0.0
    %2213 = vmatprep.subr.mxu0 0.0
    %2214 = vmatpush1.msra.mxu0 0.0
    %2215 = vmatprep.subr.mxu0 0.0
    %2216 = vmatpush1.msra.mxu0 0.0
    %2217 = vmatprep.subr.mxu0 0.0
    %2218 = vmatpush1.msra.mxu0 0.0
    %2219 = vmatprep.subr.mxu0 0.0
    %2220 = vmatpush1.msra.mxu0 0.0
    %2221 = vmatprep.mubr.f32.mxu0 0.0
    %2222 = vmatmul.mubr.f32.gmra.mrb[0].mxu0 %v2084
    %v2223 = vpop.f32.mrb[0].mxu0
    %v2224 = vadd.f32 %v442, %v2223
    %v2225 = vpop.f32.mrb[0].mxu0
    %2226 = vdwg.mxu0
    %v2228 = vsel %vm464, %v1916, 0
    %2230 = vmatprep.subr.mxu0 %v788
    %2231 = vmatpush1.msra.mxu0 %v787
    %2232 = vmatprep.subr.mxu0 %v791
    %2233 = vmatpush1.msra.mxu0 %v790
    %2234 = vmatprep.subr.mxu0 %v794
    %2235 = vmatpush1.msra.mxu0 %v793
    %2236 = vmatprep.subr.mxu0 %v797
    %2237 = vmatpush1.msra.mxu0 %v796
    %2238 = vmatprep.subr.mxu0 0.0
    %2239 = vmatpush1.msra.mxu0 0.0
    %2240 = vmatprep.subr.mxu0 0.0
    %2241 = vmatpush1.msra.mxu0 0.0
    %2242 = vmatprep.subr.mxu0 0.0
    %2243 = vmatpush1.msra.mxu0 0.0
    %2244 = vmatprep.subr.mxu0 0.0
    %2245 = vmatpush1.msra.mxu0 0.0
    %2246 = vmatprep.subr.mxu0 0.0
    %2247 = vmatpush1.msra.mxu0 0.0
    %2248 = vmatprep.subr.mxu0 0.0
    %2249 = vmatpush1.msra.mxu0 0.0
    %2250 = vmatprep.subr.mxu0 0.0
    %2251 = vmatpush1.msra.mxu0 0.0
    %2252 = vmatprep.subr.mxu0 0.0
    %2253 = vmatpush1.msra.mxu0 0.0
    %2254 = vmatprep.subr.mxu0 0.0
    %2255 = vmatpush1.msra.mxu0 0.0
    %2256 = vmatprep.subr.mxu0 0.0
    %2257 = vmatpush1.msra.mxu0 0.0
    %2258 = vmatprep.subr.mxu0 0.0
    %2259 = vmatpush1.msra.mxu0 0.0
    %2260 = vmatprep.subr.mxu0 0.0
    %2261 = vmatpush1.msra.mxu0 0.0
    %2262 = vmatprep.subr.mxu0 0.0
    %2263 = vmatpush1.msra.mxu0 0.0
    %2264 = vmatprep.subr.mxu0 0.0
    %2265 = vmatpush1.msra.mxu0 0.0
    %2266 = vmatprep.subr.mxu0 0.0
    %2267 = vmatpush1.msra.mxu0 0.0
    %2268 = vmatprep.subr.mxu0 0.0
    %2269 = vmatpush1.msra.mxu0 0.0
    %2270 = vmatprep.subr.mxu0 0.0
    %2271 = vmatpush1.msra.mxu0 0.0
    %2272 = vmatprep.subr.mxu0 0.0
    %2273 = vmatpush1.msra.mxu0 0.0
    %2274 = vmatprep.subr.mxu0 0.0
    %2275 = vmatpush1.msra.mxu0 0.0
    %2276 = vmatprep.subr.mxu0 0.0
    %2277 = vmatpush1.msra.mxu0 0.0
    %2278 = vmatprep.subr.mxu0 0.0
    %2279 = vmatpush1.msra.mxu0 0.0
    %2280 = vmatprep.subr.mxu0 0.0
    %2281 = vmatpush1.msra.mxu0 0.0
    %2282 = vmatprep.subr.mxu0 0.0
    %2283 = vmatpush1.msra.mxu0 0.0
    %2284 = vmatprep.subr.mxu0 0.0
    %2285 = vmatpush1.msra.mxu0 0.0
    %2286 = vmatprep.subr.mxu0 0.0
    %2287 = vmatpush1.msra.mxu0 0.0
    %2288 = vmatprep.subr.mxu0 0.0
    %2289 = vmatpush1.msra.mxu0 0.0
    %2290 = vmatprep.subr.mxu0 0.0
    %2291 = vmatpush1.msra.mxu0 0.0
    %2292 = vmatprep.subr.mxu0 0.0
    %2293 = vmatpush1.msra.mxu0 0.0
    %2294 = vmatprep.mubr.f32.mxu0 0.0
    %2295 = vmatmul.mubr.f32.gmra.mrb[0].mxu0 %v2228
    %v2296 = vpop.f32.mrb[0].mxu0
    %v2297 = vadd.f32 0.0, %v2296
    %v2298 = vpop.f32.mrb[0].mxu0
    %v2299 = vadd.f32 0.0, %v2298
    %2300 = vdwg.mxu0
    %2301 = vmatprep.subr.mxu0 0.0
    %2302 = vmatpush1.msra.mxu0 %v789
    %2303 = vmatprep.subr.mxu0 0.0
    %2304 = vmatpush1.msra.mxu0 %v792
    %2305 = vmatprep.subr.mxu0 0.0
    %2306 = vmatpush1.msra.mxu0 %v795
    %2307 = vmatprep.subr.mxu0 0.0
    %2308 = vmatpush1.msra.mxu0 %v798
    %2309 = vmatprep.subr.mxu0 0.0
    %2310 = vmatpush1.msra.mxu0 0.0
    %2311 = vmatprep.subr.mxu0 0.0
    %2312 = vmatpush1.msra.mxu0 0.0
    %2313 = vmatprep.subr.mxu0 0.0
    %2314 = vmatpush1.msra.mxu0 0.0
    %2315 = vmatprep.subr.mxu0 0.0
    %2316 = vmatpush1.msra.mxu0 0.0
    %2317 = vmatprep.subr.mxu0 0.0
    %2318 = vmatpush1.msra.mxu0 0.0
    %2319 = vmatprep.subr.mxu0 0.0
    %2320 = vmatpush1.msra.mxu0 0.0
    %2321 = vmatprep.subr.mxu0 0.0
    %2322 = vmatpush1.msra.mxu0 0.0
    %2323 = vmatprep.subr.mxu0 0.0
    %2324 = vmatpush1.msra.mxu0 0.0
    %2325 = vmatprep.subr.mxu0 0.0
    %2326 = vmatpush1.msra.mxu0 0.0
    %2327 = vmatprep.subr.mxu0 0.0
    %2328 = vmatpush1.msra.mxu0 0.0
    %2329 = vmatprep.subr.mxu0 0.0
    %2330 = vmatpush1.msra.mxu0 0.0
    %2331 = vmatprep.subr.mxu0 0.0
    %2332 = vmatpush1.msra.mxu0 0.0
    %2333 = vmatprep.subr.mxu0 0.0
    %2334 = vmatpush1.msra.mxu0 0.0
    %2335 = vmatprep.subr.mxu0 0.0
    %2336 = vmatpush1.msra.mxu0 0.0
    %2337 = vmatprep.subr.mxu0 0.0
    %2338 = vmatpush1.msra.mxu0 0.0
    %2339 = vmatprep.subr.mxu0 0.0
    %2340 = vmatpush1.msra.mxu0 0.0
    %2341 = vmatprep.subr.mxu0 0.0
    %2342 = vmatpush1.msra.mxu0 0.0
    %2343 = vmatprep.subr.mxu0 0.0
    %2344 = vmatpush1.msra.mxu0 0.0
    %2345 = vmatprep.subr.mxu0 0.0
    %2346 = vmatpush1.msra.mxu0 0.0
    %2347 = vmatprep.subr.mxu0 0.0
    %2348 = vmatpush1.msra.mxu0 0.0
    %2349 = vmatprep.subr.mxu0 0.0
    %2350 = vmatpush1.msra.mxu0 0.0
    %2351 = vmatprep.subr.mxu0 0.0
    %2352 = vmatpush1.msra.mxu0 0.0
    %2353 = vmatprep.subr.mxu0 0.0
    %2354 = vmatpush1.msra.mxu0 0.0
    %2355 = vmatprep.subr.mxu0 0.0
    %2356 = vmatpush1.msra.mxu0 0.0
    %2357 = vmatprep.subr.mxu0 0.0
    %2358 = vmatpush1.msra.mxu0 0.0
    %2359 = vmatprep.subr.mxu0 0.0
    %2360 = vmatpush1.msra.mxu0 0.0
    %2361 = vmatprep.subr.mxu0 0.0
    %2362 = vmatpush1.msra.mxu0 0.0
    %2363 = vmatprep.subr.mxu0 0.0
    %2364 = vmatpush1.msra.mxu0 0.0
    %2365 = vmatprep.mubr.f32.mxu0 0.0
    %2366 = vmatmul.mubr.f32.gmra.mrb[0].mxu0 %v2228
    %v2367 = vpop.f32.mrb[0].mxu0
    %v2368 = vadd.f32 0.0, %v2367
    %v2369 = vpop.f32.mrb[0].mxu0
    %2370 = vdwg.mxu0
    %v2371 = vadd.f32 %v2153, %v2297
    %v2372 = vxor.u32 %v2371, 2147483648
    %v2373 = vmul.f32 %v2372, 1.442695
    %v2374 = vpow.pop %v2373
    %v2375 = vadd.f32 %v2374, 1.0
    %v2376 = vrcp.pop %v2375
    %v2377 = vmul.f32 1.0, %v2376
    %v2378 = vadd.f32 %v2155, %v2299
    %v2379 = vxor.u32 %v2378, 2147483648
    %v2380 = vmul.f32 %v2379, 1.442695
    %v2381 = vpow.pop %v2380
    %v2382 = vadd.f32 %v2381, 1.0
    %v2383 = vrcp.pop %v2382
    %v2384 = vmul.f32 1.0, %v2383
    %v2385 = vadd.f32 %v2368, %v427
    %v2386 = vmul.f32 %v2377, %v2385
    %v2387 = vadd.f32 %v2224, %v2386
    %v2388 = vtanh.pop %v2387
    %v2389 = vsub.f32 1.0, %v2384
    %v2390 = vmul.f32 %v2389, %v2388
    %v2391 = vmul.f32 %v2384, %v1916
    %v2392 = vadd.f32 %v2390, %v2391
    %v2393 = vld [vmem:[#allocation2 + $0x60] sm:$0xff]
    %v2394 = vld [vmem:[#allocation2 + $0x68] sm:$0xff]
    %v2395 = vld [vmem:[#allocation2 + $0x70] sm:$0xff]
    %2396 = vmatprep.subr.mxu0 %v453
    %2397 = vmatpush1.msra.mxu0 %v452
    %2398 = vmatprep.subr.mxu0 %v456
    %2399 = vmatpush1.msra.mxu0 %v455
    %2400 = vmatprep.subr.mxu0 %v459
    %2401 = vmatpush1.msra.mxu0 %v458
    %2402 = vmatprep.subr.mxu0 %v462
    %2403 = vmatpush1.msra.mxu0 %v461
    %2404 = vmatprep.subr.mxu0 0.0
    %2405 = vmatpush1.msra.mxu0 0.0
    %2406 = vmatprep.subr.mxu0 0.0
    %2407 = vmatpush1.msra.mxu0 0.0
    %2408 = vmatprep.subr.mxu0 0.0
    %2409 = vmatpush1.msra.mxu0 0.0
    %2410 = vmatprep.subr.mxu0 0.0
    %2411 = vmatpush1.msra.mxu0 0.0
    %2412 = vmatprep.subr.mxu0 0.0
    %2413 = vmatpush1.msra.mxu0 0.0
    %2414 = vmatprep.subr.mxu0 0.0
    %2415 = vmatpush1.msra.mxu0 0.0
    %2416 = vmatprep.subr.mxu0 0.0
    %2417 = vmatpush1.msra.mxu0 0.0
    %2418 = vmatprep.subr.mxu0 0.0
    %2419 = vmatpush1.msra.mxu0 0.0
    %2420 = vmatprep.subr.mxu0 0.0
    %2421 = vmatpush1.msra.mxu0 0.0
    %2422 = vmatprep.subr.mxu0 0.0
    %2423 = vmatpush1.msra.mxu0 0.0
    %2424 = vmatprep.subr.mxu0 0.0
    %2425 = vmatpush1.msra.mxu0 0.0
    %2426 = vmatprep.subr.mxu0 0.0
    %2427 = vmatpush1.msra.mxu0 0.0
    %2428 = vmatprep.subr.mxu0 0.0
    %2429 = vmatpush1.msra.mxu0 0.0
    %2430 = vmatprep.subr.mxu0 0.0
    %2431 = vmatpush1.msra.mxu0 0.0
    %2432 = vmatprep.subr.mxu0 0.0
    %2433 = vmatpush1.msra.mxu0 0.0
    %2434 = vmatprep.subr.mxu0 0.0
    %2435 = vmatpush1.msra.mxu0 0.0
    %2436 = vmatprep.subr.mxu0 0.0
    %2437 = vmatpush1.msra.mxu0 0.0
    %2438 = vmatprep.subr.mxu0 0.0
    %2439 = vmatpush1.msra.mxu0 0.0
    %2440 = vmatprep.subr.mxu0 0.0
    %2441 = vmatpush1.msra.mxu0 0.0
    %2442 = vmatprep.subr.mxu0 0.0
    %2443 = vmatpush1.msra.mxu0 0.0
    %2444 = vmatprep.subr.mxu0 0.0
    %2445 = vmatpush1.msra.mxu0 0.0
    %2446 = vmatprep.subr.mxu0 0.0
    %2447 = vmatpush1.msra.mxu0 0.0
    %2448 = vmatprep.subr.mxu0 0.0
    %2449 = vmatpush1.msra.mxu0 0.0
    %2450 = vmatprep.subr.mxu0 0.0
    %2451 = vmatpush1.msra.mxu0 0.0
    %2452 = vmatprep.subr.mxu0 0.0
    %2453 = vmatpush1.msra.mxu0 0.0
    %2454 = vmatprep.subr.mxu0 0.0
    %2455 = vmatpush1.msra.mxu0 0.0
    %2456 = vmatprep.subr.mxu0 0.0
    %2457 = vmatpush1.msra.mxu0 0.0
    %2458 = vmatprep.subr.mxu0 0.0
    %2459 = vmatpush1.msra.mxu0 0.0
    %2460 = vmatprep.mubr.f32.mxu0 0.0
    %2461 = vmatmul.mubr.f32.gmra.mrb[0].mxu0 %v2084
    %v2462 = vpop.f32.mrb[0].mxu0
    %v2463 = vadd.f32 0.0, %v2462
    %v2464 = vpop.f32.mrb[0].mxu0
    %v2465 = vadd.f32 0.0, %v2464
    %2466 = vdwg.mxu0
    %2467 = vmatprep.subr.mxu0 0.0
    %2468 = vmatpush1.msra.mxu0 %v454
    %2469 = vmatprep.subr.mxu0 0.0
    %2470 = vmatpush1.msra.mxu0 %v457
    %2471 = vmatprep.subr.mxu0 0.0
    %2472 = vmatpush1.msra.mxu0 %v460
    %2473 = vmatprep.subr.mxu0 0.0
    %2474 = vmatpush1.msra.mxu0 %v463
    %2475 = vmatprep.subr.mxu0 0.0
    %2476 = vmatpush1.msra.mxu0 0.0
    %2477 = vmatprep.subr.mxu0 0.0
    %2478 = vmatpush1.msra.mxu0 0.0
    %2479 = vmatprep.subr.mxu0 0.0
    %2480 = vmatpush1.msra.mxu0 0.0
    %2481 = vmatprep.subr.mxu0 0.0
    %2482 = vmatpush1.msra.mxu0 0.0
    %2483 = vmatprep.subr.mxu0 0.0
    %2484 = vmatpush1.msra.mxu0 0.0
    %2485 = vmatprep.subr.mxu0 0.0
    %2486 = vmatpush1.msra.mxu0 0.0
    %2487 = vmatprep.subr.mxu0 0.0
    %2488 = vmatpush1.msra.mxu0 0.0
    %2489 = vmatprep.subr.mxu0 0.0
    %2490 = vmatpush1.msra.mxu0 0.0
    %2491 = vmatprep.subr.mxu0 0.0
    %2492 = vmatpush1.msra.mxu0 0.0
    %2493 = vmatprep.subr.mxu0 0.0
    %2494 = vmatpush1.msra.mxu0 0.0
    %2495 = vmatprep.subr.mxu0 0.0
    %2496 = vmatpush1.msra.mxu0 0.0
    %2497 = vmatprep.subr.mxu0 0.0
    %2498 = vmatpush1.msra.mxu0 0.0
    %2499 = vmatprep.subr.mxu0 0.0
    %2500 = vmatpush1.msra.mxu0 0.0
    %2501 = vmatprep.subr.mxu0 0.0
    %2502 = vmatpush1.msra.mxu0 0.0
    %2503 = vmatprep.subr.mxu0 0.0
    %2504 = vmatpush1.msra.mxu0 0.0
    %2505 = vmatprep.subr.mxu0 0.0
    %2506 = vmatpush1.msra.mxu0 0.0
    %2507 = vmatprep.subr.mxu0 0.0
    %2508 = vmatpush1.msra.mxu0 0.0
    %2509 = vmatprep.subr.mxu0 0.0
    %2510 = vmatpush1.msra.mxu0 0.0
    %2511 = vmatprep.subr.mxu0 0.0
    %2512 = vmatpush1.msra.mxu0 0.0
    %2513 = vmatprep.subr.mxu0 0.0
    %2514 = vmatpush1.msra.mxu0 0.0
    %2515 = vmatprep.subr.mxu0 0.0
    %2516 = vmatpush1.msra.mxu0 0.0
    %2517 = vmatprep.subr.mxu0 0.0
    %2518 = vmatpush1.msra.mxu0 0.0
    %2519 = vmatprep.subr.mxu0 0.0
    %2520 = vmatpush1.msra.mxu0 0.0
    %2521 = vmatprep.subr.mxu0 0.0
    %2522 = vmatpush1.msra.mxu0 0.0
    %2523 = vmatprep.subr.mxu0 0.0
    %2524 = vmatpush1.msra.mxu0 0.0
    %2525 = vmatprep.subr.mxu0 0.0
    %2526 = vmatpush1.msra.mxu0 0.0
    %2527 = vmatprep.subr.mxu0 0.0
    %2528 = vmatpush1.msra.mxu0 0.0
    %2529 = vmatprep.subr.mxu0 0.0
    %2530 = vmatpush1.msra.mxu0 0.0
    %2531 = vmatprep.mubr.f32.mxu0 0.0
    %2532 = vmatmul.mubr.f32.gmra.mrb[0].mxu0 %v2084
    %v2533 = vpop.f32.mrb[0].mxu0
    %v2534 = vadd.f32 0.0, %v2533
    %v2535 = vpop.f32.mrb[0].mxu0
    %2536 = vdwg.mxu0
    %v2537 = vadd.f32 %v2393, %v2463
    %v2538 = vxor.u32 %v2537, 2147483648
    %v2539 = vmul.f32 %v2538, 1.442695
    %v2540 = vpow.pop %v2539
    %v2541 = vadd.f32 %v2540, 1.0
    %v2542 = vrcp.pop %v2541
    %v2543 = vmul.f32 1.0, %v2542
    %v2544 = vadd.f32 %v2394, %v2465
    %v2545 = vxor.u32 %v2544, 2147483648
    %v2546 = vmul.f32 %v2545, 1.442695
    %v2547 = vpow.pop %v2546
    %v2548 = vadd.f32 %v2547, 1.0
    %v2549 = vrcp.pop %v2548
    %v2550 = vmul.f32 1.0, %v2549
    %v2551 = vadd.f32 %v2534, %v420
    %v2552 = vmul.f32 %v2543, %v2551
    %v2553 = vadd.f32 %v2395, %v2552
    %v2554 = vtanh.pop %v2553
    %v2555 = vsub.f32 1.0, %v2550
    %v2556 = vmul.f32 %v2555, %v2554
    %v2557 = vmul.f32 %v2550, %v2082
    %v2558 = vadd.f32 %v2556, %v2557
    %v2560 = vsel %vm464, %v2558, 0
    %2562 = vmatprep.subr.mxu0 %v632
    %2563 = vmatpush1.msra.mxu0 %v631
    %2564 = vmatprep.subr.mxu0 %v635
    %2565 = vmatpush1.msra.mxu0 %v634
    %2566 = vmatprep.subr.mxu0 %v638
    %2567 = vmatpush1.msra.mxu0 %v637
    %2568 = vmatprep.subr.mxu0 %v641
    %2569 = vmatpush1.msra.mxu0 %v640
    %2570 = vmatprep.subr.mxu0 0.0
    %2571 = vmatpush1.msra.mxu0 0.0
    %2572 = vmatprep.subr.mxu0 0.0
    %2573 = vmatpush1.msra.mxu0 0.0
    %2574 = vmatprep.subr.mxu0 0.0
    %2575 = vmatpush1.msra.mxu0 0.0
    %2576 = vmatprep.subr.mxu0 0.0
    %2577 = vmatpush1.msra.mxu0 0.0
    %2578 = vmatprep.subr.mxu0 0.0
    %2579 = vmatpush1.msra.mxu0 0.0
    %2580 = vmatprep.subr.mxu0 0.0
    %2581 = vmatpush1.msra.mxu0 0.0
    %2582 = vmatprep.subr.mxu0 0.0
    %2583 = vmatpush1.msra.mxu0 0.0
    %2584 = vmatprep.subr.mxu0 0.0
    %2585 = vmatpush1.msra.mxu0 0.0
    %2586 = vmatprep.subr.mxu0 0.0
    %2587 = vmatpush1.msra.mxu0 0.0
    %2588 = vmatprep.subr.mxu0 0.0
    %2589 = vmatpush1.msra.mxu0 0.0
    %2590 = vmatprep.subr.mxu0 0.0
    %2591 = vmatpush1.msra.mxu0 0.0
    %2592 = vmatprep.subr.mxu0 0.0
    %2593 = vmatpush1.msra.mxu0 0.0
    %2594 = vmatprep.subr.mxu0 0.0
    %2595 = vmatpush1.msra.mxu0 0.0
    %2596 = vmatprep.subr.mxu0 0.0
    %2597 = vmatpush1.msra.mxu0 0.0
    %2598 = vmatprep.subr.mxu0 0.0
    %2599 = vmatpush1.msra.mxu0 0.0
    %2600 = vmatprep.subr.mxu0 0.0
    %2601 = vmatpush1.msra.mxu0 0.0
    %2602 = vmatprep.subr.mxu0 0.0
    %2603 = vmatpush1.msra.mxu0 0.0
    %2604 = vmatprep.subr.mxu0 0.0
    %2605 = vmatpush1.msra.mxu0 0.0
    %2606 = vmatprep.subr.mxu0 0.0
    %2607 = vmatpush1.msra.mxu0 0.0
    %2608 = vmatprep.subr.mxu0 0.0
    %2609 = vmatpush1.msra.mxu0 0.0
    %2610 = vmatprep.subr.mxu0 0.0
    %2611 = vmatpush1.msra.mxu0 0.0
    %2612 = vmatprep.subr.mxu0 0.0
    %2613 = vmatpush1.msra.mxu0 0.0
    %2614 = vmatprep.subr.mxu0 0.0
    %2615 = vmatpush1.msra.mxu0 0.0
    %2616 = vmatprep.subr.mxu0 0.0
    %2617 = vmatpush1.msra.mxu0 0.0
    %2618 = vmatprep.subr.mxu0 0.0
    %2619 = vmatpush1.msra.mxu0 0.0
    %2620 = vmatprep.subr.mxu0 0.0
    %2621 = vmatpush1.msra.mxu0 0.0
    %2622 = vmatprep.subr.mxu0 0.0
    %2623 = vmatpush1.msra.mxu0 0.0
    %2624 = vmatprep.subr.mxu0 0.0
    %2625 = vmatpush1.msra.mxu0 0.0
    %2626 = vmatprep.mubr.f32.mxu0 0.0
    %2627 = vmatmul.mubr.f32.gmra.mrb[0].mxu0 %v2560
    %v2628 = vpop.f32.mrb[0].mxu0
    %v2629 = vadd.f32 %v434, %v2628
    %v2630 = vpop.f32.mrb[0].mxu0
    %v2631 = vadd.f32 %v438, %v2630
    %2632 = vdwg.mxu0
    %2633 = vmatprep.subr.mxu0 0.0
    %2634 = vmatpush1.msra.mxu0 %v633
    %2635 = vmatprep.subr.mxu0 0.0
    %2636 = vmatpush1.msra.mxu0 %v636
    %2637 = vmatprep.subr.mxu0 0.0
    %2638 = vmatpush1.msra.mxu0 %v639
    %2639 = vmatprep.subr.mxu0 0.0
    %2640 = vmatpush1.msra.mxu0 %v642
    %2641 = vmatprep.subr.mxu0 0.0
    %2642 = vmatpush1.msra.mxu0 0.0
    %2643 = vmatprep.subr.mxu0 0.0
    %2644 = vmatpush1.msra.mxu0 0.0
    %2645 = vmatprep.subr.mxu0 0.0
    %2646 = vmatpush1.msra.mxu0 0.0
    %2647 = vmatprep.subr.mxu0 0.0
    %2648 = vmatpush1.msra.mxu0 0.0
    %2649 = vmatprep.subr.mxu0 0.0
    %2650 = vmatpush1.msra.mxu0 0.0
    %2651 = vmatprep.subr.mxu0 0.0
    %2652 = vmatpush1.msra.mxu0 0.0
    %2653 = vmatprep.subr.mxu0 0.0
    %2654 = vmatpush1.msra.mxu0 0.0
    %2655 = vmatprep.subr.mxu0 0.0
    %2656 = vmatpush1.msra.mxu0 0.0
    %2657 = vmatprep.subr.mxu0 0.0
    %2658 = vmatpush1.msra.mxu0 0.0
    %2659 = vmatprep.subr.mxu0 0.0
    %2660 = vmatpush1.msra.mxu0 0.0
    %2661 = vmatprep.subr.mxu0 0.0
    %2662 = vmatpush1.msra.mxu0 0.0
    %2663 = vmatprep.subr.mxu0 0.0
    %2664 = vmatpush1.msra.mxu0 0.0
    %2665 = vmatprep.subr.mxu0 0.0
    %2666 = vmatpush1.msra.mxu0 0.0
    %2667 = vmatprep.subr.mxu0 0.0
    %2668 = vmatpush1.msra.mxu0 0.0
    %2669 = vmatprep.subr.mxu0 0.0
    %2670 = vmatpush1.msra.mxu0 0.0
    %2671 = vmatprep.subr.mxu0 0.0
    %2672 = vmatpush1.msra.mxu0 0.0
    %2673 = vmatprep.subr.mxu0 0.0
    %2674 = vmatpush1.msra.mxu0 0.0
    %2675 = vmatprep.subr.mxu0 0.0
    %2676 = vmatpush1.msra.mxu0 0.0
    %2677 = vmatprep.subr.mxu0 0.0
    %2678 = vmatpush1.msra.mxu0 0.0
    %2679 = vmatprep.subr.mxu0 0.0
    %2680 = vmatpush1.msra.mxu0 0.0
    %2681 = vmatprep.subr.mxu0 0.0
    %2682 = vmatpush1.msra.mxu0 0.0
    %2683 = vmatprep.subr.mxu0 0.0
    %2684 = vmatpush1.msra.mxu0 0.0
    %2685 = vmatprep.subr.mxu0 0.0
    %2686 = vmatpush1.msra.mxu0 0.0
    %2687 = vmatprep.subr.mxu0 0.0
    %2688 = vmatpush1.msra.mxu0 0.0
    %2689 = vmatprep.subr.mxu0 0.0
    %2690 = vmatpush1.msra.mxu0 0.0
    %2691 = vmatprep.subr.mxu0 0.0
    %2692 = vmatpush1.msra.mxu0 0.0
    %2693 = vmatprep.subr.mxu0 0.0
    %2694 = vmatpush1.msra.mxu0 0.0
    %2695 = vmatprep.subr.mxu0 0.0
    %2696 = vmatpush1.msra.mxu0 0.0
    %2697 = vmatprep.mubr.f32.mxu0 0.0
    %2698 = vmatmul.mubr.f32.gmra.mrb[0].mxu0 %v2560
    %v2699 = vpop.f32.mrb[0].mxu0
    %v2700 = vadd.f32 %v442, %v2699
    %v2701 = vpop.f32.mrb[0].mxu0
    %2702 = vdwg.mxu0
    %v2704 = vsel %vm464, %v2392, 0
    %2706 = vmatprep.subr.mxu0 %v788
    %2707 = vmatpush1.msra.mxu0 %v787
    %2708 = vmatprep.subr.mxu0 %v791
    %2709 = vmatpush1.msra.mxu0 %v790
    %2710 = vmatprep.subr.mxu0 %v794
    %2711 = vmatpush1.msra.mxu0 %v793
    %2712 = vmatprep.subr.mxu0 %v797
    %2713 = vmatpush1.msra.mxu0 %v796
    %2714 = vmatprep.subr.mxu0 0.0
    %2715 = vmatpush1.msra.mxu0 0.0
    %2716 = vmatprep.subr.mxu0 0.0
    %2717 = vmatpush1.msra.mxu0 0.0
    %2718 = vmatprep.subr.mxu0 0.0
    %2719 = vmatpush1.msra.mxu0 0.0
    %2720 = vmatprep.subr.mxu0 0.0
    %2721 = vmatpush1.msra.mxu0 0.0
    %2722 = vmatprep.subr.mxu0 0.0
    %2723 = vmatpush1.msra.mxu0 0.0
    %2724 = vmatprep.subr.mxu0 0.0
    %2725 = vmatpush1.msra.mxu0 0.0
    %2726 = vmatprep.subr.mxu0 0.0
    %2727 = vmatpush1.msra.mxu0 0.0
    %2728 = vmatprep.subr.mxu0 0.0
    %2729 = vmatpush1.msra.mxu0 0.0
    %2730 = vmatprep.subr.mxu0 0.0
    %2731 = vmatpush1.msra.mxu0 0.0
    %2732 = vmatprep.subr.mxu0 0.0
    %2733 = vmatpush1.msra.mxu0 0.0
    %2734 = vmatprep.subr.mxu0 0.0
    %2735 = vmatpush1.msra.mxu0 0.0
    %2736 = vmatprep.subr.mxu0 0.0
    %2737 = vmatpush1.msra.mxu0 0.0
    %2738 = vmatprep.subr.mxu0 0.0
    %2739 = vmatpush1.msra.mxu0 0.0
    %2740 = vmatprep.subr.mxu0 0.0
    %2741 = vmatpush1.msra.mxu0 0.0
    %2742 = vmatprep.subr.mxu0 0.0
    %2743 = vmatpush1.msra.mxu0 0.0
    %2744 = vmatprep.subr.mxu0 0.0
    %2745 = vmatpush1.msra.mxu0 0.0
    %2746 = vmatprep.subr.mxu0 0.0
    %2747 = vmatpush1.msra.mxu0 0.0
    %2748 = vmatprep.subr.mxu0 0.0
    %2749 = vmatpush1.msra.mxu0 0.0
    %2750 = vmatprep.subr.mxu0 0.0
    %2751 = vmatpush1.msra.mxu0 0.0
    %2752 = vmatprep.subr.mxu0 0.0
    %2753 = vmatpush1.msra.mxu0 0.0
    %2754 = vmatprep.subr.mxu0 0.0
    %2755 = vmatpush1.msra.mxu0 0.0
    %2756 = vmatprep.subr.mxu0 0.0
    %2757 = vmatpush1.msra.mxu0 0.0
    %2758 = vmatprep.subr.mxu0 0.0
    %2759 = vmatpush1.msra.mxu0 0.0
    %2760 = vmatprep.subr.mxu0 0.0
    %2761 = vmatpush1.msra.mxu0 0.0
    %2762 = vmatprep.subr.mxu0 0.0
    %2763 = vmatpush1.msra.mxu0 0.0
    %2764 = vmatprep.subr.mxu0 0.0
    %2765 = vmatpush1.msra.mxu0 0.0
    %2766 = vmatprep.subr.mxu0 0.0
    %2767 = vmatpush1.msra.mxu0 0.0
    %2768 = vmatprep.subr.mxu0 0.0
    %2769 = vmatpush1.msra.mxu0 0.0
    %2770 = vmatprep.mubr.f32.mxu0 0.0
    %2771 = vmatmul.mubr.f32.gmra.mrb[0].mxu0 %v2704
    %v2772 = vpop.f32.mrb[0].mxu0
    %v2773 = vadd.f32 0.0, %v2772
    %v2774 = vpop.f32.mrb[0].mxu0
    %v2775 = vadd.f32 0.0, %v2774
    %2776 = vdwg.mxu0
    %2777 = vmatprep.subr.mxu0 0.0
    %2778 = vmatpush1.msra.mxu0 %v789
    %2779 = vmatprep.subr.mxu0 0.0
    %2780 = vmatpush1.msra.mxu0 %v792
    %2781 = vmatprep.subr.mxu0 0.0
    %2782 = vmatpush1.msra.mxu0 %v795
    %2783 = vmatprep.subr.mxu0 0.0
    %2784 = vmatpush1.msra.mxu0 %v798
    %2785 = vmatprep.subr.mxu0 0.0
    %2786 = vmatpush1.msra.mxu0 0.0
    %2787 = vmatprep.subr.mxu0 0.0
    %2788 = vmatpush1.msra.mxu0 0.0
    %2789 = vmatprep.subr.mxu0 0.0
    %2790 = vmatpush1.msra.mxu0 0.0
    %2791 = vmatprep.subr.mxu0 0.0
    %2792 = vmatpush1.msra.mxu0 0.0
    %2793 = vmatprep.subr.mxu0 0.0
    %2794 = vmatpush1.msra.mxu0 0.0
    %2795 = vmatprep.subr.mxu0 0.0
    %2796 = vmatpush1.msra.mxu0 0.0
    %2797 = vmatprep.subr.mxu0 0.0
    %2798 = vmatpush1.msra.mxu0 0.0
    %2799 = vmatprep.subr.mxu0 0.0
    %2800 = vmatpush1.msra.mxu0 0.0
    %2801 = vmatprep.subr.mxu0 0.0
    %2802 = vmatpush1.msra.mxu0 0.0
    %2803 = vmatprep.subr.mxu0 0.0
    %2804 = vmatpush1.msra.mxu0 0.0
    %2805 = vmatprep.subr.mxu0 0.0
    %2806 = vmatpush1.msra.mxu0 0.0
    %2807 = vmatprep.subr.mxu0 0.0
    %2808 = vmatpush1.msra.mxu0 0.0
    %2809 = vmatprep.subr.mxu0 0.0
    %2810 = vmatpush1.msra.mxu0 0.0
    %2811 = vmatprep.subr.mxu0 0.0
    %2812 = vmatpush1.msra.mxu0 0.0
    %2813 = vmatprep.subr.mxu0 0.0
    %2814 = vmatpush1.msra.mxu0 0.0
    %2815 = vmatprep.subr.mxu0 0.0
    %2816 = vmatpush1.msra.mxu0 0.0
    %2817 = vmatprep.subr.mxu0 0.0
    %2818 = vmatpush1.msra.mxu0 0.0
    %2819 = vmatprep.subr.mxu0 0.0
    %2820 = vmatpush1.msra.mxu0 0.0
    %2821 = vmatprep.subr.mxu0 0.0
    %2822 = vmatpush1.msra.mxu0 0.0
    %2823 = vmatprep.subr.mxu0 0.0
    %2824 = vmatpush1.msra.mxu0 0.0
    %2825 = vmatprep.subr.mxu0 0.0
    %2826 = vmatpush1.msra.mxu0 0.0
    %2827 = vmatprep.subr.mxu0 0.0
    %2828 = vmatpush1.msra.mxu0 0.0
    %2829 = vmatprep.subr.mxu0 0.0
    %2830 = vmatpush1.msra.mxu0 0.0
    %2831 = vmatprep.subr.mxu0 0.0
    %2832 = vmatpush1.msra.mxu0 0.0
    %2833 = vmatprep.subr.mxu0 0.0
    %2834 = vmatpush1.msra.mxu0 0.0
    %2835 = vmatprep.subr.mxu0 0.0
    %2836 = vmatpush1.msra.mxu0 0.0
    %2837 = vmatprep.subr.mxu0 0.0
    %2838 = vmatpush1.msra.mxu0 0.0
    %2839 = vmatprep.subr.mxu0 0.0
    %2840 = vmatpush1.msra.mxu0 0.0
    %2841 = vmatprep.mubr.f32.mxu0 0.0
    %2842 = vmatmul.mubr.f32.gmra.mrb[0].mxu0 %v2704
    %v2843 = vpop.f32.mrb[0].mxu0
    %v2844 = vadd.f32 0.0, %v2843
    %v2845 = vpop.f32.mrb[0].mxu0
    %2846 = vdwg.mxu0
    %v2847 = vadd.f32 %v2629, %v2773
    %v2848 = vxor.u32 %v2847, 2147483648
    %v2849 = vmul.f32 %v2848, 1.442695
    %v2850 = vpow.pop %v2849
    %v2851 = vadd.f32 %v2850, 1.0
    %v2852 = vrcp.pop %v2851
    %v2853 = vmul.f32 1.0, %v2852
    %v2854 = vadd.f32 %v2631, %v2775
    %v2855 = vxor.u32 %v2854, 2147483648
    %v2856 = vmul.f32 %v2855, 1.442695
    %v2857 = vpow.pop %v2856
    %v2858 = vadd.f32 %v2857, 1.0
    %v2859 = vrcp.pop %v2858
    %v2860 = vmul.f32 1.0, %v2859
    %v2861 = vadd.f32 %v2844, %v427
    %v2862 = vmul.f32 %v2853, %v2861
    %v2863 = vadd.f32 %v2700, %v2862
    %v2864 = vtanh.pop %v2863
    %v2865 = vsub.f32 1.0, %v2860
    %v2866 = vmul.f32 %v2865, %v2864
    %v2867 = vmul.f32 %v2860, %v2392
    %v2868 = vadd.f32 %v2866, %v2867
    %v2869 = vld [vmem:[#allocation2 + $0x78] sm:$0xff]
    %v2870 = vld [vmem:[#allocation2 + $0x80] sm:$0xff]
    %v2871 = vld [vmem:[#allocation2 + $0x88] sm:$0xff]
    %2872 = vmatprep.subr.mxu0 %v453
    %2873 = vmatpush1.msra.mxu0 %v452
    %2874 = vmatprep.subr.mxu0 %v456
    %2875 = vmatpush1.msra.mxu0 %v455
    %2876 = vmatprep.subr.mxu0 %v459
    %2877 = vmatpush1.msra.mxu0 %v458
    %2878 = vmatprep.subr.mxu0 %v462
    %2879 = vmatpush1.msra.mxu0 %v461
    %2880 = vmatprep.subr.mxu0 0.0
    %2881 = vmatpush1.msra.mxu0 0.0
    %2882 = vmatprep.subr.mxu0 0.0
    %2883 = vmatpush1.msra.mxu0 0.0
    %2884 = vmatprep.subr.mxu0 0.0
    %2885 = vmatpush1.msra.mxu0 0.0
    %2886 = vmatprep.subr.mxu0 0.0
    %2887 = vmatpush1.msra.mxu0 0.0
    %2888 = vmatprep.subr.mxu0 0.0
    %2889 = vmatpush1.msra.mxu0 0.0
    %2890 = vmatprep.subr.mxu0 0.0
    %2891 = vmatpush1.msra.mxu0 0.0
    %2892 = vmatprep.subr.mxu0 0.0
    %2893 = vmatpush1.msra.mxu0 0.0
    %2894 = vmatprep.subr.mxu0 0.0
    %2895 = vmatpush1.msra.mxu0 0.0
    %2896 = vmatprep.subr.mxu0 0.0
    %2897 = vmatpush1.msra.mxu0 0.0
    %2898 = vmatprep.subr.mxu0 0.0
    %2899 = vmatpush1.msra.mxu0 0.0
    %2900 = vmatprep.subr.mxu0 0.0
    %2901 = vmatpush1.msra.mxu0 0.0
    %2902 = vmatprep.subr.mxu0 0.0
    %2903 = vmatpush1.msra.mxu0 0.0
    %2904 = vmatprep.subr.mxu0 0.0
    %2905 = vmatpush1.msra.mxu0 0.0
    %2906 = vmatprep.subr.mxu0 0.0
    %2907 = vmatpush1.msra.mxu0 0.0
    %2908 = vmatprep.subr.mxu0 0.0
    %2909 = vmatpush1.msra.mxu0 0.0
    %2910 = vmatprep.subr.mxu0 0.0
    %2911 = vmatpush1.msra.mxu0 0.0
    %2912 = vmatprep.subr.mxu0 0.0
    %2913 = vmatpush1.msra.mxu0 0.0
    %2914 = vmatprep.subr.mxu0 0.0
    %2915 = vmatpush1.msra.mxu0 0.0
    %2916 = vmatprep.subr.mxu0 0.0
    %2917 = vmatpush1.msra.mxu0 0.0
    %2918 = vmatprep.subr.mxu0 0.0
    %2919 = vmatpush1.msra.mxu0 0.0
    %2920 = vmatprep.subr.mxu0 0.0
    %2921 = vmatpush1.msra.mxu0 0.0
    %2922 = vmatprep.subr.mxu0 0.0
    %2923 = vmatpush1.msra.mxu0 0.0
    %2924 = vmatprep.subr.mxu0 0.0
    %2925 = vmatpush1.msra.mxu0 0.0
    %2926 = vmatprep.subr.mxu0 0.0
    %2927 = vmatpush1.msra.mxu0 0.0
    %2928 = vmatprep.subr.mxu0 0.0
    %2929 = vmatpush1.msra.mxu0 0.0
    %2930 = vmatprep.subr.mxu0 0.0
    %2931 = vmatpush1.msra.mxu0 0.0
    %2932 = vmatprep.subr.mxu0 0.0
    %2933 = vmatpush1.msra.mxu0 0.0
    %2934 = vmatprep.subr.mxu0 0.0
    %2935 = vmatpush1.msra.mxu0 0.0
    %2936 = vmatprep.mubr.f32.mxu0 0.0
    %2937 = vmatmul.mubr.f32.gmra.mrb[0].mxu0 %v2560
    %v2938 = vpop.f32.mrb[0].mxu0
    %v2939 = vadd.f32 0.0, %v2938
    %v2940 = vpop.f32.mrb[0].mxu0
    %v2941 = vadd.f32 0.0, %v2940
    %2942 = vdwg.mxu0
    %2943 = vmatprep.subr.mxu0 0.0
    %2944 = vmatpush1.msra.mxu0 %v454
    %2945 = vmatprep.subr.mxu0 0.0
    %2946 = vmatpush1.msra.mxu0 %v457
    %2947 = vmatprep.subr.mxu0 0.0
    %2948 = vmatpush1.msra.mxu0 %v460
    %2949 = vmatprep.subr.mxu0 0.0
    %2950 = vmatpush1.msra.mxu0 %v463
    %2951 = vmatprep.subr.mxu0 0.0
    %2952 = vmatpush1.msra.mxu0 0.0
    %2953 = vmatprep.subr.mxu0 0.0
    %2954 = vmatpush1.msra.mxu0 0.0
    %2955 = vmatprep.subr.mxu0 0.0
    %2956 = vmatpush1.msra.mxu0 0.0
    %2957 = vmatprep.subr.mxu0 0.0
    %2958 = vmatpush1.msra.mxu0 0.0
    %2959 = vmatprep.subr.mxu0 0.0
    %2960 = vmatpush1.msra.mxu0 0.0
    %2961 = vmatprep.subr.mxu0 0.0
    %2962 = vmatpush1.msra.mxu0 0.0
    %2963 = vmatprep.subr.mxu0 0.0
    %2964 = vmatpush1.msra.mxu0 0.0
    %2965 = vmatprep.subr.mxu0 0.0
    %2966 = vmatpush1.msra.mxu0 0.0
    %2967 = vmatprep.subr.mxu0 0.0
    %2968 = vmatpush1.msra.mxu0 0.0
    %2969 = vmatprep.subr.mxu0 0.0
    %2970 = vmatpush1.msra.mxu0 0.0
    %2971 = vmatprep.subr.mxu0 0.0
    %2972 = vmatpush1.msra.mxu0 0.0
    %2973 = vmatprep.subr.mxu0 0.0
    %2974 = vmatpush1.msra.mxu0 0.0
    %2975 = vmatprep.subr.mxu0 0.0
    %2976 = vmatpush1.msra.mxu0 0.0
    %2977 = vmatprep.subr.mxu0 0.0
    %2978 = vmatpush1.msra.mxu0 0.0
    %2979 = vmatprep.subr.mxu0 0.0
    %2980 = vmatpush1.msra.mxu0 0.0
    %2981 = vmatprep.subr.mxu0 0.0
    %2982 = vmatpush1.msra.mxu0 0.0
    %2983 = vmatprep.subr.mxu0 0.0
    %2984 = vmatpush1.msra.mxu0 0.0
    %2985 = vmatprep.subr.mxu0 0.0
    %2986 = vmatpush1.msra.mxu0 0.0
    %2987 = vmatprep.subr.mxu0 0.0
    %2988 = vmatpush1.msra.mxu0 0.0
    %2989 = vmatprep.subr.mxu0 0.0
    %2990 = vmatpush1.msra.mxu0 0.0
    %2991 = vmatprep.subr.mxu0 0.0
    %2992 = vmatpush1.msra.mxu0 0.0
    %2993 = vmatprep.subr.mxu0 0.0
    %2994 = vmatpush1.msra.mxu0 0.0
    %2995 = vmatprep.subr.mxu0 0.0
    %2996 = vmatpush1.msra.mxu0 0.0
    %2997 = vmatprep.subr.mxu0 0.0
    %2998 = vmatpush1.msra.mxu0 0.0
    %2999 = vmatprep.subr.mxu0 0.0
    %3000 = vmatpush1.msra.mxu0 0.0
    %3001 = vmatprep.subr.mxu0 0.0
    %3002 = vmatpush1.msra.mxu0 0.0
    %3003 = vmatprep.subr.mxu0 0.0
    %3004 = vmatpush1.msra.mxu0 0.0
    %3005 = vmatprep.subr.mxu0 0.0
    %3006 = vmatpush1.msra.mxu0 0.0
    %3007 = vmatprep.mubr.f32.mxu0 0.0
    %3008 = vmatmul.mubr.f32.gmra.mrb[0].mxu0 %v2560
    %v3009 = vpop.f32.mrb[0].mxu0
    %v3010 = vadd.f32 0.0, %v3009
    %v3011 = vpop.f32.mrb[0].mxu0
    %3012 = vdwg.mxu0
    %v3013 = vadd.f32 %v2869, %v2939
    %v3014 = vxor.u32 %v3013, 2147483648
    %v3015 = vmul.f32 %v3014, 1.442695
    %v3016 = vpow.pop %v3015
    %v3017 = vadd.f32 %v3016, 1.0
    %v3018 = vrcp.pop %v3017
    %v3019 = vmul.f32 1.0, %v3018
    %v3020 = vadd.f32 %v2870, %v2941
    %v3021 = vxor.u32 %v3020, 2147483648
    %v3022 = vmul.f32 %v3021, 1.442695
    %v3023 = vpow.pop %v3022
    %v3024 = vadd.f32 %v3023, 1.0
    %v3025 = vrcp.pop %v3024
    %v3026 = vmul.f32 1.0, %v3025
    %v3027 = vadd.f32 %v3010, %v420
    %v3028 = vmul.f32 %v3019, %v3027
    %v3029 = vadd.f32 %v2871, %v3028
    %v3030 = vtanh.pop %v3029
    %v3031 = vsub.f32 1.0, %v3026
    %v3032 = vmul.f32 %v3031, %v3030
    %v3033 = vmul.f32 %v3026, %v2558
    %v3034 = vadd.f32 %v3032, %v3033
    %v3036 = vsel %vm464, %v3034, 0
    %3038 = vmatprep.subr.mxu0 %v632
    %3039 = vmatpush1.msra.mxu0 %v631
    %3040 = vmatprep.subr.mxu0 %v635
    %3041 = vmatpush1.msra.mxu0 %v634
    %3042 = vmatprep.subr.mxu0 %v638
    %3043 = vmatpush1.msra.mxu0 %v637
    %3044 = vmatprep.subr.mxu0 %v641
    %3045 = vmatpush1.msra.mxu0 %v640
    %3046 = vmatprep.subr.mxu0 0.0
    %3047 = vmatpush1.msra.mxu0 0.0
    %3048 = vmatprep.subr.mxu0 0.0
    %3049 = vmatpush1.msra.mxu0 0.0
    %3050 = vmatprep.subr.mxu0 0.0
    %3051 = vmatpush1.msra.mxu0 0.0
    %3052 = vmatprep.subr.mxu0 0.0
    %3053 = vmatpush1.msra.mxu0 0.0
    %3054 = vmatprep.subr.mxu0 0.0
    %3055 = vmatpush1.msra.mxu0 0.0
    %3056 = vmatprep.subr.mxu0 0.0
    %3057 = vmatpush1.msra.mxu0 0.0
    %3058 = vmatprep.subr.mxu0 0.0
    %3059 = vmatpush1.msra.mxu0 0.0
    %3060 = vmatprep.subr.mxu0 0.0
    %3061 = vmatpush1.msra.mxu0 0.0
    %3062 = vmatprep.subr.mxu0 0.0
    %3063 = vmatpush1.msra.mxu0 0.0
    %3064 = vmatprep.subr.mxu0 0.0
    %3065 = vmatpush1.msra.mxu0 0.0
    %3066 = vmatprep.subr.mxu0 0.0
    %3067 = vmatpush1.msra.mxu0 0.0
    %3068 = vmatprep.subr.mxu0 0.0
    %3069 = vmatpush1.msra.mxu0 0.0
    %3070 = vmatprep.subr.mxu0 0.0
    %3071 = vmatpush1.msra.mxu0 0.0
    %3072 = vmatprep.subr.mxu0 0.0
    %3073 = vmatpush1.msra.mxu0 0.0
    %3074 = vmatprep.subr.mxu0 0.0
    %3075 = vmatpush1.msra.mxu0 0.0
    %3076 = vmatprep.subr.mxu0 0.0
    %3077 = vmatpush1.msra.mxu0 0.0
    %3078 = vmatprep.subr.mxu0 0.0
    %3079 = vmatpush1.msra.mxu0 0.0
    %3080 = vmatprep.subr.mxu0 0.0
    %3081 = vmatpush1.msra.mxu0 0.0
    %3082 = vmatprep.subr.mxu0 0.0
    %3083 = vmatpush1.msra.mxu0 0.0
    %3084 = vmatprep.subr.mxu0 0.0
    %3085 = vmatpush1.msra.mxu0 0.0
    %3086 = vmatprep.subr.mxu0 0.0
    %3087 = vmatpush1.msra.mxu0 0.0
    %3088 = vmatprep.subr.mxu0 0.0
    %3089 = vmatpush1.msra.mxu0 0.0
    %3090 = vmatprep.subr.mxu0 0.0
    %3091 = vmatpush1.msra.mxu0 0.0
    %3092 = vmatprep.subr.mxu0 0.0
    %3093 = vmatpush1.msra.mxu0 0.0
    %3094 = vmatprep.subr.mxu0 0.0
    %3095 = vmatpush1.msra.mxu0 0.0
    %3096 = vmatprep.subr.mxu0 0.0
    %3097 = vmatpush1.msra.mxu0 0.0
    %3098 = vmatprep.subr.mxu0 0.0
    %3099 = vmatpush1.msra.mxu0 0.0
    %3100 = vmatprep.subr.mxu0 0.0
    %3101 = vmatpush1.msra.mxu0 0.0
    %3102 = vmatprep.mubr.f32.mxu0 0.0
    %3103 = vmatmul.mubr.f32.gmra.mrb[0].mxu0 %v3036
    %v3104 = vpop.f32.mrb[0].mxu0
    %v3105 = vadd.f32 %v434, %v3104
    %v3106 = vpop.f32.mrb[0].mxu0
    %v3107 = vadd.f32 %v438, %v3106
    %3108 = vdwg.mxu0
    %3109 = vmatprep.subr.mxu0 0.0
    %3110 = vmatpush1.msra.mxu0 %v633
    %3111 = vmatprep.subr.mxu0 0.0
    %3112 = vmatpush1.msra.mxu0 %v636
    %3113 = vmatprep.subr.mxu0 0.0
    %3114 = vmatpush1.msra.mxu0 %v639
    %3115 = vmatprep.subr.mxu0 0.0
    %3116 = vmatpush1.msra.mxu0 %v642
    %3117 = vmatprep.subr.mxu0 0.0
    %3118 = vmatpush1.msra.mxu0 0.0
    %3119 = vmatprep.subr.mxu0 0.0
    %3120 = vmatpush1.msra.mxu0 0.0
    %3121 = vmatprep.subr.mxu0 0.0
    %3122 = vmatpush1.msra.mxu0 0.0
    %3123 = vmatprep.subr.mxu0 0.0
    %3124 = vmatpush1.msra.mxu0 0.0
    %3125 = vmatprep.subr.mxu0 0.0
    %3126 = vmatpush1.msra.mxu0 0.0
    %3127 = vmatprep.subr.mxu0 0.0
    %3128 = vmatpush1.msra.mxu0 0.0
    %3129 = vmatprep.subr.mxu0 0.0
    %3130 = vmatpush1.msra.mxu0 0.0
    %3131 = vmatprep.subr.mxu0 0.0
    %3132 = vmatpush1.msra.mxu0 0.0
    %3133 = vmatprep.subr.mxu0 0.0
    %3134 = vmatpush1.msra.mxu0 0.0
    %3135 = vmatprep.subr.mxu0 0.0
    %3136 = vmatpush1.msra.mxu0 0.0
    %3137 = vmatprep.subr.mxu0 0.0
    %3138 = vmatpush1.msra.mxu0 0.0
    %3139 = vmatprep.subr.mxu0 0.0
    %3140 = vmatpush1.msra.mxu0 0.0
    %3141 = vmatprep.subr.mxu0 0.0
    %3142 = vmatpush1.msra.mxu0 0.0
    %3143 = vmatprep.subr.mxu0 0.0
    %3144 = vmatpush1.msra.mxu0 0.0
    %3145 = vmatprep.subr.mxu0 0.0
    %3146 = vmatpush1.msra.mxu0 0.0
    %3147 = vmatprep.subr.mxu0 0.0
    %3148 = vmatpush1.msra.mxu0 0.0
    %3149 = vmatprep.subr.mxu0 0.0
    %3150 = vmatpush1.msra.mxu0 0.0
    %3151 = vmatprep.subr.mxu0 0.0
    %3152 = vmatpush1.msra.mxu0 0.0
    %3153 = vmatprep.subr.mxu0 0.0
    %3154 = vmatpush1.msra.mxu0 0.0
    %3155 = vmatprep.subr.mxu0 0.0
    %3156 = vmatpush1.msra.mxu0 0.0
    %3157 = vmatprep.subr.mxu0 0.0
    %3158 = vmatpush1.msra.mxu0 0.0
    %3159 = vmatprep.subr.mxu0 0.0
    %3160 = vmatpush1.msra.mxu0 0.0
    %3161 = vmatprep.subr.mxu0 0.0
    %3162 = vmatpush1.msra.mxu0 0.0
    %3163 = vmatprep.subr.mxu0 0.0
    %3164 = vmatpush1.msra.mxu0 0.0
    %3165 = vmatprep.subr.mxu0 0.0
    %3166 = vmatpush1.msra.mxu0 0.0
    %3167 = vmatprep.subr.mxu0 0.0
    %3168 = vmatpush1.msra.mxu0 0.0
    %3169 = vmatprep.subr.mxu0 0.0
    %3170 = vmatpush1.msra.mxu0 0.0
    %3171 = vmatprep.subr.mxu0 0.0
    %3172 = vmatpush1.msra.mxu0 0.0
    %3173 = vmatprep.mubr.f32.mxu0 0.0
    %3174 = vmatmul.mubr.f32.gmra.mrb[0].mxu0 %v3036
    %v3175 = vpop.f32.mrb[0].mxu0
    %v3176 = vadd.f32 %v442, %v3175
    %v3177 = vpop.f32.mrb[0].mxu0
    %3178 = vdwg.mxu0
    %v3180 = vsel %vm464, %v2868, 0
    %3182 = vmatprep.subr.mxu0 %v788
    %3183 = vmatpush1.msra.mxu0 %v787
    %3184 = vmatprep.subr.mxu0 %v791
    %3185 = vmatpush1.msra.mxu0 %v790
    %3186 = vmatprep.subr.mxu0 %v794
    %3187 = vmatpush1.msra.mxu0 %v793
    %3188 = vmatprep.subr.mxu0 %v797
    %3189 = vmatpush1.msra.mxu0 %v796
    %3190 = vmatprep.subr.mxu0 0.0
    %3191 = vmatpush1.msra.mxu0 0.0
    %3192 = vmatprep.subr.mxu0 0.0
    %3193 = vmatpush1.msra.mxu0 0.0
    %3194 = vmatprep.subr.mxu0 0.0
    %3195 = vmatpush1.msra.mxu0 0.0
    %3196 = vmatprep.subr.mxu0 0.0
    %3197 = vmatpush1.msra.mxu0 0.0
    %3198 = vmatprep.subr.mxu0 0.0
    %3199 = vmatpush1.msra.mxu0 0.0
    %3200 = vmatprep.subr.mxu0 0.0
    %3201 = vmatpush1.msra.mxu0 0.0
    %3202 = vmatprep.subr.mxu0 0.0
    %3203 = vmatpush1.msra.mxu0 0.0
    %3204 = vmatprep.subr.mxu0 0.0
    %3205 = vmatpush1.msra.mxu0 0.0
    %3206 = vmatprep.subr.mxu0 0.0
    %3207 = vmatpush1.msra.mxu0 0.0
    %3208 = vmatprep.subr.mxu0 0.0
    %3209 = vmatpush1.msra.mxu0 0.0
    %3210 = vmatprep.subr.mxu0 0.0
    %3211 = vmatpush1.msra.mxu0 0.0
    %3212 = vmatprep.subr.mxu0 0.0
    %3213 = vmatpush1.msra.mxu0 0.0
    %3214 = vmatprep.subr.mxu0 0.0
    %3215 = vmatpush1.msra.mxu0 0.0
    %3216 = vmatprep.subr.mxu0 0.0
    %3217 = vmatpush1.msra.mxu0 0.0
    %3218 = vmatprep.subr.mxu0 0.0
    %3219 = vmatpush1.msra.mxu0 0.0
    %3220 = vmatprep.subr.mxu0 0.0
    %3221 = vmatpush1.msra.mxu0 0.0
    %3222 = vmatprep.subr.mxu0 0.0
    %3223 = vmatpush1.msra.mxu0 0.0
    %3224 = vmatprep.subr.mxu0 0.0
    %3225 = vmatpush1.msra.mxu0 0.0
    %3226 = vmatprep.subr.mxu0 0.0
    %3227 = vmatpush1.msra.mxu0 0.0
    %3228 = vmatprep.subr.mxu0 0.0
    %3229 = vmatpush1.msra.mxu0 0.0
    %3230 = vmatprep.subr.mxu0 0.0
    %3231 = vmatpush1.msra.mxu0 0.0
    %3232 = vmatprep.subr.mxu0 0.0
    %3233 = vmatpush1.msra.mxu0 0.0
    %3234 = vmatprep.subr.mxu0 0.0
    %3235 = vmatpush1.msra.mxu0 0.0
    %3236 = vmatprep.subr.mxu0 0.0
    %3237 = vmatpush1.msra.mxu0 0.0
    %3238 = vmatprep.subr.mxu0 0.0
    %3239 = vmatpush1.msra.mxu0 0.0
    %3240 = vmatprep.subr.mxu0 0.0
    %3241 = vmatpush1.msra.mxu0 0.0
    %3242 = vmatprep.subr.mxu0 0.0
    %3243 = vmatpush1.msra.mxu0 0.0
    %3244 = vmatprep.subr.mxu0 0.0
    %3245 = vmatpush1.msra.mxu0 0.0
    %3246 = vmatprep.mubr.f32.mxu0 0.0
    %3247 = vmatmul.mubr.f32.gmra.mrb[0].mxu0 %v3180
    %v3248 = vpop.f32.mrb[0].mxu0
    %v3249 = vadd.f32 0.0, %v3248
    %v3250 = vpop.f32.mrb[0].mxu0
    %v3251 = vadd.f32 0.0, %v3250
    %3252 = vdwg.mxu0
    %3253 = vmatprep.subr.mxu0 0.0
    %3254 = vmatpush1.msra.mxu0 %v789
    %3255 = vmatprep.subr.mxu0 0.0
    %3256 = vmatpush1.msra.mxu0 %v792
    %3257 = vmatprep.subr.mxu0 0.0
    %3258 = vmatpush1.msra.mxu0 %v795
    %3259 = vmatprep.subr.mxu0 0.0
    %3260 = vmatpush1.msra.mxu0 %v798
    %3261 = vmatprep.subr.mxu0 0.0
    %3262 = vmatpush1.msra.mxu0 0.0
    %3263 = vmatprep.subr.mxu0 0.0
    %3264 = vmatpush1.msra.mxu0 0.0
    %3265 = vmatprep.subr.mxu0 0.0
    %3266 = vmatpush1.msra.mxu0 0.0
    %3267 = vmatprep.subr.mxu0 0.0
    %3268 = vmatpush1.msra.mxu0 0.0
    %3269 = vmatprep.subr.mxu0 0.0
    %3270 = vmatpush1.msra.mxu0 0.0
    %3271 = vmatprep.subr.mxu0 0.0
    %3272 = vmatpush1.msra.mxu0 0.0
    %3273 = vmatprep.subr.mxu0 0.0
    %3274 = vmatpush1.msra.mxu0 0.0
    %3275 = vmatprep.subr.mxu0 0.0
    %3276 = vmatpush1.msra.mxu0 0.0
    %3277 = vmatprep.subr.mxu0 0.0
    %3278 = vmatpush1.msra.mxu0 0.0
    %3279 = vmatprep.subr.mxu0 0.0
    %3280 = vmatpush1.msra.mxu0 0.0
    %3281 = vmatprep.subr.mxu0 0.0
    %3282 = vmatpush1.msra.mxu0 0.0
    %3283 = vmatprep.subr.mxu0 0.0
    %3284 = vmatpush1.msra.mxu0 0.0
    %3285 = vmatprep.subr.mxu0 0.0
    %3286 = vmatpush1.msra.mxu0 0.0
    %3287 = vmatprep.subr.mxu0 0.0
    %3288 = vmatpush1.msra.mxu0 0.0
    %3289 = vmatprep.subr.mxu0 0.0
    %3290 = vmatpush1.msra.mxu0 0.0
    %3291 = vmatprep.subr.mxu0 0.0
    %3292 = vmatpush1.msra.mxu0 0.0
    %3293 = vmatprep.subr.mxu0 0.0
    %3294 = vmatpush1.msra.mxu0 0.0
    %3295 = vmatprep.subr.mxu0 0.0
    %3296 = vmatpush1.msra.mxu0 0.0
    %3297 = vmatprep.subr.mxu0 0.0
    %3298 = vmatpush1.msra.mxu0 0.0
    %3299 = vmatprep.subr.mxu0 0.0
    %3300 = vmatpush1.msra.mxu0 0.0
    %3301 = vmatprep.subr.mxu0 0.0
    %3302 = vmatpush1.msra.mxu0 0.0
    %3303 = vmatprep.subr.mxu0 0.0
    %3304 = vmatpush1.msra.mxu0 0.0
    %3305 = vmatprep.subr.mxu0 0.0
    %3306 = vmatpush1.msra.mxu0 0.0
    %3307 = vmatprep.subr.mxu0 0.0
    %3308 = vmatpush1.msra.mxu0 0.0
    %3309 = vmatprep.subr.mxu0 0.0
    %3310 = vmatpush1.msra.mxu0 0.0
    %3311 = vmatprep.subr.mxu0 0.0
    %3312 = vmatpush1.msra.mxu0 0.0
    %3313 = vmatprep.subr.mxu0 0.0
    %3314 = vmatpush1.msra.mxu0 0.0
    %3315 = vmatprep.subr.mxu0 0.0
    %3316 = vmatpush1.msra.mxu0 0.0
    %3317 = vmatprep.mubr.f32.mxu0 0.0
    %3318 = vmatmul.mubr.f32.gmra.mrb[0].mxu0 %v3180
    %v3319 = vpop.f32.mrb[0].mxu0
    %v3320 = vadd.f32 0.0, %v3319
    %v3321 = vpop.f32.mrb[0].mxu0
    %3322 = vdwg.mxu0
    %v3323 = vadd.f32 %v3105, %v3249
    %v3324 = vxor.u32 %v3323, 2147483648
    %v3325 = vmul.f32 %v3324, 1.442695
    %v3326 = vpow.pop %v3325
    %v3327 = vadd.f32 %v3326, 1.0
    %v3328 = vrcp.pop %v3327
    %v3329 = vmul.f32 1.0, %v3328
    %v3330 = vadd.f32 %v3107, %v3251
    %v3331 = vxor.u32 %v3330, 2147483648
    %v3332 = vmul.f32 %v3331, 1.442695
    %v3333 = vpow.pop %v3332
    %v3334 = vadd.f32 %v3333, 1.0
    %v3335 = vrcp.pop %v3334
    %v3336 = vmul.f32 1.0, %v3335
    %v3337 = vadd.f32 %v3320, %v427
    %v3338 = vmul.f32 %v3329, %v3337
    %v3339 = vadd.f32 %v3176, %v3338
    %v3340 = vtanh.pop %v3339
    %v3341 = vsub.f32 1.0, %v3336
    %v3342 = vmul.f32 %v3341, %v3340
    %v3343 = vmul.f32 %v3336, %v2868
    %v3344 = vadd.f32 %v3342, %v3343
    %v3345 = vld [vmem:[#allocation2 + $0x90] sm:$0xff]
    %v3346 = vld [vmem:[#allocation2 + $0x98] sm:$0xff]
    %v3347 = vld [vmem:[#allocation2 + $0xa0] sm:$0xff]
    %3348 = vmatprep.subr.mxu0 %v453
    %3349 = vmatpush1.msra.mxu0 %v452
    %3350 = vmatprep.subr.mxu0 %v456
    %3351 = vmatpush1.msra.mxu0 %v455
    %3352 = vmatprep.subr.mxu0 %v459
    %3353 = vmatpush1.msra.mxu0 %v458
    %3354 = vmatprep.subr.mxu0 %v462
    %3355 = vmatpush1.msra.mxu0 %v461
    %3356 = vmatprep.subr.mxu0 0.0
    %3357 = vmatpush1.msra.mxu0 0.0
    %3358 = vmatprep.subr.mxu0 0.0
    %3359 = vmatpush1.msra.mxu0 0.0
    %3360 = vmatprep.subr.mxu0 0.0
    %3361 = vmatpush1.msra.mxu0 0.0
    %3362 = vmatprep.subr.mxu0 0.0
    %3363 = vmatpush1.msra.mxu0 0.0
    %3364 = vmatprep.subr.mxu0 0.0
    %3365 = vmatpush1.msra.mxu0 0.0
    %3366 = vmatprep.subr.mxu0 0.0
    %3367 = vmatpush1.msra.mxu0 0.0
    %3368 = vmatprep.subr.mxu0 0.0
    %3369 = vmatpush1.msra.mxu0 0.0
    %3370 = vmatprep.subr.mxu0 0.0
    %3371 = vmatpush1.msra.mxu0 0.0
    %3372 = vmatprep.subr.mxu0 0.0
    %3373 = vmatpush1.msra.mxu0 0.0
    %3374 = vmatprep.subr.mxu0 0.0
    %3375 = vmatpush1.msra.mxu0 0.0
    %3376 = vmatprep.subr.mxu0 0.0
    %3377 = vmatpush1.msra.mxu0 0.0
    %3378 = vmatprep.subr.mxu0 0.0
    %3379 = vmatpush1.msra.mxu0 0.0
    %3380 = vmatprep.subr.mxu0 0.0
    %3381 = vmatpush1.msra.mxu0 0.0
    %3382 = vmatprep.subr.mxu0 0.0
    %3383 = vmatpush1.msra.mxu0 0.0
    %3384 = vmatprep.subr.mxu0 0.0
    %3385 = vmatpush1.msra.mxu0 0.0
    %3386 = vmatprep.subr.mxu0 0.0
    %3387 = vmatpush1.msra.mxu0 0.0
    %3388 = vmatprep.subr.mxu0 0.0
    %3389 = vmatpush1.msra.mxu0 0.0
    %3390 = vmatprep.subr.mxu0 0.0
    %3391 = vmatpush1.msra.mxu0 0.0
    %3392 = vmatprep.subr.mxu0 0.0
    %3393 = vmatpush1.msra.mxu0 0.0
    %3394 = vmatprep.subr.mxu0 0.0
    %3395 = vmatpush1.msra.mxu0 0.0
    %3396 = vmatprep.subr.mxu0 0.0
    %3397 = vmatpush1.msra.mxu0 0.0
    %3398 = vmatprep.subr.mxu0 0.0
    %3399 = vmatpush1.msra.mxu0 0.0
    %3400 = vmatprep.subr.mxu0 0.0
    %3401 = vmatpush1.msra.mxu0 0.0
    %3402 = vmatprep.subr.mxu0 0.0
    %3403 = vmatpush1.msra.mxu0 0.0
    %3404 = vmatprep.subr.mxu0 0.0
    %3405 = vmatpush1.msra.mxu0 0.0
    %3406 = vmatprep.subr.mxu0 0.0
    %3407 = vmatpush1.msra.mxu0 0.0
    %3408 = vmatprep.subr.mxu0 0.0
    %3409 = vmatpush1.msra.mxu0 0.0
    %3410 = vmatprep.subr.mxu0 0.0
    %3411 = vmatpush1.msra.mxu0 0.0
    %3412 = vmatprep.mubr.f32.mxu0 0.0
    %3413 = vmatmul.mubr.f32.gmra.mrb[0].mxu0 %v3036
    %v3414 = vpop.f32.mrb[0].mxu0
    %v3415 = vadd.f32 0.0, %v3414
    %v3416 = vpop.f32.mrb[0].mxu0
    %v3417 = vadd.f32 0.0, %v3416
    %3418 = vdwg.mxu0
    %3419 = vmatprep.subr.mxu0 0.0
    %3420 = vmatpush1.msra.mxu0 %v454
    %3421 = vmatprep.subr.mxu0 0.0
    %3422 = vmatpush1.msra.mxu0 %v457
    %3423 = vmatprep.subr.mxu0 0.0
    %3424 = vmatpush1.msra.mxu0 %v460
    %3425 = vmatprep.subr.mxu0 0.0
    %3426 = vmatpush1.msra.mxu0 %v463
    %3427 = vmatprep.subr.mxu0 0.0
    %3428 = vmatpush1.msra.mxu0 0.0
    %3429 = vmatprep.subr.mxu0 0.0
    %3430 = vmatpush1.msra.mxu0 0.0
    %3431 = vmatprep.subr.mxu0 0.0
    %3432 = vmatpush1.msra.mxu0 0.0
    %3433 = vmatprep.subr.mxu0 0.0
    %3434 = vmatpush1.msra.mxu0 0.0
    %3435 = vmatprep.subr.mxu0 0.0
    %3436 = vmatpush1.msra.mxu0 0.0
    %3437 = vmatprep.subr.mxu0 0.0
    %3438 = vmatpush1.msra.mxu0 0.0
    %3439 = vmatprep.subr.mxu0 0.0
    %3440 = vmatpush1.msra.mxu0 0.0
    %3441 = vmatprep.subr.mxu0 0.0
    %3442 = vmatpush1.msra.mxu0 0.0
    %3443 = vmatprep.subr.mxu0 0.0
    %3444 = vmatpush1.msra.mxu0 0.0
    %3445 = vmatprep.subr.mxu0 0.0
    %3446 = vmatpush1.msra.mxu0 0.0
    %3447 = vmatprep.subr.mxu0 0.0
    %3448 = vmatpush1.msra.mxu0 0.0
    %3449 = vmatprep.subr.mxu0 0.0
    %3450 = vmatpush1.msra.mxu0 0.0
    %3451 = vmatprep.subr.mxu0 0.0
    %3452 = vmatpush1.msra.mxu0 0.0
    %3453 = vmatprep.subr.mxu0 0.0
    %3454 = vmatpush1.msra.mxu0 0.0
    %3455 = vmatprep.subr.mxu0 0.0
    %3456 = vmatpush1.msra.mxu0 0.0
    %3457 = vmatprep.subr.mxu0 0.0
    %3458 = vmatpush1.msra.mxu0 0.0
    %3459 = vmatprep.subr.mxu0 0.0
    %3460 = vmatpush1.msra.mxu0 0.0
    %3461 = vmatprep.subr.mxu0 0.0
    %3462 = vmatpush1.msra.mxu0 0.0
    %3463 = vmatprep.subr.mxu0 0.0
    %3464 = vmatpush1.msra.mxu0 0.0
    %3465 = vmatprep.subr.mxu0 0.0
    %3466 = vmatpush1.msra.mxu0 0.0
    %3467 = vmatprep.subr.mxu0 0.0
    %3468 = vmatpush1.msra.mxu0 0.0
    %3469 = vmatprep.subr.mxu0 0.0
    %3470 = vmatpush1.msra.mxu0 0.0
    %3471 = vmatprep.subr.mxu0 0.0
    %3472 = vmatpush1.msra.mxu0 0.0
    %3473 = vmatprep.subr.mxu0 0.0
    %3474 = vmatpush1.msra.mxu0 0.0
    %3475 = vmatprep.subr.mxu0 0.0
    %3476 = vmatpush1.msra.mxu0 0.0
    %3477 = vmatprep.subr.mxu0 0.0
    %3478 = vmatpush1.msra.mxu0 0.0
    %3479 = vmatprep.subr.mxu0 0.0
    %3480 = vmatpush1.msra.mxu0 0.0
    %3481 = vmatprep.subr.mxu0 0.0
    %3482 = vmatpush1.msra.mxu0 0.0
    %3483 = vmatprep.mubr.f32.mxu0 0.0
    %3484 = vmatmul.mubr.f32.gmra.mrb[0].mxu0 %v3036
    %v3485 = vpop.f32.mrb[0].mxu0
    %v3486 = vadd.f32 0.0, %v3485
    %v3487 = vpop.f32.mrb[0].mxu0
    %3488 = vdwg.mxu0
    %v3489 = vadd.f32 %v3345, %v3415
    %v3490 = vxor.u32 %v3489, 2147483648
    %v3491 = vmul.f32 %v3490, 1.442695
    %v3492 = vpow.pop %v3491
    %v3493 = vadd.f32 %v3492, 1.0
    %v3494 = vrcp.pop %v3493
    %v3495 = vmul.f32 1.0, %v3494
    %v3496 = vadd.f32 %v3346, %v3417
    %v3497 = vxor.u32 %v3496, 2147483648
    %v3498 = vmul.f32 %v3497, 1.442695
    %v3499 = vpow.pop %v3498
    %v3500 = vadd.f32 %v3499, 1.0
    %v3501 = vrcp.pop %v3500
    %v3502 = vmul.f32 1.0, %v3501
    %v3503 = vadd.f32 %v3486, %v420
    %v3504 = vmul.f32 %v3495, %v3503
    %v3505 = vadd.f32 %v3347, %v3504
    %v3506 = vtanh.pop %v3505
    %v3507 = vsub.f32 1.0, %v3502
    %v3508 = vmul.f32 %v3507, %v3506
    %v3509 = vmul.f32 %v3502, %v3034
    %v3510 = vadd.f32 %v3508, %v3509
    %v3512 = vsel %vm464, %v3510, 0
    %3514 = vmatprep.subr.mxu0 %v632
    %3515 = vmatpush1.msra.mxu0 %v631
    %3516 = vmatprep.subr.mxu0 %v635
    %3517 = vmatpush1.msra.mxu0 %v634
    %3518 = vmatprep.subr.mxu0 %v638
    %3519 = vmatpush1.msra.mxu0 %v637
    %3520 = vmatprep.subr.mxu0 %v641
    %3521 = vmatpush1.msra.mxu0 %v640
    %3522 = vmatprep.subr.mxu0 0.0
    %3523 = vmatpush1.msra.mxu0 0.0
    %3524 = vmatprep.subr.mxu0 0.0
    %3525 = vmatpush1.msra.mxu0 0.0
    %3526 = vmatprep.subr.mxu0 0.0
    %3527 = vmatpush1.msra.mxu0 0.0
    %3528 = vmatprep.subr.mxu0 0.0
    %3529 = vmatpush1.msra.mxu0 0.0
    %3530 = vmatprep.subr.mxu0 0.0
    %3531 = vmatpush1.msra.mxu0 0.0
    %3532 = vmatprep.subr.mxu0 0.0
    %3533 = vmatpush1.msra.mxu0 0.0
    %3534 = vmatprep.subr.mxu0 0.0
    %3535 = vmatpush1.msra.mxu0 0.0
    %3536 = vmatprep.subr.mxu0 0.0
    %3537 = vmatpush1.msra.mxu0 0.0
    %3538 = vmatprep.subr.mxu0 0.0
    %3539 = vmatpush1.msra.mxu0 0.0
    %3540 = vmatprep.subr.mxu0 0.0
    %3541 = vmatpush1.msra.mxu0 0.0
    %3542 = vmatprep.subr.mxu0 0.0
    %3543 = vmatpush1.msra.mxu0 0.0
    %3544 = vmatprep.subr.mxu0 0.0
    %3545 = vmatpush1.msra.mxu0 0.0
    %3546 = vmatprep.subr.mxu0 0.0
    %3547 = vmatpush1.msra.mxu0 0.0
    %3548 = vmatprep.subr.mxu0 0.0
    %3549 = vmatpush1.msra.mxu0 0.0
    %3550 = vmatprep.subr.mxu0 0.0
    %3551 = vmatpush1.msra.mxu0 0.0
    %3552 = vmatprep.subr.mxu0 0.0
    %3553 = vmatpush1.msra.mxu0 0.0
    %3554 = vmatprep.subr.mxu0 0.0
    %3555 = vmatpush1.msra.mxu0 0.0
    %3556 = vmatprep.subr.mxu0 0.0
    %3557 = vmatpush1.msra.mxu0 0.0
    %3558 = vmatprep.subr.mxu0 0.0
    %3559 = vmatpush1.msra.mxu0 0.0
    %3560 = vmatprep.subr.mxu0 0.0
    %3561 = vmatpush1.msra.mxu0 0.0
    %3562 = vmatprep.subr.mxu0 0.0
    %3563 = vmatpush1.msra.mxu0 0.0
    %3564 = vmatprep.subr.mxu0 0.0
    %3565 = vmatpush1.msra.mxu0 0.0
    %3566 = vmatprep.subr.mxu0 0.0
    %3567 = vmatpush1.msra.mxu0 0.0
    %3568 = vmatprep.subr.mxu0 0.0
    %3569 = vmatpush1.msra.mxu0 0.0
    %3570 = vmatprep.subr.mxu0 0.0
    %3571 = vmatpush1.msra.mxu0 0.0
    %3572 = vmatprep.subr.mxu0 0.0
    %3573 = vmatpush1.msra.mxu0 0.0
    %3574 = vmatprep.subr.mxu0 0.0
    %3575 = vmatpush1.msra.mxu0 0.0
    %3576 = vmatprep.subr.mxu0 0.0
    %3577 = vmatpush1.msra.mxu0 0.0
    %3578 = vmatprep.mubr.f32.mxu0 0.0
    %3579 = vmatmul.mubr.f32.gmra.mrb[0].mxu0 %v3512
    %v3580 = vpop.f32.mrb[0].mxu0
    %v3581 = vadd.f32 %v434, %v3580
    %v3582 = vpop.f32.mrb[0].mxu0
    %v3583 = vadd.f32 %v438, %v3582
    %3584 = vdwg.mxu0
    %3585 = vmatprep.subr.mxu0 0.0
    %3586 = vmatpush1.msra.mxu0 %v633
    %3587 = vmatprep.subr.mxu0 0.0
    %3588 = vmatpush1.msra.mxu0 %v636
    %3589 = vmatprep.subr.mxu0 0.0
    %3590 = vmatpush1.msra.mxu0 %v639
    %3591 = vmatprep.subr.mxu0 0.0
    %3592 = vmatpush1.msra.mxu0 %v642
    %3593 = vmatprep.subr.mxu0 0.0
    %3594 = vmatpush1.msra.mxu0 0.0
    %3595 = vmatprep.subr.mxu0 0.0
    %3596 = vmatpush1.msra.mxu0 0.0
    %3597 = vmatprep.subr.mxu0 0.0
    %3598 = vmatpush1.msra.mxu0 0.0
    %3599 = vmatprep.subr.mxu0 0.0
    %3600 = vmatpush1.msra.mxu0 0.0
    %3601 = vmatprep.subr.mxu0 0.0
    %3602 = vmatpush1.msra.mxu0 0.0
    %3603 = vmatprep.subr.mxu0 0.0
    %3604 = vmatpush1.msra.mxu0 0.0
    %3605 = vmatprep.subr.mxu0 0.0
    %3606 = vmatpush1.msra.mxu0 0.0
    %3607 = vmatprep.subr.mxu0 0.0
    %3608 = vmatpush1.msra.mxu0 0.0
    %3609 = vmatprep.subr.mxu0 0.0
    %3610 = vmatpush1.msra.mxu0 0.0
    %3611 = vmatprep.subr.mxu0 0.0
    %3612 = vmatpush1.msra.mxu0 0.0
    %3613 = vmatprep.subr.mxu0 0.0
    %3614 = vmatpush1.msra.mxu0 0.0
    %3615 = vmatprep.subr.mxu0 0.0
    %3616 = vmatpush1.msra.mxu0 0.0
    %3617 = vmatprep.subr.mxu0 0.0
    %3618 = vmatpush1.msra.mxu0 0.0
    %3619 = vmatprep.subr.mxu0 0.0
    %3620 = vmatpush1.msra.mxu0 0.0
    %3621 = vmatprep.subr.mxu0 0.0
    %3622 = vmatpush1.msra.mxu0 0.0
    %3623 = vmatprep.subr.mxu0 0.0
    %3624 = vmatpush1.msra.mxu0 0.0
    %3625 = vmatprep.subr.mxu0 0.0
    %3626 = vmatpush1.msra.mxu0 0.0
    %3627 = vmatprep.subr.mxu0 0.0
    %3628 = vmatpush1.msra.mxu0 0.0
    %3629 = vmatprep.subr.mxu0 0.0
    %3630 = vmatpush1.msra.mxu0 0.0
    %3631 = vmatprep.subr.mxu0 0.0
    %3632 = vmatpush1.msra.mxu0 0.0
    %3633 = vmatprep.subr.mxu0 0.0
    %3634 = vmatpush1.msra.mxu0 0.0
    %3635 = vmatprep.subr.mxu0 0.0
    %3636 = vmatpush1.msra.mxu0 0.0
    %3637 = vmatprep.subr.mxu0 0.0
    %3638 = vmatpush1.msra.mxu0 0.0
    %3639 = vmatprep.subr.mxu0 0.0
    %3640 = vmatpush1.msra.mxu0 0.0
    %3641 = vmatprep.subr.mxu0 0.0
    %3642 = vmatpush1.msra.mxu0 0.0
    %3643 = vmatprep.subr.mxu0 0.0
    %3644 = vmatpush1.msra.mxu0 0.0
    %3645 = vmatprep.subr.mxu0 0.0
    %3646 = vmatpush1.msra.mxu0 0.0
    %3647 = vmatprep.subr.mxu0 0.0
    %3648 = vmatpush1.msra.mxu0 0.0
    %3649 = vmatprep.mubr.f32.mxu0 0.0
    %3650 = vmatmul.mubr.f32.gmra.mrb[0].mxu0 %v3512
    %v3651 = vpop.f32.mrb[0].mxu0
    %v3652 = vadd.f32 %v442, %v3651
    %v3653 = vpop.f32.mrb[0].mxu0
    %3654 = vdwg.mxu0
    %v3656 = vsel %vm464, %v3344, 0
    %3658 = vmatprep.subr.mxu0 %v788
    %3659 = vmatpush1.msra.mxu0 %v787
    %3660 = vmatprep.subr.mxu0 %v791
    %3661 = vmatpush1.msra.mxu0 %v790
    %3662 = vmatprep.subr.mxu0 %v794
    %3663 = vmatpush1.msra.mxu0 %v793
    %3664 = vmatprep.subr.mxu0 %v797
    %3665 = vmatpush1.msra.mxu0 %v796
    %3666 = vmatprep.subr.mxu0 0.0
    %3667 = vmatpush1.msra.mxu0 0.0
    %3668 = vmatprep.subr.mxu0 0.0
    %3669 = vmatpush1.msra.mxu0 0.0
    %3670 = vmatprep.subr.mxu0 0.0
    %3671 = vmatpush1.msra.mxu0 0.0
    %3672 = vmatprep.subr.mxu0 0.0
    %3673 = vmatpush1.msra.mxu0 0.0
    %3674 = vmatprep.subr.mxu0 0.0
    %3675 = vmatpush1.msra.mxu0 0.0
    %3676 = vmatprep.subr.mxu0 0.0
    %3677 = vmatpush1.msra.mxu0 0.0
    %3678 = vmatprep.subr.mxu0 0.0
    %3679 = vmatpush1.msra.mxu0 0.0
    %3680 = vmatprep.subr.mxu0 0.0
    %3681 = vmatpush1.msra.mxu0 0.0
    %3682 = vmatprep.subr.mxu0 0.0
    %3683 = vmatpush1.msra.mxu0 0.0
    %3684 = vmatprep.subr.mxu0 0.0
    %3685 = vmatpush1.msra.mxu0 0.0
    %3686 = vmatprep.subr.mxu0 0.0
    %3687 = vmatpush1.msra.mxu0 0.0
    %3688 = vmatprep.subr.mxu0 0.0
    %3689 = vmatpush1.msra.mxu0 0.0
    %3690 = vmatprep.subr.mxu0 0.0
    %3691 = vmatpush1.msra.mxu0 0.0
    %3692 = vmatprep.subr.mxu0 0.0
    %3693 = vmatpush1.msra.mxu0 0.0
    %3694 = vmatprep.subr.mxu0 0.0
    %3695 = vmatpush1.msra.mxu0 0.0
    %3696 = vmatprep.subr.mxu0 0.0
    %3697 = vmatpush1.msra.mxu0 0.0
    %3698 = vmatprep.subr.mxu0 0.0
    %3699 = vmatpush1.msra.mxu0 0.0
    %3700 = vmatprep.subr.mxu0 0.0
    %3701 = vmatpush1.msra.mxu0 0.0
    %3702 = vmatprep.subr.mxu0 0.0
    %3703 = vmatpush1.msra.mxu0 0.0
    %3704 = vmatprep.subr.mxu0 0.0
    %3705 = vmatpush1.msra.mxu0 0.0
    %3706 = vmatprep.subr.mxu0 0.0
    %3707 = vmatpush1.msra.mxu0 0.0
    %3708 = vmatprep.subr.mxu0 0.0
    %3709 = vmatpush1.msra.mxu0 0.0
    %3710 = vmatprep.subr.mxu0 0.0
    %3711 = vmatpush1.msra.mxu0 0.0
    %3712 = vmatprep.subr.mxu0 0.0
    %3713 = vmatpush1.msra.mxu0 0.0
    %3714 = vmatprep.subr.mxu0 0.0
    %3715 = vmatpush1.msra.mxu0 0.0
    %3716 = vmatprep.subr.mxu0 0.0
    %3717 = vmatpush1.msra.mxu0 0.0
    %3718 = vmatprep.subr.mxu0 0.0
    %3719 = vmatpush1.msra.mxu0 0.0
    %3720 = vmatprep.subr.mxu0 0.0
    %3721 = vmatpush1.msra.mxu0 0.0
    %3722 = vmatprep.mubr.f32.mxu0 0.0
    %3723 = vmatmul.mubr.f32.gmra.mrb[0].mxu0 %v3656
    %v3724 = vpop.f32.mrb[0].mxu0
    %v3725 = vadd.f32 0.0, %v3724
    %v3726 = vpop.f32.mrb[0].mxu0
    %v3727 = vadd.f32 0.0, %v3726
    %3728 = vdwg.mxu0
    %3729 = vmatprep.subr.mxu0 0.0
    %3730 = vmatpush1.msra.mxu0 %v789
    %3731 = vmatprep.subr.mxu0 0.0
    %3732 = vmatpush1.msra.mxu0 %v792
    %3733 = vmatprep.subr.mxu0 0.0
    %3734 = vmatpush1.msra.mxu0 %v795
    %3735 = vmatprep.subr.mxu0 0.0
    %3736 = vmatpush1.msra.mxu0 %v798
    %3737 = vmatprep.subr.mxu0 0.0
    %3738 = vmatpush1.msra.mxu0 0.0
    %3739 = vmatprep.subr.mxu0 0.0
    %3740 = vmatpush1.msra.mxu0 0.0
    %3741 = vmatprep.subr.mxu0 0.0
    %3742 = vmatpush1.msra.mxu0 0.0
    %3743 = vmatprep.subr.mxu0 0.0
    %3744 = vmatpush1.msra.mxu0 0.0
    %3745 = vmatprep.subr.mxu0 0.0
    %3746 = vmatpush1.msra.mxu0 0.0
    %3747 = vmatprep.subr.mxu0 0.0
    %3748 = vmatpush1.msra.mxu0 0.0
    %3749 = vmatprep.subr.mxu0 0.0
    %3750 = vmatpush1.msra.mxu0 0.0
    %3751 = vmatprep.subr.mxu0 0.0
    %3752 = vmatpush1.msra.mxu0 0.0
    %3753 = vmatprep.subr.mxu0 0.0
    %3754 = vmatpush1.msra.mxu0 0.0
    %3755 = vmatprep.subr.mxu0 0.0
    %3756 = vmatpush1.msra.mxu0 0.0
    %3757 = vmatprep.subr.mxu0 0.0
    %3758 = vmatpush1.msra.mxu0 0.0
    %3759 = vmatprep.subr.mxu0 0.0
    %3760 = vmatpush1.msra.mxu0 0.0
    %3761 = vmatprep.subr.mxu0 0.0
    %3762 = vmatpush1.msra.mxu0 0.0
    %3763 = vmatprep.subr.mxu0 0.0
    %3764 = vmatpush1.msra.mxu0 0.0
    %3765 = vmatprep.subr.mxu0 0.0
    %3766 = vmatpush1.msra.mxu0 0.0
    %3767 = vmatprep.subr.mxu0 0.0
    %3768 = vmatpush1.msra.mxu0 0.0
    %3769 = vmatprep.subr.mxu0 0.0
    %3770 = vmatpush1.msra.mxu0 0.0
    %3771 = vmatprep.subr.mxu0 0.0
    %3772 = vmatpush1.msra.mxu0 0.0
    %3773 = vmatprep.subr.mxu0 0.0
    %3774 = vmatpush1.msra.mxu0 0.0
    %3775 = vmatprep.subr.mxu0 0.0
    %3776 = vmatpush1.msra.mxu0 0.0
    %3777 = vmatprep.subr.mxu0 0.0
    %3778 = vmatpush1.msra.mxu0 0.0
    %3779 = vmatprep.subr.mxu0 0.0
    %3780 = vmatpush1.msra.mxu0 0.0
    %3781 = vmatprep.subr.mxu0 0.0
    %3782 = vmatpush1.msra.mxu0 0.0
    %3783 = vmatprep.subr.mxu0 0.0
    %3784 = vmatpush1.msra.mxu0 0.0
    %3785 = vmatprep.subr.mxu0 0.0
    %3786 = vmatpush1.msra.mxu0 0.0
    %3787 = vmatprep.subr.mxu0 0.0
    %3788 = vmatpush1.msra.mxu0 0.0
    %3789 = vmatprep.subr.mxu0 0.0
    %3790 = vmatpush1.msra.mxu0 0.0
    %3791 = vmatprep.subr.mxu0 0.0
    %3792 = vmatpush1.msra.mxu0 0.0
    %3793 = vmatprep.mubr.f32.mxu0 0.0
    %3794 = vmatmul.mubr.f32.gmra.mrb[0].mxu0 %v3656
    %v3795 = vpop.f32.mrb[0].mxu0
    %v3796 = vadd.f32 0.0, %v3795
    %v3797 = vpop.f32.mrb[0].mxu0
    %3798 = vdwg.mxu0
    %v3799 = vadd.f32 %v3581, %v3725
    %v3800 = vxor.u32 %v3799, 2147483648
    %v3801 = vmul.f32 %v3800, 1.442695
    %v3802 = vpow.pop %v3801
    %v3803 = vadd.f32 %v3802, 1.0
    %v3804 = vrcp.pop %v3803
    %v3805 = vmul.f32 1.0, %v3804
    %v3806 = vadd.f32 %v3583, %v3727
    %v3807 = vxor.u32 %v3806, 2147483648
    %v3808 = vmul.f32 %v3807, 1.442695
    %v3809 = vpow.pop %v3808
    %v3810 = vadd.f32 %v3809, 1.0
    %v3811 = vrcp.pop %v3810
    %v3812 = vmul.f32 1.0, %v3811
    %v3813 = vadd.f32 %v3796, %v427
    %v3814 = vmul.f32 %v3805, %v3813
    %v3815 = vadd.f32 %v3652, %v3814
    %v3816 = vtanh.pop %v3815
    %v3817 = vsub.f32 1.0, %v3812
    %v3818 = vmul.f32 %v3817, %v3816
    %v3819 = vmul.f32 %v3812, %v3344
    %v3820 = vadd.f32 %v3818, %v3819
    %v3821 = vld [vmem:[#allocation2 + $0xa8] sm:$0xff]
    %v3822 = vld [vmem:[#allocation2 + $0xb0] sm:$0xff]
    %v3823 = vld [vmem:[#allocation2 + $0xb8] sm:$0xff]
    %3824 = vmatprep.subr.mxu0 %v453
    %3825 = vmatpush1.msra.mxu0 %v452
    %3826 = vmatprep.subr.mxu0 %v456
    %3827 = vmatpush1.msra.mxu0 %v455
    %3828 = vmatprep.subr.mxu0 %v459
    %3829 = vmatpush1.msra.mxu0 %v458
    %3830 = vmatprep.subr.mxu0 %v462
    %3831 = vmatpush1.msra.mxu0 %v461
    %3832 = vmatprep.subr.mxu0 0.0
    %3833 = vmatpush1.msra.mxu0 0.0
    %3834 = vmatprep.subr.mxu0 0.0
    %3835 = vmatpush1.msra.mxu0 0.0
    %3836 = vmatprep.subr.mxu0 0.0
    %3837 = vmatpush1.msra.mxu0 0.0
    %3838 = vmatprep.subr.mxu0 0.0
    %3839 = vmatpush1.msra.mxu0 0.0
    %3840 = vmatprep.subr.mxu0 0.0
    %3841 = vmatpush1.msra.mxu0 0.0
    %3842 = vmatprep.subr.mxu0 0.0
    %3843 = vmatpush1.msra.mxu0 0.0
    %3844 = vmatprep.subr.mxu0 0.0
    %3845 = vmatpush1.msra.mxu0 0.0
    %3846 = vmatprep.subr.mxu0 0.0
    %3847 = vmatpush1.msra.mxu0 0.0
    %3848 = vmatprep.subr.mxu0 0.0
    %3849 = vmatpush1.msra.mxu0 0.0
    %3850 = vmatprep.subr.mxu0 0.0
    %3851 = vmatpush1.msra.mxu0 0.0
    %3852 = vmatprep.subr.mxu0 0.0
    %3853 = vmatpush1.msra.mxu0 0.0
    %3854 = vmatprep.subr.mxu0 0.0
    %3855 = vmatpush1.msra.mxu0 0.0
    %3856 = vmatprep.subr.mxu0 0.0
    %3857 = vmatpush1.msra.mxu0 0.0
    %3858 = vmatprep.subr.mxu0 0.0
    %3859 = vmatpush1.msra.mxu0 0.0
    %3860 = vmatprep.subr.mxu0 0.0
    %3861 = vmatpush1.msra.mxu0 0.0
    %3862 = vmatprep.subr.mxu0 0.0
    %3863 = vmatpush1.msra.mxu0 0.0
    %3864 = vmatprep.subr.mxu0 0.0
    %3865 = vmatpush1.msra.mxu0 0.0
    %3866 = vmatprep.subr.mxu0 0.0
    %3867 = vmatpush1.msra.mxu0 0.0
    %3868 = vmatprep.subr.mxu0 0.0
    %3869 = vmatpush1.msra.mxu0 0.0
    %3870 = vmatprep.subr.mxu0 0.0
    %3871 = vmatpush1.msra.mxu0 0.0
    %3872 = vmatprep.subr.mxu0 0.0
    %3873 = vmatpush1.msra.mxu0 0.0
    %3874 = vmatprep.subr.mxu0 0.0
    %3875 = vmatpush1.msra.mxu0 0.0
    %3876 = vmatprep.subr.mxu0 0.0
    %3877 = vmatpush1.msra.mxu0 0.0
    %3878 = vmatprep.subr.mxu0 0.0
    %3879 = vmatpush1.msra.mxu0 0.0
    %3880 = vmatprep.subr.mxu0 0.0
    %3881 = vmatpush1.msra.mxu0 0.0
    %3882 = vmatprep.subr.mxu0 0.0
    %3883 = vmatpush1.msra.mxu0 0.0
    %3884 = vmatprep.subr.mxu0 0.0
    %3885 = vmatpush1.msra.mxu0 0.0
    %3886 = vmatprep.subr.mxu0 0.0
    %3887 = vmatpush1.msra.mxu0 0.0
    %3888 = vmatprep.mubr.f32.mxu0 0.0
    %3889 = vmatmul.mubr.f32.gmra.mrb[0].mxu0 %v3512
    %v3890 = vpop.f32.mrb[0].mxu0
    %v3891 = vadd.f32 0.0, %v3890
    %v3892 = vpop.f32.mrb[0].mxu0
    %v3893 = vadd.f32 0.0, %v3892
    %3894 = vdwg.mxu0
    %3895 = vmatprep.subr.mxu0 0.0
    %3896 = vmatpush1.msra.mxu0 %v454
    %3897 = vmatprep.subr.mxu0 0.0
    %3898 = vmatpush1.msra.mxu0 %v457
    %3899 = vmatprep.subr.mxu0 0.0
    %3900 = vmatpush1.msra.mxu0 %v460
    %3901 = vmatprep.subr.mxu0 0.0
    %3902 = vmatpush1.msra.mxu0 %v463
    %3903 = vmatprep.subr.mxu0 0.0
    %3904 = vmatpush1.msra.mxu0 0.0
    %3905 = vmatprep.subr.mxu0 0.0
    %3906 = vmatpush1.msra.mxu0 0.0
    %3907 = vmatprep.subr.mxu0 0.0
    %3908 = vmatpush1.msra.mxu0 0.0
    %3909 = vmatprep.subr.mxu0 0.0
    %3910 = vmatpush1.msra.mxu0 0.0
    %3911 = vmatprep.subr.mxu0 0.0
    %3912 = vmatpush1.msra.mxu0 0.0
    %3913 = vmatprep.subr.mxu0 0.0
    %3914 = vmatpush1.msra.mxu0 0.0
    %3915 = vmatprep.subr.mxu0 0.0
    %3916 = vmatpush1.msra.mxu0 0.0
    %3917 = vmatprep.subr.mxu0 0.0
    %3918 = vmatpush1.msra.mxu0 0.0
    %3919 = vmatprep.subr.mxu0 0.0
    %3920 = vmatpush1.msra.mxu0 0.0
    %3921 = vmatprep.subr.mxu0 0.0
    %3922 = vmatpush1.msra.mxu0 0.0
    %3923 = vmatprep.subr.mxu0 0.0
    %3924 = vmatpush1.msra.mxu0 0.0
    %3925 = vmatprep.subr.mxu0 0.0
    %3926 = vmatpush1.msra.mxu0 0.0
    %3927 = vmatprep.subr.mxu0 0.0
    %3928 = vmatpush1.msra.mxu0 0.0
    %3929 = vmatprep.subr.mxu0 0.0
    %3930 = vmatpush1.msra.mxu0 0.0
    %3931 = vmatprep.subr.mxu0 0.0
    %3932 = vmatpush1.msra.mxu0 0.0
    %3933 = vmatprep.subr.mxu0 0.0
    %3934 = vmatpush1.msra.mxu0 0.0
    %3935 = vmatprep.subr.mxu0 0.0
    %3936 = vmatpush1.msra.mxu0 0.0
    %3937 = vmatprep.subr.mxu0 0.0
    %3938 = vmatpush1.msra.mxu0 0.0
    %3939 = vmatprep.subr.mxu0 0.0
    %3940 = vmatpush1.msra.mxu0 0.0
    %3941 = vmatprep.subr.mxu0 0.0
    %3942 = vmatpush1.msra.mxu0 0.0
    %3943 = vmatprep.subr.mxu0 0.0
    %3944 = vmatpush1.msra.mxu0 0.0
    %3945 = vmatprep.subr.mxu0 0.0
    %3946 = vmatpush1.msra.mxu0 0.0
    %3947 = vmatprep.subr.mxu0 0.0
    %3948 = vmatpush1.msra.mxu0 0.0
    %3949 = vmatprep.subr.mxu0 0.0
    %3950 = vmatpush1.msra.mxu0 0.0
    %3951 = vmatprep.subr.mxu0 0.0
    %3952 = vmatpush1.msra.mxu0 0.0
    %3953 = vmatprep.subr.mxu0 0.0
    %3954 = vmatpush1.msra.mxu0 0.0
    %3955 = vmatprep.subr.mxu0 0.0
    %3956 = vmatpush1.msra.mxu0 0.0
    %3957 = vmatprep.subr.mxu0 0.0
    %3958 = vmatpush1.msra.mxu0 0.0
    %3959 = vmatprep.mubr.f32.mxu0 0.0
    %3960 = vmatmul.mubr.f32.gmra.mrb[0].mxu0 %v3512
    %v3961 = vpop.f32.mrb[0].mxu0
    %v3962 = vadd.f32 0.0, %v3961
    %v3963 = vpop.f32.mrb[0].mxu0
    %3964 = vdwg.mxu0
    %v3965 = vadd.f32 %v3821, %v3891
    %v3966 = vxor.u32 %v3965, 2147483648
    %v3967 = vmul.f32 %v3966, 1.442695
    %v3968 = vpow.pop %v3967
    %v3969 = vadd.f32 %v3968, 1.0
    %v3970 = vrcp.pop %v3969
    %v3971 = vmul.f32 1.0, %v3970
    %v3972 = vadd.f32 %v3822, %v3893
    %v3973 = vxor.u32 %v3972, 2147483648
    %v3974 = vmul.f32 %v3973, 1.442695
    %v3975 = vpow.pop %v3974
    %v3976 = vadd.f32 %v3975, 1.0
    %v3977 = vrcp.pop %v3976
    %v3978 = vmul.f32 1.0, %v3977
    %v3979 = vadd.f32 %v3962, %v420
    %v3980 = vmul.f32 %v3971, %v3979
    %v3981 = vadd.f32 %v3823, %v3980
    %v3982 = vtanh.pop %v3981
    %v3983 = vsub.f32 1.0, %v3978
    %v3984 = vmul.f32 %v3983, %v3982
    %v3985 = vmul.f32 %v3978, %v3510
    %v3986 = vadd.f32 %v3984, %v3985
    %v3988 = vsel %vm464, %v3986, 0
    %3990 = vmatprep.subr.mxu0 %v632
    %3991 = vmatpush1.msra.mxu0 %v631
    %3992 = vmatprep.subr.mxu0 %v635
    %3993 = vmatpush1.msra.mxu0 %v634
    %3994 = vmatprep.subr.mxu0 %v638
    %3995 = vmatpush1.msra.mxu0 %v637
    %3996 = vmatprep.subr.mxu0 %v641
    %3997 = vmatpush1.msra.mxu0 %v640
    %3998 = vmatprep.subr.mxu0 0.0
    %3999 = vmatpush1.msra.mxu0 0.0
    %4000 = vmatprep.subr.mxu0 0.0
    %4001 = vmatpush1.msra.mxu0 0.0
    %4002 = vmatprep.subr.mxu0 0.0
    %4003 = vmatpush1.msra.mxu0 0.0
    %4004 = vmatprep.subr.mxu0 0.0
    %4005 = vmatpush1.msra.mxu0 0.0
    %4006 = vmatprep.subr.mxu0 0.0
    %4007 = vmatpush1.msra.mxu0 0.0
    %4008 = vmatprep.subr.mxu0 0.0
    %4009 = vmatpush1.msra.mxu0 0.0
    %4010 = vmatprep.subr.mxu0 0.0
    %4011 = vmatpush1.msra.mxu0 0.0
    %4012 = vmatprep.subr.mxu0 0.0
    %4013 = vmatpush1.msra.mxu0 0.0
    %4014 = vmatprep.subr.mxu0 0.0
    %4015 = vmatpush1.msra.mxu0 0.0
    %4016 = vmatprep.subr.mxu0 0.0
    %4017 = vmatpush1.msra.mxu0 0.0
    %4018 = vmatprep.subr.mxu0 0.0
    %4019 = vmatpush1.msra.mxu0 0.0
    %4020 = vmatprep.subr.mxu0 0.0
    %4021 = vmatpush1.msra.mxu0 0.0
    %4022 = vmatprep.subr.mxu0 0.0
    %4023 = vmatpush1.msra.mxu0 0.0
    %4024 = vmatprep.subr.mxu0 0.0
    %4025 = vmatpush1.msra.mxu0 0.0
    %4026 = vmatprep.subr.mxu0 0.0
    %4027 = vmatpush1.msra.mxu0 0.0
    %4028 = vmatprep.subr.mxu0 0.0
    %4029 = vmatpush1.msra.mxu0 0.0
    %4030 = vmatprep.subr.mxu0 0.0
    %4031 = vmatpush1.msra.mxu0 0.0
    %4032 = vmatprep.subr.mxu0 0.0
    %4033 = vmatpush1.msra.mxu0 0.0
    %4034 = vmatprep.subr.mxu0 0.0
    %4035 = vmatpush1.msra.mxu0 0.0
    %4036 = vmatprep.subr.mxu0 0.0
    %4037 = vmatpush1.msra.mxu0 0.0
    %4038 = vmatprep.subr.mxu0 0.0
    %4039 = vmatpush1.msra.mxu0 0.0
    %4040 = vmatprep.subr.mxu0 0.0
    %4041 = vmatpush1.msra.mxu0 0.0
    %4042 = vmatprep.subr.mxu0 0.0
    %4043 = vmatpush1.msra.mxu0 0.0
    %4044 = vmatprep.subr.mxu0 0.0
    %4045 = vmatpush1.msra.mxu0 0.0
    %4046 = vmatprep.subr.mxu0 0.0
    %4047 = vmatpush1.msra.mxu0 0.0
    %4048 = vmatprep.subr.mxu0 0.0
    %4049 = vmatpush1.msra.mxu0 0.0
    %4050 = vmatprep.subr.mxu0 0.0
    %4051 = vmatpush1.msra.mxu0 0.0
    %4052 = vmatprep.subr.mxu0 0.0
    %4053 = vmatpush1.msra.mxu0 0.0
    %4054 = vmatprep.mubr.f32.mxu0 0.0
    %4055 = vmatmul.mubr.f32.gmra.mrb[0].mxu0 %v3988
    %v4056 = vpop.f32.mrb[0].mxu0
    %v4057 = vadd.f32 %v434, %v4056
    %v4058 = vpop.f32.mrb[0].mxu0
    %v4059 = vadd.f32 %v438, %v4058
    %4060 = vdwg.mxu0
    %4061 = vmatprep.subr.mxu0 0.0
    %4062 = vmatpush1.msra.mxu0 %v633
    %4063 = vmatprep.subr.mxu0 0.0
    %4064 = vmatpush1.msra.mxu0 %v636
    %4065 = vmatprep.subr.mxu0 0.0
    %4066 = vmatpush1.msra.mxu0 %v639
    %4067 = vmatprep.subr.mxu0 0.0
    %4068 = vmatpush1.msra.mxu0 %v642
    %4069 = vmatprep.subr.mxu0 0.0
    %4070 = vmatpush1.msra.mxu0 0.0
    %4071 = vmatprep.subr.mxu0 0.0
    %4072 = vmatpush1.msra.mxu0 0.0
    %4073 = vmatprep.subr.mxu0 0.0
    %4074 = vmatpush1.msra.mxu0 0.0
    %4075 = vmatprep.subr.mxu0 0.0
    %4076 = vmatpush1.msra.mxu0 0.0
    %4077 = vmatprep.subr.mxu0 0.0
    %4078 = vmatpush1.msra.mxu0 0.0
    %4079 = vmatprep.subr.mxu0 0.0
    %4080 = vmatpush1.msra.mxu0 0.0
    %4081 = vmatprep.subr.mxu0 0.0
    %4082 = vmatpush1.msra.mxu0 0.0
    %4083 = vmatprep.subr.mxu0 0.0
    %4084 = vmatpush1.msra.mxu0 0.0
    %4085 = vmatprep.subr.mxu0 0.0
    %4086 = vmatpush1.msra.mxu0 0.0
    %4087 = vmatprep.subr.mxu0 0.0
    %4088 = vmatpush1.msra.mxu0 0.0
    %4089 = vmatprep.subr.mxu0 0.0
    %4090 = vmatpush1.msra.mxu0 0.0
    %4091 = vmatprep.subr.mxu0 0.0
    %4092 = vmatpush1.msra.mxu0 0.0
    %4093 = vmatprep.subr.mxu0 0.0
    %4094 = vmatpush1.msra.mxu0 0.0
    %4095 = vmatprep.subr.mxu0 0.0
    %4096 = vmatpush1.msra.mxu0 0.0
    %4097 = vmatprep.subr.mxu0 0.0
    %4098 = vmatpush1.msra.mxu0 0.0
    %4099 = vmatprep.subr.mxu0 0.0
    %4100 = vmatpush1.msra.mxu0 0.0
    %4101 = vmatprep.subr.mxu0 0.0
    %4102 = vmatpush1.msra.mxu0 0.0
    %4103 = vmatprep.subr.mxu0 0.0
    %4104 = vmatpush1.msra.mxu0 0.0
    %4105 = vmatprep.subr.mxu0 0.0
    %4106 = vmatpush1.msra.mxu0 0.0
    %4107 = vmatprep.subr.mxu0 0.0
    %4108 = vmatpush1.msra.mxu0 0.0
    %4109 = vmatprep.subr.mxu0 0.0
    %4110 = vmatpush1.msra.mxu0 0.0
    %4111 = vmatprep.subr.mxu0 0.0
    %4112 = vmatpush1.msra.mxu0 0.0
    %4113 = vmatprep.subr.mxu0 0.0
    %4114 = vmatpush1.msra.mxu0 0.0
    %4115 = vmatprep.subr.mxu0 0.0
    %4116 = vmatpush1.msra.mxu0 0.0
    %4117 = vmatprep.subr.mxu0 0.0
    %4118 = vmatpush1.msra.mxu0 0.0
    %4119 = vmatprep.subr.mxu0 0.0
    %4120 = vmatpush1.msra.mxu0 0.0
    %4121 = vmatprep.subr.mxu0 0.0
    %4122 = vmatpush1.msra.mxu0 0.0
    %4123 = vmatprep.subr.mxu0 0.0
    %4124 = vmatpush1.msra.mxu0 0.0
    %4125 = vmatprep.mubr.f32.mxu0 0.0
    %4126 = vmatmul.mubr.f32.gmra.mrb[0].mxu0 %v3988
    %v4127 = vpop.f32.mrb[0].mxu0
    %v4128 = vadd.f32 %v442, %v4127
    %v4129 = vpop.f32.mrb[0].mxu0
    %4130 = vdwg.mxu0
    %v4132 = vsel %vm464, %v3820, 0
    %4134 = vmatprep.subr.mxu0 %v788
    %4135 = vmatpush1.msra.mxu0 %v787
    %4136 = vmatprep.subr.mxu0 %v791
    %4137 = vmatpush1.msra.mxu0 %v790
    %4138 = vmatprep.subr.mxu0 %v794
    %4139 = vmatpush1.msra.mxu0 %v793
    %4140 = vmatprep.subr.mxu0 %v797
    %4141 = vmatpush1.msra.mxu0 %v796
    %4142 = vmatprep.subr.mxu0 0.0
    %4143 = vmatpush1.msra.mxu0 0.0
    %4144 = vmatprep.subr.mxu0 0.0
    %4145 = vmatpush1.msra.mxu0 0.0
    %4146 = vmatprep.subr.mxu0 0.0
    %4147 = vmatpush1.msra.mxu0 0.0
    %4148 = vmatprep.subr.mxu0 0.0
    %4149 = vmatpush1.msra.mxu0 0.0
    %4150 = vmatprep.subr.mxu0 0.0
    %4151 = vmatpush1.msra.mxu0 0.0
    %4152 = vmatprep.subr.mxu0 0.0
    %4153 = vmatpush1.msra.mxu0 0.0
    %4154 = vmatprep.subr.mxu0 0.0
    %4155 = vmatpush1.msra.mxu0 0.0
    %4156 = vmatprep.subr.mxu0 0.0
    %4157 = vmatpush1.msra.mxu0 0.0
    %4158 = vmatprep.subr.mxu0 0.0
    %4159 = vmatpush1.msra.mxu0 0.0
    %4160 = vmatprep.subr.mxu0 0.0
    %4161 = vmatpush1.msra.mxu0 0.0
    %4162 = vmatprep.subr.mxu0 0.0
    %4163 = vmatpush1.msra.mxu0 0.0
    %4164 = vmatprep.subr.mxu0 0.0
    %4165 = vmatpush1.msra.mxu0 0.0
    %4166 = vmatprep.subr.mxu0 0.0
    %4167 = vmatpush1.msra.mxu0 0.0
    %4168 = vmatprep.subr.mxu0 0.0
    %4169 = vmatpush1.msra.mxu0 0.0
    %4170 = vmatprep.subr.mxu0 0.0
    %4171 = vmatpush1.msra.mxu0 0.0
    %4172 = vmatprep.subr.mxu0 0.0
    %4173 = vmatpush1.msra.mxu0 0.0
    %4174 = vmatprep.subr.mxu0 0.0
    %4175 = vmatpush1.msra.mxu0 0.0
    %4176 = vmatprep.subr.mxu0 0.0
    %4177 = vmatpush1.msra.mxu0 0.0
    %4178 = vmatprep.subr.mxu0 0.0
    %4179 = vmatpush1.msra.mxu0 0.0
    %4180 = vmatprep.subr.mxu0 0.0
    %4181 = vmatpush1.msra.mxu0 0.0
    %4182 = vmatprep.subr.mxu0 0.0
    %4183 = vmatpush1.msra.mxu0 0.0
    %4184 = vmatprep.subr.mxu0 0.0
    %4185 = vmatpush1.msra.mxu0 0.0
    %4186 = vmatprep.subr.mxu0 0.0
    %4187 = vmatpush1.msra.mxu0 0.0
    %4188 = vmatprep.subr.mxu0 0.0
    %4189 = vmatpush1.msra.mxu0 0.0
    %4190 = vmatprep.subr.mxu0 0.0
    %4191 = vmatpush1.msra.mxu0 0.0
    %4192 = vmatprep.subr.mxu0 0.0
    %4193 = vmatpush1.msra.mxu0 0.0
    %4194 = vmatprep.subr.mxu0 0.0
    %4195 = vmatpush1.msra.mxu0 0.0
    %4196 = vmatprep.subr.mxu0 0.0
    %4197 = vmatpush1.msra.mxu0 0.0
    %4198 = vmatprep.mubr.f32.mxu0 0.0
    %4199 = vmatmul.mubr.f32.gmra.mrb[0].mxu0 %v4132
    %v4200 = vpop.f32.mrb[0].mxu0
    %v4201 = vadd.f32 0.0, %v4200
    %v4202 = vpop.f32.mrb[0].mxu0
    %v4203 = vadd.f32 0.0, %v4202
    %4204 = vdwg.mxu0
    %4205 = vmatprep.subr.mxu0 0.0
    %4206 = vmatpush1.msra.mxu0 %v789
    %4207 = vmatprep.subr.mxu0 0.0
    %4208 = vmatpush1.msra.mxu0 %v792
    %4209 = vmatprep.subr.mxu0 0.0
    %4210 = vmatpush1.msra.mxu0 %v795
    %4211 = vmatprep.subr.mxu0 0.0
    %4212 = vmatpush1.msra.mxu0 %v798
    %4213 = vmatprep.subr.mxu0 0.0
    %4214 = vmatpush1.msra.mxu0 0.0
    %4215 = vmatprep.subr.mxu0 0.0
    %4216 = vmatpush1.msra.mxu0 0.0
    %4217 = vmatprep.subr.mxu0 0.0
    %4218 = vmatpush1.msra.mxu0 0.0
    %4219 = vmatprep.subr.mxu0 0.0
    %4220 = vmatpush1.msra.mxu0 0.0
    %4221 = vmatprep.subr.mxu0 0.0
    %4222 = vmatpush1.msra.mxu0 0.0
    %4223 = vmatprep.subr.mxu0 0.0
    %4224 = vmatpush1.msra.mxu0 0.0
    %4225 = vmatprep.subr.mxu0 0.0
    %4226 = vmatpush1.msra.mxu0 0.0
    %4227 = vmatprep.subr.mxu0 0.0
    %4228 = vmatpush1.msra.mxu0 0.0
    %4229 = vmatprep.subr.mxu0 0.0
    %4230 = vmatpush1.msra.mxu0 0.0
    %4231 = vmatprep.subr.mxu0 0.0
    %4232 = vmatpush1.msra.mxu0 0.0
    %4233 = vmatprep.subr.mxu0 0.0
    %4234 = vmatpush1.msra.mxu0 0.0
    %4235 = vmatprep.subr.mxu0 0.0
    %4236 = vmatpush1.msra.mxu0 0.0
    %4237 = vmatprep.subr.mxu0 0.0
    %4238 = vmatpush1.msra.mxu0 0.0
    %4239 = vmatprep.subr.mxu0 0.0
    %4240 = vmatpush1.msra.mxu0 0.0
    %4241 = vmatprep.subr.mxu0 0.0
    %4242 = vmatpush1.msra.mxu0 0.0
    %4243 = vmatprep.subr.mxu0 0.0
    %4244 = vmatpush1.msra.mxu0 0.0
    %4245 = vmatprep.subr.mxu0 0.0
    %4246 = vmatpush1.msra.mxu0 0.0
    %4247 = vmatprep.subr.mxu0 0.0
    %4248 = vmatpush1.msra.mxu0 0.0
    %4249 = vmatprep.subr.mxu0 0.0
    %4250 = vmatpush1.msra.mxu0 0.0
    %4251 = vmatprep.subr.mxu0 0.0
    %4252 = vmatpush1.msra.mxu0 0.0
    %4253 = vmatprep.subr.mxu0 0.0
    %4254 = vmatpush1.msra.mxu0 0.0
    %4255 = vmatprep.subr.mxu0 0.0
    %4256 = vmatpush1.msra.mxu0 0.0
    %4257 = vmatprep.subr.mxu0 0.0
    %4258 = vmatpush1.msra.mxu0 0.0
    %4259 = vmatprep.subr.mxu0 0.0
    %4260 = vmatpush1.msra.mxu0 0.0
    %4261 = vmatprep.subr.mxu0 0.0
    %4262 = vmatpush1.msra.mxu0 0.0
    %4263 = vmatprep.subr.mxu0 0.0
    %4264 = vmatpush1.msra.mxu0 0.0
    %4265 = vmatprep.subr.mxu0 0.0
    %4266 = vmatpush1.msra.mxu0 0.0
    %4267 = vmatprep.subr.mxu0 0.0
    %4268 = vmatpush1.msra.mxu0 0.0
    %4269 = vmatprep.mubr.f32.mxu0 0.0
    %4270 = vmatmul.mubr.f32.gmra.mrb[0].mxu0 %v4132
    %v4271 = vpop.f32.mrb[0].mxu0
    %v4272 = vadd.f32 0.0, %v4271
    %v4273 = vpop.f32.mrb[0].mxu0
    %4274 = vdwg.mxu0
    %v4275 = vadd.f32 %v4057, %v4201
    %v4276 = vxor.u32 %v4275, 2147483648
    %v4277 = vmul.f32 %v4276, 1.442695
    %v4278 = vpow.pop %v4277
    %v4279 = vadd.f32 %v4278, 1.0
    %v4280 = vrcp.pop %v4279
    %v4281 = vmul.f32 1.0, %v4280
    %v4282 = vadd.f32 %v4059, %v4203
    %v4283 = vxor.u32 %v4282, 2147483648
    %v4284 = vmul.f32 %v4283, 1.442695
    %v4285 = vpow.pop %v4284
    %v4286 = vadd.f32 %v4285, 1.0
    %v4287 = vrcp.pop %v4286
    %v4288 = vmul.f32 1.0, %v4287
    %v4289 = vadd.f32 %v4272, %v427
    %v4290 = vmul.f32 %v4281, %v4289
    %v4291 = vadd.f32 %v4128, %v4290
    %v4292 = vtanh.pop %v4291
    %v4293 = vsub.f32 1.0, %v4288
    %v4294 = vmul.f32 %v4293, %v4292
    %v4295 = vmul.f32 %v4288, %v3820
    %v4296 = vadd.f32 %v4294, %v4295
    %4297 = vst.msk [vmem:[%s13] sm:$0xff] %vm464, %v3986
    %s4298 = scalar_lea.vmem %s13, 8
    %4299 = vst.msk [vmem:[%s4298] sm:$0xff] %vm464, %v4296
    %v4300 = vld [vmem:[#allocation10] sm:$0xff]
    %v4301 = vld [vmem:[#allocation10 + $0x8] sm:$0xff]
    %v4302 = vld [vmem:[#allocation10 + $0x10] sm:$0xff]
    %v4303 = vld [vmem:[#allocation10 + $0x18] sm:$0xff]
    %v4304 = vld [vmem:[#allocation11] sm:$0x1]
    %v4306 = vlaneseq
    %v4307 = vshrl.u32 %v4306, 7
    %v4308 = vsub.s32 0, %v4307
    %v4309 = vrot.slane %v4304, %v4308
    %v4312 = vsel %vm464, %v4296, 0
    %4314 = vmatprep.subr.mxu0 0.0
    %4315 = vmatpush1.msra.mxu0 %v4300
    %4316 = vmatprep.subr.mxu0 0.0
    %4317 = vmatpush1.msra.mxu0 %v4301
    %4318 = vmatprep.subr.mxu0 0.0
    %4319 = vmatpush1.msra.mxu0 %v4302
    %4320 = vmatprep.subr.mxu0 0.0
    %4321 = vmatpush1.msra.mxu0 %v4303
    %4322 = vmatprep.subr.mxu0 0.0
    %4323 = vmatpush1.msra.mxu0 0.0
    %4324 = vmatprep.subr.mxu0 0.0
    %4325 = vmatpush1.msra.mxu0 0.0
    %4326 = vmatprep.subr.mxu0 0.0
    %4327 = vmatpush1.msra.mxu0 0.0
    %4328 = vmatprep.subr.mxu0 0.0
    %4329 = vmatpush1.msra.mxu0 0.0
    %4330 = vmatprep.subr.mxu0 0.0
    %4331 = vmatpush1.msra.mxu0 0.0
    %4332 = vmatprep.subr.mxu0 0.0
    %4333 = vmatpush1.msra.mxu0 0.0
    %4334 = vmatprep.subr.mxu0 0.0
    %4335 = vmatpush1.msra.mxu0 0.0
    %4336 = vmatprep.subr.mxu0 0.0
    %4337 = vmatpush1.msra.mxu0 0.0
    %4338 = vmatprep.subr.mxu0 0.0
    %4339 = vmatpush1.msra.mxu0 0.0
    %4340 = vmatprep.subr.mxu0 0.0
    %4341 = vmatpush1.msra.mxu0 0.0
    %4342 = vmatprep.subr.mxu0 0.0
    %4343 = vmatpush1.msra.mxu0 0.0
    %4344 = vmatprep.subr.mxu0 0.0
    %4345 = vmatpush1.msra.mxu0 0.0
    %4346 = vmatprep.subr.mxu0 0.0
    %4347 = vmatpush1.msra.mxu0 0.0
    %4348 = vmatprep.subr.mxu0 0.0
    %4349 = vmatpush1.msra.mxu0 0.0
    %4350 = vmatprep.subr.mxu0 0.0
    %4351 = vmatpush1.msra.mxu0 0.0
    %4352 = vmatprep.subr.mxu0 0.0
    %4353 = vmatpush1.msra.mxu0 0.0
    %4354 = vmatprep.subr.mxu0 0.0
    %4355 = vmatpush1.msra.mxu0 0.0
    %4356 = vmatprep.subr.mxu0 0.0
    %4357 = vmatpush1.msra.mxu0 0.0
    %4358 = vmatprep.subr.mxu0 0.0
    %4359 = vmatpush1.msra.mxu0 0.0
    %4360 = vmatprep.subr.mxu0 0.0
    %4361 = vmatpush1.msra.mxu0 0.0
    %4362 = vmatprep.subr.mxu0 0.0
    %4363 = vmatpush1.msra.mxu0 0.0
    %4364 = vmatprep.subr.mxu0 0.0
    %4365 = vmatpush1.msra.mxu0 0.0
    %4366 = vmatprep.subr.mxu0 0.0
    %4367 = vmatpush1.msra.mxu0 0.0
    %4368 = vmatprep.subr.mxu0 0.0
    %4369 = vmatpush1.msra.mxu0 0.0
    %4370 = vmatprep.subr.mxu0 0.0
    %4371 = vmatpush1.msra.mxu0 0.0
    %4372 = vmatprep.subr.mxu0 0.0
    %4373 = vmatpush1.msra.mxu0 0.0
    %4374 = vmatprep.subr.mxu0 0.0
    %4375 = vmatpush1.msra.mxu0 0.0
    %4376 = vmatprep.subr.mxu0 0.0
    %4377 = vmatpush1.msra.mxu0 0.0
    %4378 = vmatprep.mubr.f32.mxu0 0.0
    %4379 = vmatmul.mubr.f32.gmra.mrb[0].mxu0 %v4312
    %v4380 = vpop.f32.mrb[0].mxu0
    %v4381 = vadd.f32 %v4309, %v4380
    %v4382 = vpop.f32.mrb[0].mxu0
    %4383 = vdwg.mxu0
    %4384 = vst [vmem:[%s12] sm:$0xff] %v4381
    // Predicated region
    $region74: #{rnn_forward.1} parent=1 // pred_check
      _
    $region75: #{rnn_forward.1} parent=1 // pred_check_branch
      %4386 = sbr.rel (0) target = $region77
    $region76: #{rnn_forward.1} parent=1 // pred_region
      _
    $region77: #{rnn_forward.1} parent=1 // pred_fallthru
      _
    // Predicated region
    $region78: #{rnn_forward.1} parent=1 // pred_check
      _
    $region79: #{rnn_forward.1} parent=1 // pred_check_branch
      %4388 = sbr.rel (0) target = $region81
    $region80: #{rnn_forward.1} parent=1 // pred_region
      _
    $region81: #{rnn_forward.1} parent=1 // pred_fallthru
      _
    // Predicated region
    $region82: #{rnn_forward.1} parent=1 // pred_check
      _
    $region83: #{rnn_forward.1} parent=1 // pred_check_branch
      %4390 = sbr.rel (0) target = $region85
    $region84: #{rnn_forward.1} parent=1 // pred_region
      _
    $region85: #{rnn_forward.1} parent=1 // pred_fallthru
      _
    // Predicated region
    $region86: #{rnn_forward.1} parent=1 // pred_check
      _
    $region87: #{rnn_forward.1} parent=1 // pred_check_branch
      %4392 = sbr.rel (0) target = $region89
    $region88: #{rnn_forward.1} parent=1 // pred_region
      _
    $region89: #{rnn_forward.1} parent=1 // pred_fallthru
      _
    %4393 = vsyncpa [#allocation4], 1
    %4394 = vsyncpa [#allocation6], 1
    %4395 = vsyncpa [#allocation9], 1
    %4396 = vsyncpa [#allocation12], 1

</llo_original>
